<compile_context>
chip_gen: v6e
topology: v6e:2x2x1
jax: 0.10.0
libtpu: 0.0.40
codegen_flags: <defaults>
</compile_context>

<pallas_src>
import functools
import math

import jax
import jax.numpy as jnp
from jax.experimental import pallas as pl
from jax.experimental.pallas import tpu as pltpu


# ----------------------------------------------------------------------------
# Fused kernel:
#   prologue : X_ = X @ W_cat                                  -> [N, C*D]
#   L layers : H  <- A_cat @ vstack_j(filt[l, j, :] * H)        (one K=E*N dot)
#   epilogue : out = relu(beta*X_ + (1-beta)*H) @ M_avg         -> [N, D]
# ----------------------------------------------------------------------------
def _fastgtn_kernel(filt_ref, x_ref, w_ref, mavg_ref, a_hbm, out_ref,
                    xproj_ref, h_ref, hstk_ref, a_vmem, dma_sem, *,
                    num_layers, num_edge_type, num_nodes, row_tile, beta):
    E = num_edge_type
    N = num_nodes
    TM = row_tile
    NT = N // TM

    # Manual DMA of A (HBM -> resident VMEM copy), row-tiled and issued two
    # tiles ahead so the projection matmul + H_stack build + earlier row-tile
    # matmuls of layer 0 hide the transfer.  A is read from HBM exactly once.
    def a_copy(t, slot):
        return pltpu.make_async_copy(
            a_hbm.at[pl.ds(t * TM, TM), :],
            a_vmem.at[pl.ds(t * TM, TM), :],
            dma_sem.at[slot])

    a_copy(0, 0).start()
    if NT > 1:
        a_copy(1, 1).start()

    # --- prologue: all per-channel GCNConv projections as one lane-dense dot ---
    xp = jnp.dot(x_ref[...], w_ref[...], preferred_element_type=jnp.float32)
    xproj_ref[...] = xp          # X_ kept for the beta mix in the epilogue
    h_ref[...] = xp              # H starts equal to X_ for every channel

    # --- layer loop (statically unrolled; H resident in VMEM across layers) ---
    for l in range(num_layers):
        # Fold the softmaxed edge-type filter into the stacked-H matmul operand:
        #   filt[l,c,j] * (A[j] @ H_c)  ==  A[j] @ (filt[l,c,j] * H_c)
        # so the per-layer edge-type sum becomes ONE K = E*N matmul whose sum
        # stays in the MXU accumulator.  bf16 operands, f32 accumulation.
        for j in range(E):
            hstk_ref[pl.ds(j * N, N), :] = (
                filt_ref[l, j] * h_ref[...]).astype(hstk_ref.dtype)

        if l == 0:
            # First pass over A: consume row-tiles as their DMAs land.
            for t in range(NT):
                a_copy(t, t % 2).wait()
                if t + 2 < NT:
                    a_copy(t + 2, t % 2).start()
                h_ref[pl.ds(t * TM, TM), :] = jnp.dot(
                    a_vmem[pl.ds(t * TM, TM), :], hstk_ref[...],
                    preferred_element_type=jnp.float32)
        else:
            # A fully resident in VMEM: one big matmul per layer.
            h_ref[...] = jnp.dot(a_vmem[...], hstk_ref[...],
                                 preferred_element_type=jnp.float32)

    # --- epilogue: beta mix + relu; 'mean' channel agg as a tiny MXU matmul ---
    mixed = jnp.maximum(
        beta * xproj_ref[...] + (1.0 - beta) * h_ref[...], 0.0)     # [N, C*D]
    out_ref[...] = jnp.dot(mixed, mavg_ref[...],
                           preferred_element_type=jnp.float32)      # [N, D]


def fastgtn_forward(params, A_dense, X, *, beta, row_tile=128):
    conv_w = params["conv_w"]                    # [L, C, E]
    Ws = params["Ws"]                            # [C, w_in, D]
    L, C, E = conv_w.shape
    _, w_in, D = Ws.shape
    N = X.shape[0]
    CD = C * D
    EN = E * N
    TM = min(row_tile, N)
    assert N % TM == 0  # TODO(synk): pad N to a multiple of the row tile.

    # One-time precomputations (outside the hot path):
    #  - softmax of the FastGTConv weights over the edge-type dim,
    #  - lane-expansion of the filter so the kernel applies it as a per-column
    #    scale: filt_exp[l, j, 0, c*D + d] = softmax(conv_w[l])[c, j],
    #  - channel-concatenated projection weight W_cat[:, c*D:(c+1)*D] = Ws[c],
    #  - channel-mean matrix M_avg = vstack_c(I_D) / C  (mean as a matmul),
    #  - A laid out as [N, E*N] (A_cat[n, j*N+m] = A[j,n,m]) in bf16.
    filt = jax.nn.softmax(conv_w, axis=2)                               # [L, C, E]
    filt_exp = jnp.repeat(jnp.transpose(filt, (0, 2, 1)), D, axis=-1)   # [L, E, C*D]
    filt_exp = filt_exp.reshape(L, E, 1, CD)
    W_cat = jnp.transpose(Ws, (1, 0, 2)).reshape(w_in, CD)              # [w_in, C*D]
    M_avg = jnp.tile(jnp.eye(D, dtype=jnp.float32), (C, 1)) / C         # [C*D, D]
    A_cat = jnp.transpose(A_dense, (1, 0, 2)).reshape(N, EN)
    A_cat = A_cat.astype(jnp.bfloat16)

    kern = functools.partial(
        _fastgtn_kernel, num_layers=L, num_edge_type=E,
        num_nodes=N, row_tile=TM, beta=float(beta))

    # Re-derived VMEM budget: the resident A copy is a scratch we DMA into
    # ourselves, so it is single-buffered (never pipeline double-buffered).
    vmem_needed = (
        N * EN * 2            # resident bf16 A copy
        + EN * CD * 2         # filter-scaled stacked H (bf16 matmul operand)
        + 2 * N * CD * 4      # X_ and H (f32)
        + N * w_in * 4 + w_in * CD * 4 + CD * D * 4 + L * E * CD * 4
        + N * D * 4)
    vmem_limit = int(min(100 * 1024 * 1024,
                         max(2 * vmem_needed, 32 * 1024 * 1024)))

    return pl.pallas_call(
        kern,
        out_shape=jax.ShapeDtypeStruct((N, D), jnp.float32),
        in_specs=[
            pl.BlockSpec(memory_space=pltpu.MemorySpace.VMEM),   # lane-expanded filters
            pl.BlockSpec(memory_space=pltpu.MemorySpace.VMEM),   # X
            pl.BlockSpec(memory_space=pltpu.MemorySpace.VMEM),   # concatenated GCN weights
            pl.BlockSpec(memory_space=pltpu.MemorySpace.VMEM),   # channel-mean matrix
            pl.BlockSpec(memory_space=pl.ANY),                   # A stays in HBM (manual DMA)
        ],
        out_specs=pl.BlockSpec(memory_space=pltpu.MemorySpace.VMEM),
        scratch_shapes=[
            pltpu.VMEM((N, CD), jnp.float32),        # X_ (for the beta mix)
            pltpu.VMEM((N, CD), jnp.float32),        # H (layer-resident, f32)
            pltpu.VMEM((EN, CD), jnp.bfloat16),      # stacked, filter-scaled H
            pltpu.VMEM((N, EN), jnp.bfloat16),       # resident A copy (DMA target)
            pltpu.SemaphoreType.DMA((2,)),           # 2-slot streaming semaphores
        ],
        compiler_params=pltpu.CompilerParams(vmem_limit_bytes=vmem_limit),
    )(filt_exp, X, W_cat, M_avg, A_cat)


def fastgtn_reference(params, A_dense, X, *, beta):
    """Pure-JAX reference (mirrors the PyTorch math, f32 HIGHEST precision)."""
    C = params["Ws"].shape[0]
    X_ = jnp.stack([X @ params["Ws"][c] for c in range(C)], axis=0)
    H = X_
    for l in range(params["conv_w"].shape[0]):
        filt = jax.nn.softmax(params["conv_w"][l], axis=1)              # [C, E]
        A_comb = jnp.einsum("ce,enm->cnm", filt, A_dense,
                            precision=jax.lax.Precision.HIGHEST)
        H = jnp.einsum("cnm,cmd->cnd", A_comb, H,
                       precision=jax.lax.Precision.HIGHEST)
    mixed = jax.nn.relu(beta * X_ + (1.0 - beta) * H)
    return jnp.mean(mixed, axis=0)


# ----------------------------------------------------------------------------
# Deterministic parameter / input construction
# ----------------------------------------------------------------------------
def make_params(key, *, num_layers, num_channels, num_edge_type, w_in, w_out):
    k1, k2 = jax.random.split(key)
    # FastGTConv.weight ~ Normal(0, 0.1), shape [out_channels=C, in_channels=E]
    conv_w = 0.1 * jax.random.normal(
        k1, (num_layers, num_channels, num_edge_type), dtype=jnp.float32)
    # GCNConv.weight, glorot-uniform, shape [w_in, w_out], one per channel.
    bound = math.sqrt(6.0 / (w_in + w_out))
    Ws = jax.random.uniform(
        k2, (num_channels, w_in, w_out), dtype=jnp.float32,
        minval=-bound, maxval=bound)
    return {"conv_w": conv_w, "Ws": Ws}


if __name__ == "__main__":
    # Small shapes consistent with the module.  node_dim=64 makes C*D = 128
    # (full MXU lane width); N=256 with row_tile=128 exercises the 2-tile
    # double-buffered A streaming path.
    NUM_NODES = 256      # num_nodes
    W_IN = 32            # w_in
    NODE_DIM = 64        # args.node_dim == w_out
    NUM_CHANNELS = 2     # args.num_channels
    NUM_EDGE_TYPE = 3    # num_edge_type (args.non_local == False)
    NUM_LAYERS = 2       # args.num_layers
    BETA = 0.5           # args.beta

    key = jax.random.PRNGKey(0)
    kp, kx, ka = jax.random.split(key, 3)

    params = make_params(kp, num_layers=NUM_LAYERS, num_channels=NUM_CHANNELS,
                         num_edge_type=NUM_EDGE_TYPE, w_in=W_IN,
                         w_out=NODE_DIM)

    X = jax.random.normal(kx, (NUM_NODES, W_IN), dtype=jnp.float32)
    # Dense stand-in for the list of sparse (edge_index, edge_value) graphs:
    # non-negative edge weights, scaled by 1/N to keep magnitudes moderate.
    A_dense = jax.random.uniform(
        ka, (NUM_EDGE_TYPE, NUM_NODES, NUM_NODES), dtype=jnp.float32)
    A_dense = A_dense / NUM_NODES

    out = fastgtn_forward(params, A_dense, X, beta=BETA)
    out = jax.block_until_ready(out)

    ref = fastgtn_reference(params, A_dense, X, beta=BETA)
    ref = jax.block_until_ready(ref)

    assert out.shape == (NUM_NODES, NODE_DIM), out.shape
    # Tolerance reflects: bf16 MXU operands for A / stacked-H (f32 accumulation),
    # default MXU precision for the f32 projection/epilogue dots, and the
    # distributed (per-edge-type) summation order; reference is f32 @ HIGHEST.
    assert jnp.allclose(out, ref, rtol=2e-2, atol=2e-2), (
        float(jnp.max(jnp.abs(out - ref))))

    print("KERNEL_OK")
</pallas_src>

<mosaic_0001>
module attributes {stable_mosaic.version = 11 : i64} {
  func.func @_fastgtn_kernel(%arg0: memref<2x3x1x128xf32, #tpu.memory_space<vmem>>, %arg1: memref<256x32xf32, #tpu.memory_space<vmem>>, %arg2: memref<32x128xf32, #tpu.memory_space<vmem>>, %arg3: memref<128x64xf32, #tpu.memory_space<vmem>>, %arg4: memref<256x768xbf16, #tpu.memory_space<any>>, %arg5: memref<256x64xf32, #tpu.memory_space<vmem>>, %arg6: memref<256x128xf32, #tpu.memory_space<vmem>>, %arg7: memref<256x128xf32, #tpu.memory_space<vmem>>, %arg8: memref<768x128xbf16, #tpu.memory_space<vmem>>, %arg9: memref<256x768xbf16, #tpu.memory_space<vmem>>, %arg10: memref<2x!tpu.dma_semaphore, #tpu.memory_space<semaphore_mem>>) attributes {dimension_semantics = [], scalar_prefetch = 0 : i64, scratch_operands = 5 : i64, tpu.core_type = #tpu.core_type<tc>} {
    %c0_i32 = arith.constant 0 : i32
    %c0_i32_0 = arith.constant 0 : i32
    %c0_i32_1 = arith.constant 0 : i32
    %0 = tpu.memref_slice %arg4[%c0_i32_0, %c0_i32_1] : memref<256x768xbf16, #tpu.memory_space<any>> -> memref<128x768xbf16, #tpu.memory_space<any>>
    %c0_i32_2 = arith.constant 0 : i32
    %c0_i32_3 = arith.constant 0 : i32
    %1 = tpu.memref_slice %arg9[%c0_i32_2, %c0_i32_3] : memref<256x768xbf16, #tpu.memory_space<vmem>> -> memref<128x768xbf16, #tpu.memory_space<vmem>>
    %2 = tpu.memref_slice %arg10[%c0_i32] : memref<2x!tpu.dma_semaphore, #tpu.memory_space<semaphore_mem>> -> memref<1x!tpu.dma_semaphore, #tpu.memory_space<semaphore_mem>>
    %3 = tpu.memref_squeeze %2 : memref<1x!tpu.dma_semaphore, #tpu.memory_space<semaphore_mem>> -> memref<!tpu.dma_semaphore, #tpu.memory_space<semaphore_mem>>
    tpu.enqueue_dma source(%0 : memref<128x768xbf16, #tpu.memory_space<any>>) target(%1 : memref<128x768xbf16, #tpu.memory_space<vmem>>) target_semaphore(%3 : memref<!tpu.dma_semaphore, #tpu.memory_space<semaphore_mem>>)
    %c1_i32 = arith.constant 1 : i32
    %c128_i32 = arith.constant 128 : i32
    %c0_i32_4 = arith.constant 0 : i32
    %4 = tpu.memref_slice %arg4[%c128_i32, %c0_i32_4] : memref<256x768xbf16, #tpu.memory_space<any>> -> memref<128x768xbf16, #tpu.memory_space<any>>
    %c128_i32_5 = arith.constant 128 : i32
    %c0_i32_6 = arith.constant 0 : i32
    %5 = tpu.memref_slice %arg9[%c128_i32_5, %c0_i32_6] : memref<256x768xbf16, #tpu.memory_space<vmem>> -> memref<128x768xbf16, #tpu.memory_space<vmem>>
    %6 = tpu.memref_slice %arg10[%c1_i32] : memref<2x!tpu.dma_semaphore, #tpu.memory_space<semaphore_mem>> -> memref<1x!tpu.dma_semaphore, #tpu.memory_space<semaphore_mem>>
    %7 = tpu.memref_squeeze %6 : memref<1x!tpu.dma_semaphore, #tpu.memory_space<semaphore_mem>> -> memref<!tpu.dma_semaphore, #tpu.memory_space<semaphore_mem>>
    tpu.enqueue_dma source(%4 : memref<128x768xbf16, #tpu.memory_space<any>>) target(%5 : memref<128x768xbf16, #tpu.memory_space<vmem>>) target_semaphore(%7 : memref<!tpu.dma_semaphore, #tpu.memory_space<semaphore_mem>>)
    %c0 = arith.constant 0 : index
    %c0_7 = arith.constant 0 : index
    %8 = vector.load %arg1[%c0, %c0_7] : memref<256x32xf32, #tpu.memory_space<vmem>>, vector<256x32xf32>
    %c0_8 = arith.constant 0 : index
    %c0_9 = arith.constant 0 : index
    %9 = vector.load %arg2[%c0_8, %c0_9] : memref<32x128xf32, #tpu.memory_space<vmem>>, vector<32x128xf32>
    %cst = arith.constant dense<0.000000e+00> : vector<256x128xf32>
    %10 = tpu.matmul %8, %9, %cst {dimension_numbers = #tpu.dot_dimension_numbers<[1], [0], [0], [1], [0, 0, 1, 1], [], []>} : vector<256x32xf32>, vector<32x128xf32>, vector<256x128xf32> -> vector<256x128xf32>
    %c0_10 = arith.constant 0 : index
    %c0_11 = arith.constant 0 : index
    %11 = vector.load %arg6[%c0_10, %c0_11] : memref<256x128xf32, #tpu.memory_space<vmem>>, vector<256x128xf32>
    tpu.vector_store %arg6[%c0_10, %c0_11], %10 {strides = array<i32>} : memref<256x128xf32, #tpu.memory_space<vmem>>, vector<256x128xf32>,
    %c0_12 = arith.constant 0 : index
    %c0_13 = arith.constant 0 : index
    %12 = vector.load %arg7[%c0_12, %c0_13] : memref<256x128xf32, #tpu.memory_space<vmem>>, vector<256x128xf32>
    tpu.vector_store %arg7[%c0_12, %c0_13], %10 {strides = array<i32>} : memref<256x128xf32, #tpu.memory_space<vmem>>, vector<256x128xf32>,
    %c0_14 = arith.constant 0 : index
    %c0_15 = arith.constant 0 : index
    %c0_16 = arith.constant 0 : index
    %c0_17 = arith.constant 0 : index
    %13 = vector.load %arg0[%c0_14, %c0_15, %c0_16, %c0_17] : memref<2x3x1x128xf32, #tpu.memory_space<vmem>>, vector<1x1x1x128xf32>
    %14 = vector.shape_cast %13 : vector<1x1x1x128xf32> to vector<1x128xf32>
    %c0_18 = arith.constant 0 : index
    %c0_19 = arith.constant 0 : index
    %15 = vector.load %arg7[%c0_18, %c0_19] : memref<256x128xf32, #tpu.memory_space<vmem>>, vector<256x128xf32>
    %16 = vector.broadcast %14 : vector<1x128xf32> to vector<256x128xf32>
    %17 = arith.mulf %16, %15 : vector<256x128xf32>
    %18 = arith.truncf %17 : vector<256x128xf32> to vector<256x128xbf16>
    %c0_20 = arith.constant 0 : index
    %c0_21 = arith.constant 0 : index
    %19 = vector.load %arg8[%c0_20, %c0_21] : memref<768x128xbf16, #tpu.memory_space<vmem>>, vector<256x128xbf16>
    tpu.vector_store %arg8[%c0_20, %c0_21], %18 {strides = array<i32>} : memref<768x128xbf16, #tpu.memory_space<vmem>>, vector<256x128xbf16>,
    %c0_22 = arith.constant 0 : index
    %c1 = arith.constant 1 : index
    %c0_23 = arith.constant 0 : index
    %c0_24 = arith.constant 0 : index
    %20 = vector.load %arg0[%c0_22, %c1, %c0_23, %c0_24] : memref<2x3x1x128xf32, #tpu.memory_space<vmem>>, vector<1x1x1x128xf32>
    %21 = vector.shape_cast %20 : vector<1x1x1x128xf32> to vector<1x128xf32>
    %c0_25 = arith.constant 0 : index
    %c0_26 = arith.constant 0 : index
    %22 = vector.load %arg7[%c0_25, %c0_26] : memref<256x128xf32, #tpu.memory_space<vmem>>, vector<256x128xf32>
    %23 = vector.broadcast %21 : vector<1x128xf32> to vector<256x128xf32>
    %24 = arith.mulf %23, %22 : vector<256x128xf32>
    %25 = arith.truncf %24 : vector<256x128xf32> to vector<256x128xbf16>
    %c256 = arith.constant 256 : index
    %c0_27 = arith.constant 0 : index
    %26 = vector.load %arg8[%c256, %c0_27] : memref<768x128xbf16, #tpu.memory_space<vmem>>, vector<256x128xbf16>
    tpu.vector_store %arg8[%c256, %c0_27], %25 {strides = array<i32>} : memref<768x128xbf16, #tpu.memory_space<vmem>>, vector<256x128xbf16>,
    %c0_28 = arith.constant 0 : index
    %c2 = arith.constant 2 : index
    %c0_29 = arith.constant 0 : index
    %c0_30 = arith.constant 0 : index
    %27 = vector.load %arg0[%c0_28, %c2, %c0_29, %c0_30] : memref<2x3x1x128xf32, #tpu.memory_space<vmem>>, vector<1x1x1x128xf32>
    %28 = vector.shape_cast %27 : vector<1x1x1x128xf32> to vector<1x128xf32>
    %c0_31 = arith.constant 0 : index
    %c0_32 = arith.constant 0 : index
    %29 = vector.load %arg7[%c0_31, %c0_32] : memref<256x128xf32, #tpu.memory_space<vmem>>, vector<256x128xf32>
    %30 = vector.broadcast %28 : vector<1x128xf32> to vector<256x128xf32>
    %31 = arith.mulf %30, %29 : vector<256x128xf32>
    %32 = arith.truncf %31 : vector<256x128xf32> to vector<256x128xbf16>
    %c512 = arith.constant 512 : index
    %c0_33 = arith.constant 0 : index
    %33 = vector.load %arg8[%c512, %c0_33] : memref<768x128xbf16, #tpu.memory_space<vmem>>, vector<256x128xbf16>
    tpu.vector_store %arg8[%c512, %c0_33], %32 {strides = array<i32>} : memref<768x128xbf16, #tpu.memory_space<vmem>>, vector<256x128xbf16>,
    %c0_i32_34 = arith.constant 0 : i32
    %c0_i32_35 = arith.constant 0 : i32
    %c0_i32_36 = arith.constant 0 : i32
    %34 = tpu.memref_slice %arg4[%c0_i32_35, %c0_i32_36] : memref<256x768xbf16, #tpu.memory_space<any>> -> memref<128x768xbf16, #tpu.memory_space<any>>
    %c0_i32_37 = arith.constant 0 : i32
    %c0_i32_38 = arith.constant 0 : i32
    %35 = tpu.memref_slice %arg9[%c0_i32_37, %c0_i32_38] : memref<256x768xbf16, #tpu.memory_space<vmem>> -> memref<128x768xbf16, #tpu.memory_space<vmem>>
    %36 = tpu.memref_slice %arg10[%c0_i32_34] : memref<2x!tpu.dma_semaphore, #tpu.memory_space<semaphore_mem>> -> memref<1x!tpu.dma_semaphore, #tpu.memory_space<semaphore_mem>>
    %37 = tpu.memref_squeeze %36 : memref<1x!tpu.dma_semaphore, #tpu.memory_space<semaphore_mem>> -> memref<!tpu.dma_semaphore, #tpu.memory_space<semaphore_mem>>
    tpu.wait_dma2 semaphore(%37 : memref<!tpu.dma_semaphore, #tpu.memory_space<semaphore_mem>>) src(%34 : memref<128x768xbf16, #tpu.memory_space<any>>) dst(%35 : memref<128x768xbf16, #tpu.memory_space<vmem>>)
    %c0_39 = arith.constant 0 : index
    %c0_40 = arith.constant 0 : index
    %38 = vector.load %arg9[%c0_39, %c0_40] : memref<256x768xbf16, #tpu.memory_space<vmem>>, vector<128x768xbf16>
    %c0_41 = arith.constant 0 : index
    %c0_42 = arith.constant 0 : index
    %39 = vector.load %arg8[%c0_41, %c0_42] : memref<768x128xbf16, #tpu.memory_space<vmem>>, vector<768x128xbf16>
    %cst_43 = arith.constant dense<0.000000e+00> : vector<128x128xf32>
    %40 = tpu.matmul %38, %39, %cst_43 {dimension_numbers = #tpu.dot_dimension_numbers<[1], [0], [0], [1], [0, 0, 1, 1], [], []>} : vector<128x768xbf16>, vector<768x128xbf16>, vector<128x128xf32> -> vector<128x128xf32>
    %c0_44 = arith.constant 0 : index
    %c0_45 = arith.constant 0 : index
    %41 = vector.load %arg7[%c0_44, %c0_45] : memref<256x128xf32, #tpu.memory_space<vmem>>, vector<128x128xf32>
    tpu.vector_store %arg7[%c0_44, %c0_45], %40 {strides = array<i32>} : memref<256x128xf32, #tpu.memory_space<vmem>>, vector<128x128xf32>,
    %c1_i32_46 = arith.constant 1 : i32
    %c128_i32_47 = arith.constant 128 : i32
    %c0_i32_48 = arith.constant 0 : i32
    %42 = tpu.memref_slice %arg4[%c128_i32_47, %c0_i32_48] : memref<256x768xbf16, #tpu.memory_space<any>> -> memref<128x768xbf16, #tpu.memory_space<any>>
    %c128_i32_49 = arith.constant 128 : i32
    %c0_i32_50 = arith.constant 0 : i32
    %43 = tpu.memref_slice %arg9[%c128_i32_49, %c0_i32_50] : memref<256x768xbf16, #tpu.memory_space<vmem>> -> memref<128x768xbf16, #tpu.memory_space<vmem>>
    %44 = tpu.memref_slice %arg10[%c1_i32_46] : memref<2x!tpu.dma_semaphore, #tpu.memory_space<semaphore_mem>> -> memref<1x!tpu.dma_semaphore, #tpu.memory_space<semaphore_mem>>
    %45 = tpu.memref_squeeze %44 : memref<1x!tpu.dma_semaphore, #tpu.memory_space<semaphore_mem>> -> memref<!tpu.dma_semaphore, #tpu.memory_space<semaphore_mem>>
    tpu.wait_dma2 semaphore(%45 : memref<!tpu.dma_semaphore, #tpu.memory_space<semaphore_mem>>) src(%42 : memref<128x768xbf16, #tpu.memory_space<any>>) dst(%43 : memref<128x768xbf16, #tpu.memory_space<vmem>>)
    %c128 = arith.constant 128 : index
    %c0_51 = arith.constant 0 : index
    %46 = vector.load %arg9[%c128, %c0_51] : memref<256x768xbf16, #tpu.memory_space<vmem>>, vector<128x768xbf16>
    %c0_52 = arith.constant 0 : index
    %c0_53 = arith.constant 0 : index
    %47 = vector.load %arg8[%c0_52, %c0_53] : memref<768x128xbf16, #tpu.memory_space<vmem>>, vector<768x128xbf16>
    %cst_54 = arith.constant dense<0.000000e+00> : vector<128x128xf32>
    %48 = tpu.matmul %46, %47, %cst_54 {dimension_numbers = #tpu.dot_dimension_numbers<[1], [0], [0], [1], [0, 0, 1, 1], [], []>} : vector<128x768xbf16>, vector<768x128xbf16>, vector<128x128xf32> -> vector<128x128xf32>
    %c128_55 = arith.constant 128 : index
    %c0_56 = arith.constant 0 : index
    %49 = vector.load %arg7[%c128_55, %c0_56] : memref<256x128xf32, #tpu.memory_space<vmem>>, vector<128x128xf32>
    tpu.vector_store %arg7[%c128_55, %c0_56], %48 {strides = array<i32>} : memref<256x128xf32, #tpu.memory_space<vmem>>, vector<128x128xf32>,
    %c1_57 = arith.constant 1 : index
    %c0_58 = arith.constant 0 : index
    %c0_59 = arith.constant 0 : index
    %c0_60 = arith.constant 0 : index
    %50 = vector.load %arg0[%c1_57, %c0_58, %c0_59, %c0_60] : memref<2x3x1x128xf32, #tpu.memory_space<vmem>>, vector<1x1x1x128xf32>
    %51 = vector.shape_cast %50 : vector<1x1x1x128xf32> to vector<1x128xf32>
    %c0_61 = arith.constant 0 : index
    %c0_62 = arith.constant 0 : index
    %52 = vector.load %arg7[%c0_61, %c0_62] : memref<256x128xf32, #tpu.memory_space<vmem>>, vector<256x128xf32>
    %53 = vector.broadcast %51 : vector<1x128xf32> to vector<256x128xf32>
    %54 = arith.mulf %53, %52 : vector<256x128xf32>
    %55 = arith.truncf %54 : vector<256x128xf32> to vector<256x128xbf16>
    %c0_63 = arith.constant 0 : index
    %c0_64 = arith.constant 0 : index
    %56 = vector.load %arg8[%c0_63, %c0_64] : memref<768x128xbf16, #tpu.memory_space<vmem>>, vector<256x128xbf16>
    tpu.vector_store %arg8[%c0_63, %c0_64], %55 {strides = array<i32>} : memref<768x128xbf16, #tpu.memory_space<vmem>>, vector<256x128xbf16>,
    %c1_65 = arith.constant 1 : index
    %c1_66 = arith.constant 1 : index
    %c0_67 = arith.constant 0 : index
    %c0_68 = arith.constant 0 : index
    %57 = vector.load %arg0[%c1_65, %c1_66, %c0_67, %c0_68] : memref<2x3x1x128xf32, #tpu.memory_space<vmem>>, vector<1x1x1x128xf32>
    %58 = vector.shape_cast %57 : vector<1x1x1x128xf32> to vector<1x128xf32>
    %c0_69 = arith.constant 0 : index
    %c0_70 = arith.constant 0 : index
    %59 = vector.load %arg7[%c0_69, %c0_70] : memref<256x128xf32, #tpu.memory_space<vmem>>, vector<256x128xf32>
    %60 = vector.broadcast %58 : vector<1x128xf32> to vector<256x128xf32>
    %61 = arith.mulf %60, %59 : vector<256x128xf32>
    %62 = arith.truncf %61 : vector<256x128xf32> to vector<256x128xbf16>
    %c256_71 = arith.constant 256 : index
    %c0_72 = arith.constant 0 : index
    %63 = vector.load %arg8[%c256_71, %c0_72] : memref<768x128xbf16, #tpu.memory_space<vmem>>, vector<256x128xbf16>
    tpu.vector_store %arg8[%c256_71, %c0_72], %62 {strides = array<i32>} : memref<768x128xbf16, #tpu.memory_space<vmem>>, vector<256x128xbf16>,
    %c1_73 = arith.constant 1 : index
    %c2_74 = arith.constant 2 : index
    %c0_75 = arith.constant 0 : index
    %c0_76 = arith.constant 0 : index
    %64 = vector.load %arg0[%c1_73, %c2_74, %c0_75, %c0_76] : memref<2x3x1x128xf32, #tpu.memory_space<vmem>>, vector<1x1x1x128xf32>
    %65 = vector.shape_cast %64 : vector<1x1x1x128xf32> to vector<1x128xf32>
    %c0_77 = arith.constant 0 : index
    %c0_78 = arith.constant 0 : index
    %66 = vector.load %arg7[%c0_77, %c0_78] : memref<256x128xf32, #tpu.memory_space<vmem>>, vector<256x128xf32>
    %67 = vector.broadcast %65 : vector<1x128xf32> to vector<256x128xf32>
    %68 = arith.mulf %67, %66 : vector<256x128xf32>
    %69 = arith.truncf %68 : vector<256x128xf32> to vector<256x128xbf16>
    %c512_79 = arith.constant 512 : index
    %c0_80 = arith.constant 0 : index
    %70 = vector.load %arg8[%c512_79, %c0_80] : memref<768x128xbf16, #tpu.memory_space<vmem>>, vector<256x128xbf16>
    tpu.vector_store %arg8[%c512_79, %c0_80], %69 {strides = array<i32>} : memref<768x128xbf16, #tpu.memory_space<vmem>>, vector<256x128xbf16>,
    %c0_81 = arith.constant 0 : index
    %c0_82 = arith.constant 0 : index
    %71 = vector.load %arg9[%c0_81, %c0_82] : memref<256x768xbf16, #tpu.memory_space<vmem>>, vector<256x768xbf16>
    %c0_83 = arith.constant 0 : index
    %c0_84 = arith.constant 0 : index
    %72 = vector.load %arg8[%c0_83, %c0_84] : memref<768x128xbf16, #tpu.memory_space<vmem>>, vector<768x128xbf16>
    %cst_85 = arith.constant dense<0.000000e+00> : vector<256x128xf32>
    %73 = tpu.matmul %71, %72, %cst_85 {dimension_numbers = #tpu.dot_dimension_numbers<[1], [0], [0], [1], [0, 0, 1, 1], [], []>} : vector<256x768xbf16>, vector<768x128xbf16>, vector<256x128xf32> -> vector<256x128xf32>
    %c0_86 = arith.constant 0 : index
    %c0_87 = arith.constant 0 : index
    %74 = vector.load %arg7[%c0_86, %c0_87] : memref<256x128xf32, #tpu.memory_space<vmem>>, vector<256x128xf32>
    tpu.vector_store %arg7[%c0_86, %c0_87], %73 {strides = array<i32>} : memref<256x128xf32, #tpu.memory_space<vmem>>, vector<256x128xf32>,
    %c0_88 = arith.constant 0 : index
    %c0_89 = arith.constant 0 : index
    %75 = vector.load %arg6[%c0_88, %c0_89] : memref<256x128xf32, #tpu.memory_space<vmem>>, vector<256x128xf32>
    %cst_90 = arith.constant 5.000000e-01 : f32
    %76 = vector.broadcast %cst_90 : f32 to vector<256x128xf32>
    %77 = arith.mulf %76, %75 : vector<256x128xf32>
    %c0_91 = arith.constant 0 : index
    %c0_92 = arith.constant 0 : index
    %78 = vector.load %arg7[%c0_91, %c0_92] : memref<256x128xf32, #tpu.memory_space<vmem>>, vector<256x128xf32>
    %cst_93 = arith.constant 5.000000e-01 : f32
    %79 = vector.broadcast %cst_93 : f32 to vector<256x128xf32>
    %80 = arith.mulf %79, %78 : vector<256x128xf32>
    %81 = arith.addf %77, %80 : vector<256x128xf32>
    %cst_94 = arith.constant 0.000000e+00 : f32
    %82 = vector.broadcast %cst_94 : f32 to vector<256x128xf32>
    %83 = arith.maximumf %81, %82 : vector<256x128xf32>
    %c0_95 = arith.constant 0 : index
    %c0_96 = arith.constant 0 : index
    %84 = vector.load %arg3[%c0_95, %c0_96] : memref<128x64xf32, #tpu.memory_space<vmem>>, vector<128x64xf32>
    %cst_97 = arith.constant dense<0.000000e+00> : vector<256x64xf32>
    %85 = tpu.matmul %83, %84, %cst_97 {dimension_numbers = #tpu.dot_dimension_numbers<[1], [0], [0], [1], [0, 0, 1, 1], [], []>} : vector<256x128xf32>, vector<128x64xf32>, vector<256x64xf32> -> vector<256x64xf32>
    %c0_98 = arith.constant 0 : index
    %c0_99 = arith.constant 0 : index
    %86 = vector.load %arg5[%c0_98, %c0_99] : memref<256x64xf32, #tpu.memory_space<vmem>>, vector<256x64xf32>
    tpu.vector_store %arg5[%c0_98, %c0_99], %85 {strides = array<i32>} : memref<256x64xf32, #tpu.memory_space<vmem>>, vector<256x64xf32>,
    return
  }
}

</mosaic_0001>

<llo_original>
// kernel: tpu_custom_call.1
$region0: #{tpu_custom_call.1}
  #allocation0 [shape = 'u32[]', space=smem, size = 0x4, offset = 0x4, fixed_abs, tag = 'smem constant byte address 0x4 - core index']
  #allocation1 [shape = 'u32[144,128]{1,0:T(1,128)}', space=vmem, size = 0x12000, scoped, tag = 'internal scratch']
  #allocation2 [shape = 'f32[256,128]{1,0:T(8,128)}', space=vmem, size = 0x20000, scoped, tag = 'scratch operand']
  #allocation3 [shape = 'f32[256,128]{1,0:T(8,128)}', space=vmem, size = 0x20000, scoped, tag = 'scratch operand']
  #allocation4 [shape = 'bf16[768,128]{1,0:T(8,128)(2,1)}', space=vmem, size = 0x30000, scoped, tag = 'scratch operand']
  #allocation5 [shape = 'bf16[256,768]{1,0:T(8,128)(2,1)}', space=vmem, size = 0x60000, scoped, tag = 'scratch operand']
  #allocation6 [shape = 's32[2]{0}', space=sflag, size = 0x8, scoped, tag = 'scratch operand']
  #allocation7 [shape = 's32[]', space=sflag, size = 0x4, offset = 0, fixed_abs, tag = 'sflag constant byte address 0x0 - dummy sync flag']
  #allocation8 [shape = 's32[]', space=sflag, size = 0x4, offset = 0, fixed_abs, tag = 'sflag constant byte address 0x0 - dummy sync flag']
  #allocation9 [shape = 'u32[]', space=smem, size = 0x4, offset = 0x44, fixed_abs, tag = 'smem constant byte address 0x44 - assertion arg 0']
  #allocation10 [shape = 'u32[]', space=smem, size = 0x4, offset = 0x48, fixed_abs, tag = 'smem constant byte address 0x48 - assertion arg 1']
  #allocation11 [shape = 's32[]', space=sflag, size = 0x4, offset = 0, fixed_abs, tag = 'sflag constant byte address 0x0 - dummy sync flag']
  #allocation12 [shape = 's32[]', space=sflag, size = 0x4, offset = 0, fixed_abs, tag = 'sflag constant byte address 0x0 - dummy sync flag']
  %s0 = inlined_call_operand.vmem [shape: f32[2,3,1,128], index: 0, kind: input, shape index: {}]
  %s1 = inlined_call_operand.vmem [shape: f32[256,32], index: 1, kind: input, shape index: {}]
  %s2 = inlined_call_operand.vmem [shape: f32[32,128], index: 2, kind: input, shape index: {}]
  %s3 = inlined_call_operand.vmem [shape: f32[128,64], index: 3, kind: input, shape index: {}]
  %s4 = inlined_call_operand.hbm [shape: bf16[256,768], index: 4, kind: input, shape index: {}]
  %s5 = inlined_call_operand.vmem [shape: f32[256,64], index: 5, kind: output, shape index: {}]
  %s6 = sld [smem:[#allocation0]]
  $region34: #{tpu_custom_call.1} parent=0
    _
  %s8 = ssub.s32 1, %s6
  %s9 = scalar_select 0, %s8, %s6
  // Predicated region
  $region2: #{tpu_custom_call.1} parent=0 // pred_check
    _
  $region3: #{tpu_custom_call.1} parent=0 // pred_check_branch
    %11 = sbr.rel (0) target = $region5
  $region4: #{tpu_custom_call.1} parent=0 // pred_region
    _
  $region5: #{tpu_custom_call.1} parent=0 // pred_fallthru
    _
  // Predicated region
  $region6: #{tpu_custom_call.1} parent=0 // pred_check
    _
  $region7: #{tpu_custom_call.1} parent=0 // pred_check_branch
    %13 = sbr.rel (0) target = $region9
  $region8: #{tpu_custom_call.1} parent=0 // pred_region
    _
  $region9: #{tpu_custom_call.1} parent=0 // pred_fallthru
    _
  // Predicated region
  $region10: #{tpu_custom_call.1} parent=0 // pred_check
    _
  $region11: #{tpu_custom_call.1} parent=0 // pred_check_branch
    %15 = sbr.rel (0) target = $region13
  $region12: #{tpu_custom_call.1} parent=0 // pred_region
    _
  $region13: #{tpu_custom_call.1} parent=0 // pred_fallthru
    _
  // Predicated region
  $region14: #{tpu_custom_call.1} parent=0 // pred_check
    _
  $region15: #{tpu_custom_call.1} parent=0 // pred_check_branch
    %17 = sbr.rel (0) target = $region17
  $region16: #{tpu_custom_call.1} parent=0 // pred_region
    _
  $region17: #{tpu_custom_call.1} parent=0 // pred_fallthru
    _
  // Predicated region
  $region18: #{tpu_custom_call.1} parent=0 // pred_check
    _
  $region19: #{tpu_custom_call.1} parent=0 // pred_check_branch
    %20 = sbr.rel target = $region21
  $region20: #{tpu_custom_call.1} parent=0 // pred_region
    %21 = sst [smem:[#allocation9]] [#allocation8]
    %22 = sst [smem:[#allocation10]] [#allocation7]
  $region21: #{tpu_custom_call.1} parent=0 // pred_fallthru
    _
  %24 = shalt.err (0)
  %s26 = sshll.u32 [#allocation5], 4
  %s27 = int_to_ptr.vmem [resolvable:$true] %s26
  %29 = dma.hbm_to_vmem [thread:$0]  %s4, 6144, %s27, [#allocation6]
  %s30 = scalar_lea.hbm %s4, 6144
  %s31 = scalar_lea.vmem [#allocation5], 384
  %s32 = scalar_lea.sflag [#allocation6], 1
  // Predicated region
  $region22: #{tpu_custom_call.1} parent=0 // pred_check
    _
  $region23: #{tpu_custom_call.1} parent=0 // pred_check_branch
    %34 = sbr.rel target = $region25
  $region24: #{tpu_custom_call.1} parent=0 // pred_region
    %35 = sst [smem:[#allocation9]] [#allocation12]
    %36 = sst [smem:[#allocation10]] [#allocation11]
  $region25: #{tpu_custom_call.1} parent=0 // pred_fallthru
    _
  %38 = shalt.err (0)
  %s40 = sshll.u32 %s31, 4
  %s41 = int_to_ptr.vmem [resolvable:$true] %s40
  %43 = dma.hbm_to_vmem [thread:$0]  %s30, 6144, %s41, %s32
  %v44 = vld [vmem:[%s1] sm:$0xff]
  %v45 = vld [vmem:[%s1 + $0x8] sm:$0xff]
  %v46 = vld [vmem:[%s1 + $0x10] sm:$0xff]
  %v47 = vld [vmem:[%s1 + $0x18] sm:$0xff]
  %v48 = vld [vmem:[%s1 + $0x20] sm:$0xff]
  %v49 = vld [vmem:[%s1 + $0x28] sm:$0xff]
  %v50 = vld [vmem:[%s1 + $0x30] sm:$0xff]
  %v51 = vld [vmem:[%s1 + $0x38] sm:$0xff]
  %v52 = vld [vmem:[%s1 + $0x40] sm:$0xff]
  %v53 = vld [vmem:[%s1 + $0x48] sm:$0xff]
  %v54 = vld [vmem:[%s1 + $0x50] sm:$0xff]
  %v55 = vld [vmem:[%s1 + $0x58] sm:$0xff]
  %v56 = vld [vmem:[%s1 + $0x60] sm:$0xff]
  %v57 = vld [vmem:[%s1 + $0x68] sm:$0xff]
  %v58 = vld [vmem:[%s1 + $0x70] sm:$0xff]
  %v59 = vld [vmem:[%s1 + $0x78] sm:$0xff]
  %v60 = vld [vmem:[%s1 + $0x80] sm:$0xff]
  %v61 = vld [vmem:[%s1 + $0x88] sm:$0xff]
  %v62 = vld [vmem:[%s1 + $0x90] sm:$0xff]
  %v63 = vld [vmem:[%s1 + $0x98] sm:$0xff]
  %v64 = vld [vmem:[%s1 + $0xa0] sm:$0xff]
  %v65 = vld [vmem:[%s1 + $0xa8] sm:$0xff]
  %v66 = vld [vmem:[%s1 + $0xb0] sm:$0xff]
  %v67 = vld [vmem:[%s1 + $0xb8] sm:$0xff]
  %v68 = vld [vmem:[%s1 + $0xc0] sm:$0xff]
  %v69 = vld [vmem:[%s1 + $0xc8] sm:$0xff]
  %v70 = vld [vmem:[%s1 + $0xd0] sm:$0xff]
  %v71 = vld [vmem:[%s1 + $0xd8] sm:$0xff]
  %v72 = vld [vmem:[%s1 + $0xe0] sm:$0xff]
  %v73 = vld [vmem:[%s1 + $0xe8] sm:$0xff]
  %v74 = vld [vmem:[%s1 + $0xf0] sm:$0xff]
  %v75 = vld [vmem:[%s1 + $0xf8] sm:$0xff]
  %v76 = vld [vmem:[%s2] sm:$0xff]
  %v77 = vld [vmem:[%s2 + $0x8] sm:$0xff]
  %v78 = vld [vmem:[%s2 + $0x10] sm:$0xff]
  %v79 = vld [vmem:[%s2 + $0x18] sm:$0xff]
  %vm80 = vcmask 261120
  %v82 = vsel %vm80, %v44, 0
  %v85 = vsel %vm80, %v45, 0
  %v88 = vsel %vm80, %v46, 0
  %v91 = vsel %vm80, %v47, 0
  %v94 = vsel %vm80, %v48, 0
  %v97 = vsel %vm80, %v49, 0
  %v100 = vsel %vm80, %v50, 0
  %v103 = vsel %vm80, %v51, 0
  %v106 = vsel %vm80, %v52, 0
  %v109 = vsel %vm80, %v53, 0
  %v112 = vsel %vm80, %v54, 0
  %v115 = vsel %vm80, %v55, 0
  %v118 = vsel %vm80, %v56, 0
  %v121 = vsel %vm80, %v57, 0
  %v124 = vsel %vm80, %v58, 0
  %v127 = vsel %vm80, %v59, 0
  %v130 = vsel %vm80, %v60, 0
  %v133 = vsel %vm80, %v61, 0
  %v136 = vsel %vm80, %v62, 0
  %v139 = vsel %vm80, %v63, 0
  %v142 = vsel %vm80, %v64, 0
  %v145 = vsel %vm80, %v65, 0
  %v148 = vsel %vm80, %v66, 0
  %v151 = vsel %vm80, %v67, 0
  %v154 = vsel %vm80, %v68, 0
  %v157 = vsel %vm80, %v69, 0
  %v160 = vsel %vm80, %v70, 0
  %v163 = vsel %vm80, %v71, 0
  %v166 = vsel %vm80, %v72, 0
  %v169 = vsel %vm80, %v73, 0
  %v172 = vsel %vm80, %v74, 0
  %v175 = vsel %vm80, %v75, 0
  %177 = vmatprep.subr.mxu0 0.0
  %178 = vmatpush1.msra.mxu0 0.0
  %179 = vmatprep.subr.mxu0 0.0
  %180 = vmatpush1.msra.mxu0 0.0
  %181 = vmatprep.subr.mxu0 0.0
  %182 = vmatpush1.msra.mxu0 0.0
  %183 = vmatprep.subr.mxu0 0.0
  %184 = vmatpush1.msra.mxu0 0.0
  %185 = vmatprep.subr.mxu0 0.0
  %186 = vmatpush1.msra.mxu0 0.0
  %187 = vmatprep.subr.mxu0 0.0
  %188 = vmatpush1.msra.mxu0 0.0
  %189 = vmatprep.subr.mxu0 0.0
  %190 = vmatpush1.msra.mxu0 0.0
  %191 = vmatprep.subr.mxu0 0.0
  %192 = vmatpush1.msra.mxu0 0.0
  %193 = vmatprep.subr.mxu0 0.0
  %194 = vmatpush1.msra.mxu0 0.0
  %195 = vmatprep.subr.mxu0 0.0
  %196 = vmatpush1.msra.mxu0 0.0
  %197 = vmatprep.subr.mxu0 0.0
  %198 = vmatpush1.msra.mxu0 0.0
  %199 = vmatprep.subr.mxu0 0.0
  %200 = vmatpush1.msra.mxu0 0.0
  %201 = vmatprep.subr.mxu0 0.0
  %202 = vmatpush1.msra.mxu0 %v79
  %203 = vmatprep.subr.mxu0 0.0
  %204 = vmatpush1.msra.mxu0 %v78
  %205 = vmatprep.subr.mxu0 0.0
  %206 = vmatpush1.msra.mxu0 %v77
  %207 = vmatprep.subr.mxu0 0.0
  %208 = vmatpush1.msra.mxu0 %v76
  %209 = vmatprep.subr.mxu0 0.0
  %210 = vmatpush2.msra.mxu0 0.0
  %211 = vmatprep.subr.mxu0 0.0
  %212 = vmatpush2.msra.mxu0 0.0
  %213 = vmatprep.subr.mxu0 0.0
  %214 = vmatpush2.msra.mxu0 0.0
  %215 = vmatprep.subr.mxu0 0.0
  %216 = vmatpush2.msra.mxu0 0.0
  %217 = vmatprep.subr.mxu0 0.0
  %218 = vmatpush2.msra.mxu0 0.0
  %219 = vmatprep.subr.mxu0 0.0
  %220 = vmatpush2.msra.mxu0 0.0
  %221 = vmatprep.subr.mxu0 0.0
  %222 = vmatpush2.msra.mxu0 0.0
  %223 = vmatprep.subr.mxu0 0.0
  %224 = vmatpush2.msra.mxu0 0.0
  %225 = vmatprep.subr.mxu0 0.0
  %226 = vmatpush2.msra.mxu0 0.0
  %227 = vmatprep.subr.mxu0 0.0
  %228 = vmatpush2.msra.mxu0 0.0
  %229 = vmatprep.subr.mxu0 0.0
  %230 = vmatpush2.msra.mxu0 0.0
  %231 = vmatprep.subr.mxu0 0.0
  %232 = vmatpush2.msra.mxu0 0.0
  %233 = vmatprep.subr.mxu0 0.0
  %234 = vmatpush2.msra.mxu0 0.0
  %235 = vmatprep.subr.mxu0 0.0
  %236 = vmatpush2.msra.mxu0 0.0
  %237 = vmatprep.subr.mxu0 0.0
  %238 = vmatpush2.msra.mxu0 0.0
  %239 = vmatprep.subr.mxu0 0.0
  %240 = vmatpush2.msra.mxu0 0.0
  %241 = vmatprep.mubr.f32.mxu0 0.0
  %242 = vmatmul.mubr.f32.gmra.mxu0 %v82
  %v243 = vpop.f32.mrf.mxu0
  %v244 = vadd.f32 0.0, %v243
  %v245 = vpop.f32.mrf.mxu0
  %246 = vmatprep.mubr.f32.mxu0 0.0
  %247 = vmatmul.mubr.f32.gmra.mxu0 %v85
  %v248 = vpop.f32.mrf.mxu0
  %v249 = vadd.f32 0.0, %v248
  %v250 = vpop.f32.mrf.mxu0
  %251 = vmatprep.mubr.f32.mxu0 0.0
  %252 = vmatmul.mubr.f32.gmra.mxu0 %v88
  %v253 = vpop.f32.mrf.mxu0
  %v254 = vadd.f32 0.0, %v253
  %v255 = vpop.f32.mrf.mxu0
  %256 = vmatprep.mubr.f32.mxu0 0.0
  %257 = vmatmul.mubr.f32.gmra.mxu0 %v91
  %v258 = vpop.f32.mrf.mxu0
  %v259 = vadd.f32 0.0, %v258
  %v260 = vpop.f32.mrf.mxu0
  %261 = vmatprep.mubr.f32.mxu0 0.0
  %262 = vmatmul.mubr.f32.gmra.mxu0 %v94
  %v263 = vpop.f32.mrf.mxu0
  %v264 = vadd.f32 0.0, %v263
  %v265 = vpop.f32.mrf.mxu0
  %266 = vmatprep.mubr.f32.mxu0 0.0
  %267 = vmatmul.mubr.f32.gmra.mxu0 %v97
  %v268 = vpop.f32.mrf.mxu0
  %v269 = vadd.f32 0.0, %v268
  %v270 = vpop.f32.mrf.mxu0
  %271 = vmatprep.mubr.f32.mxu0 0.0
  %272 = vmatmul.mubr.f32.gmra.mxu0 %v100
  %v273 = vpop.f32.mrf.mxu0
  %v274 = vadd.f32 0.0, %v273
  %v275 = vpop.f32.mrf.mxu0
  %276 = vmatprep.mubr.f32.mxu0 0.0
  %277 = vmatmul.mubr.f32.gmra.mxu0 %v103
  %v278 = vpop.f32.mrf.mxu0
  %v279 = vadd.f32 0.0, %v278
  %v280 = vpop.f32.mrf.mxu0
  %281 = vmatprep.mubr.f32.mxu0 0.0
  %282 = vmatmul.mubr.f32.gmra.mxu0 %v106
  %v283 = vpop.f32.mrf.mxu0
  %v284 = vadd.f32 0.0, %v283
  %v285 = vpop.f32.mrf.mxu0
  %286 = vmatprep.mubr.f32.mxu0 0.0
  %287 = vmatmul.mubr.f32.gmra.mxu0 %v109
  %v288 = vpop.f32.mrf.mxu0
  %v289 = vadd.f32 0.0, %v288
  %v290 = vpop.f32.mrf.mxu0
  %291 = vmatprep.mubr.f32.mxu0 0.0
  %292 = vmatmul.mubr.f32.gmra.mxu0 %v112
  %v293 = vpop.f32.mrf.mxu0
  %v294 = vadd.f32 0.0, %v293
  %v295 = vpop.f32.mrf.mxu0
  %296 = vmatprep.mubr.f32.mxu0 0.0
  %297 = vmatmul.mubr.f32.gmra.mxu0 %v115
  %v298 = vpop.f32.mrf.mxu0
  %v299 = vadd.f32 0.0, %v298
  %v300 = vpop.f32.mrf.mxu0
  %301 = vmatprep.mubr.f32.mxu0 0.0
  %302 = vmatmul.mubr.f32.gmra.mxu0 %v118
  %v303 = vpop.f32.mrf.mxu0
  %v304 = vadd.f32 0.0, %v303
  %v305 = vpop.f32.mrf.mxu0
  %306 = vmatprep.mubr.f32.mxu0 0.0
  %307 = vmatmul.mubr.f32.gmra.mxu0 %v121
  %v308 = vpop.f32.mrf.mxu0
  %v309 = vadd.f32 0.0, %v308
  %v310 = vpop.f32.mrf.mxu0
  %311 = vmatprep.mubr.f32.mxu0 0.0
  %312 = vmatmul.mubr.f32.gmra.mxu0 %v124
  %v313 = vpop.f32.mrf.mxu0
  %v314 = vadd.f32 0.0, %v313
  %v315 = vpop.f32.mrf.mxu0
  %316 = vmatprep.mubr.f32.mxu0 0.0
  %317 = vmatmul.mubr.f32.gmra.mxu0 %v127
  %v318 = vpop.f32.mrf.mxu0
  %v319 = vadd.f32 0.0, %v318
  %v320 = vpop.f32.mrf.mxu0
  %321 = vmatprep.mubr.f32.mxu0 0.0
  %322 = vmatmul.mubr.f32.gmra.mxu0 %v130
  %v323 = vpop.f32.mrf.mxu0
  %v324 = vadd.f32 0.0, %v323
  %v325 = vpop.f32.mrf.mxu0
  %326 = vmatprep.mubr.f32.mxu0 0.0
  %327 = vmatmul.mubr.f32.gmra.mxu0 %v133
  %v328 = vpop.f32.mrf.mxu0
  %v329 = vadd.f32 0.0, %v328
  %v330 = vpop.f32.mrf.mxu0
  %331 = vmatprep.mubr.f32.mxu0 0.0
  %332 = vmatmul.mubr.f32.gmra.mxu0 %v136
  %v333 = vpop.f32.mrf.mxu0
  %v334 = vadd.f32 0.0, %v333
  %v335 = vpop.f32.mrf.mxu0
  %336 = vmatprep.mubr.f32.mxu0 0.0
  %337 = vmatmul.mubr.f32.gmra.mxu0 %v139
  %v338 = vpop.f32.mrf.mxu0
  %v339 = vadd.f32 0.0, %v338
  %v340 = vpop.f32.mrf.mxu0
  %341 = vmatprep.mubr.f32.mxu0 0.0
  %342 = vmatmul.mubr.f32.gmra.mxu0 %v142
  %v343 = vpop.f32.mrf.mxu0
  %v344 = vadd.f32 0.0, %v343
  %v345 = vpop.f32.mrf.mxu0
  %346 = vmatprep.mubr.f32.mxu0 0.0
  %347 = vmatmul.mubr.f32.gmra.mxu0 %v145
  %v348 = vpop.f32.mrf.mxu0
  %v349 = vadd.f32 0.0, %v348
  %v350 = vpop.f32.mrf.mxu0
  %351 = vmatprep.mubr.f32.mxu0 0.0
  %352 = vmatmul.mubr.f32.gmra.mxu0 %v148
  %v353 = vpop.f32.mrf.mxu0
  %v354 = vadd.f32 0.0, %v353
  %v355 = vpop.f32.mrf.mxu0
  %356 = vmatprep.mubr.f32.mxu0 0.0
  %357 = vmatmul.mubr.f32.gmra.mxu0 %v151
  %v358 = vpop.f32.mrf.mxu0
  %v359 = vadd.f32 0.0, %v358
  %v360 = vpop.f32.mrf.mxu0
  %361 = vmatprep.mubr.f32.mxu0 0.0
  %362 = vmatmul.mubr.f32.gmra.mxu0 %v154
  %v363 = vpop.f32.mrf.mxu0
  %v364 = vadd.f32 0.0, %v363
  %v365 = vpop.f32.mrf.mxu0
  %366 = vmatprep.mubr.f32.mxu0 0.0
  %367 = vmatmul.mubr.f32.gmra.mxu0 %v157
  %v368 = vpop.f32.mrf.mxu0
  %v369 = vadd.f32 0.0, %v368
  %v370 = vpop.f32.mrf.mxu0
  %371 = vmatprep.mubr.f32.mxu0 0.0
  %372 = vmatmul.mubr.f32.gmra.mxu0 %v160
  %v373 = vpop.f32.mrf.mxu0
  %v374 = vadd.f32 0.0, %v373
  %v375 = vpop.f32.mrf.mxu0
  %376 = vmatprep.mubr.f32.mxu0 0.0
  %377 = vmatmul.mubr.f32.gmra.mxu0 %v163
  %v378 = vpop.f32.mrf.mxu0
  %v379 = vadd.f32 0.0, %v378
  %v380 = vpop.f32.mrf.mxu0
  %381 = vmatprep.mubr.f32.mxu0 0.0
  %382 = vmatmul.mubr.f32.gmra.mxu0 %v166
  %v383 = vpop.f32.mrf.mxu0
  %v384 = vadd.f32 0.0, %v383
  %v385 = vpop.f32.mrf.mxu0
  %386 = vmatprep.mubr.f32.mxu0 0.0
  %387 = vmatmul.mubr.f32.gmra.mxu0 %v169
  %v388 = vpop.f32.mrf.mxu0
  %v389 = vadd.f32 0.0, %v388
  %v390 = vpop.f32.mrf.mxu0
  %391 = vmatprep.mubr.f32.mxu0 0.0
  %392 = vmatmul.mubr.f32.gmra.mxu0 %v172
  %v393 = vpop.f32.mrf.mxu0
  %v394 = vadd.f32 0.0, %v393
  %v395 = vpop.f32.mrf.mxu0
  %396 = vmatprep.mubr.f32.mxu0 0.0
  %397 = vmatmul.mubr.f32.gmra.mxu0 %v175
  %v398 = vpop.f32.mrf.mxu0
  %v399 = vadd.f32 0.0, %v398
  %v400 = vpop.f32.mrf.mxu0
  %401 = vdwg.mxu0
  %402 = vst [vmem:[#allocation2] sm:$0xff] %v244
  %403 = vst [vmem:[#allocation2 + $0x8] sm:$0xff] %v249
  %404 = vst [vmem:[#allocation2 + $0x10] sm:$0xff] %v254
  %405 = vst [vmem:[#allocation2 + $0x18] sm:$0xff] %v259
  %406 = vst [vmem:[#allocation2 + $0x20] sm:$0xff] %v264
  %407 = vst [vmem:[#allocation2 + $0x28] sm:$0xff] %v269
  %408 = vst [vmem:[#allocation2 + $0x30] sm:$0xff] %v274
  %409 = vst [vmem:[#allocation2 + $0x38] sm:$0xff] %v279
  %410 = vst [vmem:[#allocation2 + $0x40] sm:$0xff] %v284
  %411 = vst [vmem:[#allocation2 + $0x48] sm:$0xff] %v289
  %412 = vst [vmem:[#allocation2 + $0x50] sm:$0xff] %v294
  %413 = vst [vmem:[#allocation2 + $0x58] sm:$0xff] %v299
  %414 = vst [vmem:[#allocation2 + $0x60] sm:$0xff] %v304
  %415 = vst [vmem:[#allocation2 + $0x68] sm:$0xff] %v309
  %416 = vst [vmem:[#allocation2 + $0x70] sm:$0xff] %v314
  %417 = vst [vmem:[#allocation2 + $0x78] sm:$0xff] %v319
  %418 = vst [vmem:[#allocation2 + $0x80] sm:$0xff] %v324
  %419 = vst [vmem:[#allocation2 + $0x88] sm:$0xff] %v329
  %420 = vst [vmem:[#allocation2 + $0x90] sm:$0xff] %v334
  %421 = vst [vmem:[#allocation2 + $0x98] sm:$0xff] %v339
  %422 = vst [vmem:[#allocation2 + $0xa0] sm:$0xff] %v344
  %423 = vst [vmem:[#allocation2 + $0xa8] sm:$0xff] %v349
  %424 = vst [vmem:[#allocation2 + $0xb0] sm:$0xff] %v354
  %425 = vst [vmem:[#allocation2 + $0xb8] sm:$0xff] %v359
  %426 = vst [vmem:[#allocation2 + $0xc0] sm:$0xff] %v364
  %427 = vst [vmem:[#allocation2 + $0xc8] sm:$0xff] %v369
  %428 = vst [vmem:[#allocation2 + $0xd0] sm:$0xff] %v374
  %429 = vst [vmem:[#allocation2 + $0xd8] sm:$0xff] %v379
  %430 = vst [vmem:[#allocation2 + $0xe0] sm:$0xff] %v384
  %431 = vst [vmem:[#allocation2 + $0xe8] sm:$0xff] %v389
  %432 = vst [vmem:[#allocation2 + $0xf0] sm:$0xff] %v394
  %433 = vst [vmem:[#allocation2 + $0xf8] sm:$0xff] %v399
  %434 = vst [vmem:[#allocation3] sm:$0xff] %v244
  %435 = vst [vmem:[#allocation3 + $0x8] sm:$0xff] %v249
  %436 = vst [vmem:[#allocation3 + $0x10] sm:$0xff] %v254
  %437 = vst [vmem:[#allocation3 + $0x18] sm:$0xff] %v259
  %438 = vst [vmem:[#allocation3 + $0x20] sm:$0xff] %v264
  %439 = vst [vmem:[#allocation3 + $0x28] sm:$0xff] %v269
  %440 = vst [vmem:[#allocation3 + $0x30] sm:$0xff] %v274
  %441 = vst [vmem:[#allocation3 + $0x38] sm:$0xff] %v279
  %442 = vst [vmem:[#allocation3 + $0x40] sm:$0xff] %v284
  %443 = vst [vmem:[#allocation3 + $0x48] sm:$0xff] %v289
  %444 = vst [vmem:[#allocation3 + $0x50] sm:$0xff] %v294
  %445 = vst [vmem:[#allocation3 + $0x58] sm:$0xff] %v299
  %446 = vst [vmem:[#allocation3 + $0x60] sm:$0xff] %v304
  %447 = vst [vmem:[#allocation3 + $0x68] sm:$0xff] %v309
  %448 = vst [vmem:[#allocation3 + $0x70] sm:$0xff] %v314
  %449 = vst [vmem:[#allocation3 + $0x78] sm:$0xff] %v319
  %450 = vst [vmem:[#allocation3 + $0x80] sm:$0xff] %v324
  %451 = vst [vmem:[#allocation3 + $0x88] sm:$0xff] %v329
  %452 = vst [vmem:[#allocation3 + $0x90] sm:$0xff] %v334
  %453 = vst [vmem:[#allocation3 + $0x98] sm:$0xff] %v339
  %454 = vst [vmem:[#allocation3 + $0xa0] sm:$0xff] %v344
  %455 = vst [vmem:[#allocation3 + $0xa8] sm:$0xff] %v349
  %456 = vst [vmem:[#allocation3 + $0xb0] sm:$0xff] %v354
  %457 = vst [vmem:[#allocation3 + $0xb8] sm:$0xff] %v359
  %458 = vst [vmem:[#allocation3 + $0xc0] sm:$0xff] %v364
  %459 = vst [vmem:[#allocation3 + $0xc8] sm:$0xff] %v369
  %460 = vst [vmem:[#allocation3 + $0xd0] sm:$0xff] %v374
  %461 = vst [vmem:[#allocation3 + $0xd8] sm:$0xff] %v379
  %462 = vst [vmem:[#allocation3 + $0xe0] sm:$0xff] %v384
  %463 = vst [vmem:[#allocation3 + $0xe8] sm:$0xff] %v389
  %464 = vst [vmem:[#allocation3 + $0xf0] sm:$0xff] %v394
  %465 = vst [vmem:[#allocation3 + $0xf8] sm:$0xff] %v399
  %v466 = vld [vmem:[%s0] sm:$0x1]
  %v467 = vld [vmem:[#allocation3] sm:$0xff]
  %v468 = vld [vmem:[#allocation3 + $0x8] sm:$0xff]
  %v469 = vld [vmem:[#allocation3 + $0x10] sm:$0xff]
  %v470 = vld [vmem:[#allocation3 + $0x18] sm:$0xff]
  %v471 = vld [vmem:[#allocation3 + $0x20] sm:$0xff]
  %v472 = vld [vmem:[#allocation3 + $0x28] sm:$0xff]
  %v473 = vld [vmem:[#allocation3 + $0x30] sm:$0xff]
  %v474 = vld [vmem:[#allocation3 + $0x38] sm:$0xff]
  %v475 = vld [vmem:[#allocation3 + $0x40] sm:$0xff]
  %v476 = vld [vmem:[#allocation3 + $0x48] sm:$0xff]
  %v477 = vld [vmem:[#allocation3 + $0x50] sm:$0xff]
  %v478 = vld [vmem:[#allocation3 + $0x58] sm:$0xff]
  %v479 = vld [vmem:[#allocation3 + $0x60] sm:$0xff]
  %v480 = vld [vmem:[#allocation3 + $0x68] sm:$0xff]
  %v481 = vld [vmem:[#allocation3 + $0x70] sm:$0xff]
  %v482 = vld [vmem:[#allocation3 + $0x78] sm:$0xff]
  %v483 = vld [vmem:[#allocation3 + $0x80] sm:$0xff]
  %v484 = vld [vmem:[#allocation3 + $0x88] sm:$0xff]
  %v485 = vld [vmem:[#allocation3 + $0x90] sm:$0xff]
  %v486 = vld [vmem:[#allocation3 + $0x98] sm:$0xff]
  %v487 = vld [vmem:[#allocation3 + $0xa0] sm:$0xff]
  %v488 = vld [vmem:[#allocation3 + $0xa8] sm:$0xff]
  %v489 = vld [vmem:[#allocation3 + $0xb0] sm:$0xff]
  %v490 = vld [vmem:[#allocation3 + $0xb8] sm:$0xff]
  %v491 = vld [vmem:[#allocation3 + $0xc0] sm:$0xff]
  %v492 = vld [vmem:[#allocation3 + $0xc8] sm:$0xff]
  %v493 = vld [vmem:[#allocation3 + $0xd0] sm:$0xff]
  %v494 = vld [vmem:[#allocation3 + $0xd8] sm:$0xff]
  %v495 = vld [vmem:[#allocation3 + $0xe0] sm:$0xff]
  %v496 = vld [vmem:[#allocation3 + $0xe8] sm:$0xff]
  %v497 = vld [vmem:[#allocation3 + $0xf0] sm:$0xff]
  %v498 = vld [vmem:[#allocation3 + $0xf8] sm:$0xff]
  %v500 = vlaneseq
  %v501 = vshrl.u32 %v500, 7
  %v502 = vsub.s32 0, %v501
  %v503 = vrot.slane %v466, %v502
  %v505 = vmul.f32 %v503, %v467
  %v506 = vmul.f32 %v503, %v468
  %v507 = vmul.f32 %v503, %v469
  %v508 = vmul.f32 %v503, %v470
  %v509 = vmul.f32 %v503, %v471
  %v510 = vmul.f32 %v503, %v472
  %v511 = vmul.f32 %v503, %v473
  %v512 = vmul.f32 %v503, %v474
  %v513 = vmul.f32 %v503, %v475
  %v514 = vmul.f32 %v503, %v476
  %v515 = vmul.f32 %v503, %v477
  %v516 = vmul.f32 %v503, %v478
  %v517 = vmul.f32 %v503, %v479
  %v518 = vmul.f32 %v503, %v480
  %v519 = vmul.f32 %v503, %v481
  %v520 = vmul.f32 %v503, %v482
  %v521 = vmul.f32 %v503, %v483
  %v522 = vmul.f32 %v503, %v484
  %v523 = vmul.f32 %v503, %v485
  %v524 = vmul.f32 %v503, %v486
  %v525 = vmul.f32 %v503, %v487
  %v526 = vmul.f32 %v503, %v488
  %v527 = vmul.f32 %v503, %v489
  %v528 = vmul.f32 %v503, %v490
  %v529 = vmul.f32 %v503, %v491
  %v530 = vmul.f32 %v503, %v492
  %v531 = vmul.f32 %v503, %v493
  %v532 = vmul.f32 %v503, %v494
  %v533 = vmul.f32 %v503, %v495
  %v534 = vmul.f32 %v503, %v496
  %v535 = vmul.f32 %v503, %v497
  %v536 = vmul.f32 %v503, %v498
  %v537 = vpack.c.bf16 %v506, %v505
  %v538 = vpack.c.bf16 %v508, %v507
  %v539 = vpack.c.bf16 %v510, %v509
  %v540 = vpack.c.bf16 %v512, %v511
  %v541 = vpack.c.bf16 %v514, %v513
  %v542 = vpack.c.bf16 %v516, %v515
  %v543 = vpack.c.bf16 %v518, %v517
  %v544 = vpack.c.bf16 %v520, %v519
  %v545 = vpack.c.bf16 %v522, %v521
  %v546 = vpack.c.bf16 %v524, %v523
  %v547 = vpack.c.bf16 %v526, %v525
  %v548 = vpack.c.bf16 %v528, %v527
  %v549 = vpack.c.bf16 %v530, %v529
  %v550 = vpack.c.bf16 %v532, %v531
  %v551 = vpack.c.bf16 %v534, %v533
  %v552 = vpack.c.bf16 %v536, %v535
  %v569 = vunpack.c.l.b16 %v537
  %v570 = vunpack.c.h.b16 %v537
  %v571 = vunpack.c.l.b16 %v538
  %v572 = vunpack.c.h.b16 %v538
  %v573 = vunpack.c.l.b16 %v539
  %v574 = vunpack.c.h.b16 %v539
  %v575 = vunpack.c.l.b16 %v540
  %v576 = vunpack.c.h.b16 %v540
  %v577 = vunpack.c.l.b16 %v541
  %v578 = vunpack.c.h.b16 %v541
  %v579 = vunpack.c.l.b16 %v542
  %v580 = vunpack.c.h.b16 %v542
  %v581 = vunpack.c.l.b16 %v543
  %v582 = vunpack.c.h.b16 %v543
  %v583 = vunpack.c.l.b16 %v544
  %v584 = vunpack.c.h.b16 %v544
  %v585 = vunpack.c.l.b16 %v545
  %v586 = vunpack.c.h.b16 %v545
  %v587 = vunpack.c.l.b16 %v546
  %v588 = vunpack.c.h.b16 %v546
  %v589 = vunpack.c.l.b16 %v547
  %v590 = vunpack.c.h.b16 %v547
  %v591 = vunpack.c.l.b16 %v548
  %v592 = vunpack.c.h.b16 %v548
  %v593 = vunpack.c.l.b16 %v549
  %v594 = vunpack.c.h.b16 %v549
  %v595 = vunpack.c.l.b16 %v550
  %v596 = vunpack.c.h.b16 %v550
  %v597 = vunpack.c.l.b16 %v551
  %v598 = vunpack.c.h.b16 %v551
  %v599 = vunpack.c.l.b16 %v552
  %v600 = vunpack.c.h.b16 %v552
  %v601 = vpack.c.b16 %v569, %v569
  %v602 = vpack.c.b16 %v570, %v570
  %v603 = vpack.c.b16 %v571, %v571
  %v604 = vpack.c.b16 %v572, %v572
  %v605 = vpack.c.b16 %v573, %v573
  %v606 = vpack.c.b16 %v574, %v574
  %v607 = vpack.c.b16 %v575, %v575
  %v608 = vpack.c.b16 %v576, %v576
  %v609 = vpack.c.b16 %v577, %v577
  %v610 = vpack.c.b16 %v578, %v578
  %v611 = vpack.c.b16 %v579, %v579
  %v612 = vpack.c.b16 %v580, %v580
  %v613 = vpack.c.b16 %v581, %v581
  %v614 = vpack.c.b16 %v582, %v582
  %v615 = vpack.c.b16 %v583, %v583
  %v616 = vpack.c.b16 %v584, %v584
  %v617 = vpack.c.b16 %v585, %v585
  %v618 = vpack.c.b16 %v586, %v586
  %v619 = vpack.c.b16 %v587, %v587
  %v620 = vpack.c.b16 %v588, %v588
  %v621 = vpack.c.b16 %v589, %v589
  %v622 = vpack.c.b16 %v590, %v590
  %v623 = vpack.c.b16 %v591, %v591
  %v624 = vpack.c.b16 %v592, %v592
  %v625 = vpack.c.b16 %v593, %v593
  %v626 = vpack.c.b16 %v594, %v594
  %v627 = vpack.c.b16 %v595, %v595
  %v628 = vpack.c.b16 %v596, %v596
  %v629 = vpack.c.b16 %v597, %v597
  %v630 = vpack.c.b16 %v598, %v598
  %v631 = vpack.c.b16 %v599, %v599
  %v632 = vpack.c.b16 %v600, %v600
  %665 = vst [vmem:[#allocation4] sm:$0xf] %v601
  %666 = vst [vmem:[#allocation4 + $0x4] sm:$0xf] %v602
  %667 = vst [vmem:[#allocation4 + $0x8] sm:$0xf] %v603
  %668 = vst [vmem:[#allocation4 + $0xc] sm:$0xf] %v604
  %669 = vst [vmem:[#allocation4 + $0x10] sm:$0xf] %v605
  %670 = vst [vmem:[#allocation4 + $0x14] sm:$0xf] %v606
  %671 = vst [vmem:[#allocation4 + $0x18] sm:$0xf] %v607
  %672 = vst [vmem:[#allocation4 + $0x1c] sm:$0xf] %v608
  %673 = vst [vmem:[#allocation4 + $0x20] sm:$0xf] %v609
  %674 = vst [vmem:[#allocation4 + $0x24] sm:$0xf] %v610
  %675 = vst [vmem:[#allocation4 + $0x28] sm:$0xf] %v611
  %676 = vst [vmem:[#allocation4 + $0x2c] sm:$0xf] %v612
  %677 = vst [vmem:[#allocation4 + $0x30] sm:$0xf] %v613
  %678 = vst [vmem:[#allocation4 + $0x34] sm:$0xf] %v614
  %679 = vst [vmem:[#allocation4 + $0x38] sm:$0xf] %v615
  %680 = vst [vmem:[#allocation4 + $0x3c] sm:$0xf] %v616
  %681 = vst [vmem:[#allocation4 + $0x40] sm:$0xf] %v617
  %682 = vst [vmem:[#allocation4 + $0x44] sm:$0xf] %v618
  %683 = vst [vmem:[#allocation4 + $0x48] sm:$0xf] %v619
  %684 = vst [vmem:[#allocation4 + $0x4c] sm:$0xf] %v620
  %685 = vst [vmem:[#allocation4 + $0x50] sm:$0xf] %v621
  %686 = vst [vmem:[#allocation4 + $0x54] sm:$0xf] %v622
  %687 = vst [vmem:[#allocation4 + $0x58] sm:$0xf] %v623
  %688 = vst [vmem:[#allocation4 + $0x5c] sm:$0xf] %v624
  %689 = vst [vmem:[#allocation4 + $0x60] sm:$0xf] %v625
  %690 = vst [vmem:[#allocation4 + $0x64] sm:$0xf] %v626
  %691 = vst [vmem:[#allocation4 + $0x68] sm:$0xf] %v627
  %692 = vst [vmem:[#allocation4 + $0x6c] sm:$0xf] %v628
  %693 = vst [vmem:[#allocation4 + $0x70] sm:$0xf] %v629
  %694 = vst [vmem:[#allocation4 + $0x74] sm:$0xf] %v630
  %695 = vst [vmem:[#allocation4 + $0x78] sm:$0xf] %v631
  %696 = vst [vmem:[#allocation4 + $0x7c] sm:$0xf] %v632
  %s697 = scalar_lea.vmem %s0, 1
  %v698 = vld [vmem:[%s697] sm:$0x1]
  %v699 = vld [vmem:[#allocation3] sm:$0xff]
  %v700 = vld [vmem:[#allocation3 + $0x8] sm:$0xff]
  %v701 = vld [vmem:[#allocation3 + $0x10] sm:$0xff]
  %v702 = vld [vmem:[#allocation3 + $0x18] sm:$0xff]
  %v703 = vld [vmem:[#allocation3 + $0x20] sm:$0xff]
  %v704 = vld [vmem:[#allocation3 + $0x28] sm:$0xff]
  %v705 = vld [vmem:[#allocation3 + $0x30] sm:$0xff]
  %v706 = vld [vmem:[#allocation3 + $0x38] sm:$0xff]
  %v707 = vld [vmem:[#allocation3 + $0x40] sm:$0xff]
  %v708 = vld [vmem:[#allocation3 + $0x48] sm:$0xff]
  %v709 = vld [vmem:[#allocation3 + $0x50] sm:$0xff]
  %v710 = vld [vmem:[#allocation3 + $0x58] sm:$0xff]
  %v711 = vld [vmem:[#allocation3 + $0x60] sm:$0xff]
  %v712 = vld [vmem:[#allocation3 + $0x68] sm:$0xff]
  %v713 = vld [vmem:[#allocation3 + $0x70] sm:$0xff]
  %v714 = vld [vmem:[#allocation3 + $0x78] sm:$0xff]
  %v715 = vld [vmem:[#allocation3 + $0x80] sm:$0xff]
  %v716 = vld [vmem:[#allocation3 + $0x88] sm:$0xff]
  %v717 = vld [vmem:[#allocation3 + $0x90] sm:$0xff]
  %v718 = vld [vmem:[#allocation3 + $0x98] sm:$0xff]
  %v719 = vld [vmem:[#allocation3 + $0xa0] sm:$0xff]
  %v720 = vld [vmem:[#allocation3 + $0xa8] sm:$0xff]
  %v721 = vld [vmem:[#allocation3 + $0xb0] sm:$0xff]
  %v722 = vld [vmem:[#allocation3 + $0xb8] sm:$0xff]
  %v723 = vld [vmem:[#allocation3 + $0xc0] sm:$0xff]
  %v724 = vld [vmem:[#allocation3 + $0xc8] sm:$0xff]
  %v725 = vld [vmem:[#allocation3 + $0xd0] sm:$0xff]
  %v726 = vld [vmem:[#allocation3 + $0xd8] sm:$0xff]
  %v727 = vld [vmem:[#allocation3 + $0xe0] sm:$0xff]
  %v728 = vld [vmem:[#allocation3 + $0xe8] sm:$0xff]
  %v729 = vld [vmem:[#allocation3 + $0xf0] sm:$0xff]
  %v730 = vld [vmem:[#allocation3 + $0xf8] sm:$0xff]
  %v732 = vlaneseq
  %v733 = vshrl.u32 %v732, 7
  %v734 = vsub.s32 0, %v733
  %v735 = vrot.slane %v698, %v734
  %v737 = vmul.f32 %v735, %v699
  %v738 = vmul.f32 %v735, %v700
  %v739 = vmul.f32 %v735, %v701
  %v740 = vmul.f32 %v735, %v702
  %v741 = vmul.f32 %v735, %v703
  %v742 = vmul.f32 %v735, %v704
  %v743 = vmul.f32 %v735, %v705
  %v744 = vmul.f32 %v735, %v706
  %v745 = vmul.f32 %v735, %v707
  %v746 = vmul.f32 %v735, %v708
  %v747 = vmul.f32 %v735, %v709
  %v748 = vmul.f32 %v735, %v710
  %v749 = vmul.f32 %v735, %v711
  %v750 = vmul.f32 %v735, %v712
  %v751 = vmul.f32 %v735, %v713
  %v752 = vmul.f32 %v735, %v714
  %v753 = vmul.f32 %v735, %v715
  %v754 = vmul.f32 %v735, %v716
  %v755 = vmul.f32 %v735, %v717
  %v756 = vmul.f32 %v735, %v718
  %v757 = vmul.f32 %v735, %v719
  %v758 = vmul.f32 %v735, %v720
  %v759 = vmul.f32 %v735, %v721
  %v760 = vmul.f32 %v735, %v722
  %v761 = vmul.f32 %v735, %v723
  %v762 = vmul.f32 %v735, %v724
  %v763 = vmul.f32 %v735, %v725
  %v764 = vmul.f32 %v735, %v726
  %v765 = vmul.f32 %v735, %v727
  %v766 = vmul.f32 %v735, %v728
  %v767 = vmul.f32 %v735, %v729
  %v768 = vmul.f32 %v735, %v730
  %v769 = vpack.c.bf16 %v738, %v737
  %v770 = vpack.c.bf16 %v740, %v739
  %v771 = vpack.c.bf16 %v742, %v741
  %v772 = vpack.c.bf16 %v744, %v743
  %v773 = vpack.c.bf16 %v746, %v745
  %v774 = vpack.c.bf16 %v748, %v747
  %v775 = vpack.c.bf16 %v750, %v749
  %v776 = vpack.c.bf16 %v752, %v751
  %v777 = vpack.c.bf16 %v754, %v753
  %v778 = vpack.c.bf16 %v756, %v755
  %v779 = vpack.c.bf16 %v758, %v757
  %v780 = vpack.c.bf16 %v760, %v759
  %v781 = vpack.c.bf16 %v762, %v761
  %v782 = vpack.c.bf16 %v764, %v763
  %v783 = vpack.c.bf16 %v766, %v765
  %v784 = vpack.c.bf16 %v768, %v767
  %v801 = vunpack.c.l.b16 %v769
  %v802 = vunpack.c.h.b16 %v769
  %v803 = vunpack.c.l.b16 %v770
  %v804 = vunpack.c.h.b16 %v770
  %v805 = vunpack.c.l.b16 %v771
  %v806 = vunpack.c.h.b16 %v771
  %v807 = vunpack.c.l.b16 %v772
  %v808 = vunpack.c.h.b16 %v772
  %v809 = vunpack.c.l.b16 %v773
  %v810 = vunpack.c.h.b16 %v773
  %v811 = vunpack.c.l.b16 %v774
  %v812 = vunpack.c.h.b16 %v774
  %v813 = vunpack.c.l.b16 %v775
  %v814 = vunpack.c.h.b16 %v775
  %v815 = vunpack.c.l.b16 %v776
  %v816 = vunpack.c.h.b16 %v776
  %v817 = vunpack.c.l.b16 %v777
  %v818 = vunpack.c.h.b16 %v777
  %v819 = vunpack.c.l.b16 %v778
  %v820 = vunpack.c.h.b16 %v778
  %v821 = vunpack.c.l.b16 %v779
  %v822 = vunpack.c.h.b16 %v779
  %v823 = vunpack.c.l.b16 %v780
  %v824 = vunpack.c.h.b16 %v780
  %v825 = vunpack.c.l.b16 %v781
  %v826 = vunpack.c.h.b16 %v781
  %v827 = vunpack.c.l.b16 %v782
  %v828 = vunpack.c.h.b16 %v782
  %v829 = vunpack.c.l.b16 %v783
  %v830 = vunpack.c.h.b16 %v783
  %v831 = vunpack.c.l.b16 %v784
  %v832 = vunpack.c.h.b16 %v784
  %v833 = vpack.c.b16 %v801, %v801
  %v834 = vpack.c.b16 %v802, %v802
  %v835 = vpack.c.b16 %v803, %v803
  %v836 = vpack.c.b16 %v804, %v804
  %v837 = vpack.c.b16 %v805, %v805
  %v838 = vpack.c.b16 %v806, %v806
  %v839 = vpack.c.b16 %v807, %v807
  %v840 = vpack.c.b16 %v808, %v808
  %v841 = vpack.c.b16 %v809, %v809
  %v842 = vpack.c.b16 %v810, %v810
  %v843 = vpack.c.b16 %v811, %v811
  %v844 = vpack.c.b16 %v812, %v812
  %v845 = vpack.c.b16 %v813, %v813
  %v846 = vpack.c.b16 %v814, %v814
  %v847 = vpack.c.b16 %v815, %v815
  %v848 = vpack.c.b16 %v816, %v816
  %v849 = vpack.c.b16 %v817, %v817
  %v850 = vpack.c.b16 %v818, %v818
  %v851 = vpack.c.b16 %v819, %v819
  %v852 = vpack.c.b16 %v820, %v820
  %v853 = vpack.c.b16 %v821, %v821
  %v854 = vpack.c.b16 %v822, %v822
  %v855 = vpack.c.b16 %v823, %v823
  %v856 = vpack.c.b16 %v824, %v824
  %v857 = vpack.c.b16 %v825, %v825
  %v858 = vpack.c.b16 %v826, %v826
  %v859 = vpack.c.b16 %v827, %v827
  %v860 = vpack.c.b16 %v828, %v828
  %v861 = vpack.c.b16 %v829, %v829
  %v862 = vpack.c.b16 %v830, %v830
  %v863 = vpack.c.b16 %v831, %v831
  %v864 = vpack.c.b16 %v832, %v832
  %897 = vst [vmem:[#allocation4 + $0x80] sm:$0xf] %v833
  %898 = vst [vmem:[#allocation4 + $0x84] sm:$0xf] %v834
  %899 = vst [vmem:[#allocation4 + $0x88] sm:$0xf] %v835
  %900 = vst [vmem:[#allocation4 + $0x8c] sm:$0xf] %v836
  %901 = vst [vmem:[#allocation4 + $0x90] sm:$0xf] %v837
  %902 = vst [vmem:[#allocation4 + $0x94] sm:$0xf] %v838
  %903 = vst [vmem:[#allocation4 + $0x98] sm:$0xf] %v839
  %904 = vst [vmem:[#allocation4 + $0x9c] sm:$0xf] %v840
  %905 = vst [vmem:[#allocation4 + $0xa0] sm:$0xf] %v841
  %906 = vst [vmem:[#allocation4 + $0xa4] sm:$0xf] %v842
  %907 = vst [vmem:[#allocation4 + $0xa8] sm:$0xf] %v843
  %908 = vst [vmem:[#allocation4 + $0xac] sm:$0xf] %v844
  %909 = vst [vmem:[#allocation4 + $0xb0] sm:$0xf] %v845
  %910 = vst [vmem:[#allocation4 + $0xb4] sm:$0xf] %v846
  %911 = vst [vmem:[#allocation4 + $0xb8] sm:$0xf] %v847
  %912 = vst [vmem:[#allocation4 + $0xbc] sm:$0xf] %v848
  %913 = vst [vmem:[#allocation4 + $0xc0] sm:$0xf] %v849
  %914 = vst [vmem:[#allocation4 + $0xc4] sm:$0xf] %v850
  %915 = vst [vmem:[#allocation4 + $0xc8] sm:$0xf] %v851
  %916 = vst [vmem:[#allocation4 + $0xcc] sm:$0xf] %v852
  %917 = vst [vmem:[#allocation4 + $0xd0] sm:$0xf] %v853
  %918 = vst [vmem:[#allocation4 + $0xd4] sm:$0xf] %v854
  %919 = vst [vmem:[#allocation4 + $0xd8] sm:$0xf] %v855
  %920 = vst [vmem:[#allocation4 + $0xdc] sm:$0xf] %v856
  %921 = vst [vmem:[#allocation4 + $0xe0] sm:$0xf] %v857
  %922 = vst [vmem:[#allocation4 + $0xe4] sm:$0xf] %v858
  %923 = vst [vmem:[#allocation4 + $0xe8] sm:$0xf] %v859
  %924 = vst [vmem:[#allocation4 + $0xec] sm:$0xf] %v860
  %925 = vst [vmem:[#allocation4 + $0xf0] sm:$0xf] %v861
  %926 = vst [vmem:[#allocation4 + $0xf4] sm:$0xf] %v862
  %927 = vst [vmem:[#allocation4 + $0xf8] sm:$0xf] %v863
  %928 = vst [vmem:[#allocation4 + $0xfc] sm:$0xf] %v864
  %s929 = scalar_lea.vmem %s0, 2
  %v930 = vld [vmem:[%s929] sm:$0x1]
  %v931 = vld [vmem:[#allocation3] sm:$0xff]
  %v932 = vld [vmem:[#allocation3 + $0x8] sm:$0xff]
  %v933 = vld [vmem:[#allocation3 + $0x10] sm:$0xff]
  %v934 = vld [vmem:[#allocation3 + $0x18] sm:$0xff]
  %v935 = vld [vmem:[#allocation3 + $0x20] sm:$0xff]
  %v936 = vld [vmem:[#allocation3 + $0x28] sm:$0xff]
  %v937 = vld [vmem:[#allocation3 + $0x30] sm:$0xff]
  %v938 = vld [vmem:[#allocation3 + $0x38] sm:$0xff]
  %v939 = vld [vmem:[#allocation3 + $0x40] sm:$0xff]
  %v940 = vld [vmem:[#allocation3 + $0x48] sm:$0xff]
  %v941 = vld [vmem:[#allocation3 + $0x50] sm:$0xff]
  %v942 = vld [vmem:[#allocation3 + $0x58] sm:$0xff]
  %v943 = vld [vmem:[#allocation3 + $0x60] sm:$0xff]
  %v944 = vld [vmem:[#allocation3 + $0x68] sm:$0xff]
  %v945 = vld [vmem:[#allocation3 + $0x70] sm:$0xff]
  %v946 = vld [vmem:[#allocation3 + $0x78] sm:$0xff]
  %v947 = vld [vmem:[#allocation3 + $0x80] sm:$0xff]
  %v948 = vld [vmem:[#allocation3 + $0x88] sm:$0xff]
  %v949 = vld [vmem:[#allocation3 + $0x90] sm:$0xff]
  %v950 = vld [vmem:[#allocation3 + $0x98] sm:$0xff]
  %v951 = vld [vmem:[#allocation3 + $0xa0] sm:$0xff]
  %v952 = vld [vmem:[#allocation3 + $0xa8] sm:$0xff]
  %v953 = vld [vmem:[#allocation3 + $0xb0] sm:$0xff]
  %v954 = vld [vmem:[#allocation3 + $0xb8] sm:$0xff]
  %v955 = vld [vmem:[#allocation3 + $0xc0] sm:$0xff]
  %v956 = vld [vmem:[#allocation3 + $0xc8] sm:$0xff]
  %v957 = vld [vmem:[#allocation3 + $0xd0] sm:$0xff]
  %v958 = vld [vmem:[#allocation3 + $0xd8] sm:$0xff]
  %v959 = vld [vmem:[#allocation3 + $0xe0] sm:$0xff]
  %v960 = vld [vmem:[#allocation3 + $0xe8] sm:$0xff]
  %v961 = vld [vmem:[#allocation3 + $0xf0] sm:$0xff]
  %v962 = vld [vmem:[#allocation3 + $0xf8] sm:$0xff]
  %v964 = vlaneseq
  %v965 = vshrl.u32 %v964, 7
  %v966 = vsub.s32 0, %v965
  %v967 = vrot.slane %v930, %v966
  %v969 = vmul.f32 %v967, %v931
  %v970 = vmul.f32 %v967, %v932
  %v971 = vmul.f32 %v967, %v933
  %v972 = vmul.f32 %v967, %v934
  %v973 = vmul.f32 %v967, %v935
  %v974 = vmul.f32 %v967, %v936
  %v975 = vmul.f32 %v967, %v937
  %v976 = vmul.f32 %v967, %v938
  %v977 = vmul.f32 %v967, %v939
  %v978 = vmul.f32 %v967, %v940
  %v979 = vmul.f32 %v967, %v941
  %v980 = vmul.f32 %v967, %v942
  %v981 = vmul.f32 %v967, %v943
  %v982 = vmul.f32 %v967, %v944
  %v983 = vmul.f32 %v967, %v945
  %v984 = vmul.f32 %v967, %v946
  %v985 = vmul.f32 %v967, %v947
  %v986 = vmul.f32 %v967, %v948
  %v987 = vmul.f32 %v967, %v949
  %v988 = vmul.f32 %v967, %v950
  %v989 = vmul.f32 %v967, %v951
  %v990 = vmul.f32 %v967, %v952
  %v991 = vmul.f32 %v967, %v953
  %v992 = vmul.f32 %v967, %v954
  %v993 = vmul.f32 %v967, %v955
  %v994 = vmul.f32 %v967, %v956
  %v995 = vmul.f32 %v967, %v957
  %v996 = vmul.f32 %v967, %v958
  %v997 = vmul.f32 %v967, %v959
  %v998 = vmul.f32 %v967, %v960
  %v999 = vmul.f32 %v967, %v961
  %v1000 = vmul.f32 %v967, %v962
  %v1001 = vpack.c.bf16 %v970, %v969
  %v1002 = vpack.c.bf16 %v972, %v971
  %v1003 = vpack.c.bf16 %v974, %v973
  %v1004 = vpack.c.bf16 %v976, %v975
  %v1005 = vpack.c.bf16 %v978, %v977
  %v1006 = vpack.c.bf16 %v980, %v979
  %v1007 = vpack.c.bf16 %v982, %v981
  %v1008 = vpack.c.bf16 %v984, %v983
  %v1009 = vpack.c.bf16 %v986, %v985
  %v1010 = vpack.c.bf16 %v988, %v987
  %v1011 = vpack.c.bf16 %v990, %v989
  %v1012 = vpack.c.bf16 %v992, %v991
  %v1013 = vpack.c.bf16 %v994, %v993
  %v1014 = vpack.c.bf16 %v996, %v995
  %v1015 = vpack.c.bf16 %v998, %v997
  %v1016 = vpack.c.bf16 %v1000, %v999
  %v1033 = vunpack.c.l.b16 %v1001
  %v1034 = vunpack.c.h.b16 %v1001
  %v1035 = vunpack.c.l.b16 %v1002
  %v1036 = vunpack.c.h.b16 %v1002
  %v1037 = vunpack.c.l.b16 %v1003
  %v1038 = vunpack.c.h.b16 %v1003
  %v1039 = vunpack.c.l.b16 %v1004
  %v1040 = vunpack.c.h.b16 %v1004
  %v1041 = vunpack.c.l.b16 %v1005
  %v1042 = vunpack.c.h.b16 %v1005
  %v1043 = vunpack.c.l.b16 %v1006
  %v1044 = vunpack.c.h.b16 %v1006
  %v1045 = vunpack.c.l.b16 %v1007
  %v1046 = vunpack.c.h.b16 %v1007
  %v1047 = vunpack.c.l.b16 %v1008
  %v1048 = vunpack.c.h.b16 %v1008
  %v1049 = vunpack.c.l.b16 %v1009
  %v1050 = vunpack.c.h.b16 %v1009
  %v1051 = vunpack.c.l.b16 %v1010
  %v1052 = vunpack.c.h.b16 %v1010
  %v1053 = vunpack.c.l.b16 %v1011
  %v1054 = vunpack.c.h.b16 %v1011
  %v1055 = vunpack.c.l.b16 %v1012
  %v1056 = vunpack.c.h.b16 %v1012
  %v1057 = vunpack.c.l.b16 %v1013
  %v1058 = vunpack.c.h.b16 %v1013
  %v1059 = vunpack.c.l.b16 %v1014
  %v1060 = vunpack.c.h.b16 %v1014
  %v1061 = vunpack.c.l.b16 %v1015
  %v1062 = vunpack.c.h.b16 %v1015
  %v1063 = vunpack.c.l.b16 %v1016
  %v1064 = vunpack.c.h.b16 %v1016
  %v1065 = vpack.c.b16 %v1033, %v1033
  %v1066 = vpack.c.b16 %v1034, %v1034
  %v1067 = vpack.c.b16 %v1035, %v1035
  %v1068 = vpack.c.b16 %v1036, %v1036
  %v1069 = vpack.c.b16 %v1037, %v1037
  %v1070 = vpack.c.b16 %v1038, %v1038
  %v1071 = vpack.c.b16 %v1039, %v1039
  %v1072 = vpack.c.b16 %v1040, %v1040
  %v1073 = vpack.c.b16 %v1041, %v1041
  %v1074 = vpack.c.b16 %v1042, %v1042
  %v1075 = vpack.c.b16 %v1043, %v1043
  %v1076 = vpack.c.b16 %v1044, %v1044
  %v1077 = vpack.c.b16 %v1045, %v1045
  %v1078 = vpack.c.b16 %v1046, %v1046
  %v1079 = vpack.c.b16 %v1047, %v1047
  %v1080 = vpack.c.b16 %v1048, %v1048
  %v1081 = vpack.c.b16 %v1049, %v1049
  %v1082 = vpack.c.b16 %v1050, %v1050
  %v1083 = vpack.c.b16 %v1051, %v1051
  %v1084 = vpack.c.b16 %v1052, %v1052
  %v1085 = vpack.c.b16 %v1053, %v1053
  %v1086 = vpack.c.b16 %v1054, %v1054
  %v1087 = vpack.c.b16 %v1055, %v1055
  %v1088 = vpack.c.b16 %v1056, %v1056
  %v1089 = vpack.c.b16 %v1057, %v1057
  %v1090 = vpack.c.b16 %v1058, %v1058
  %v1091 = vpack.c.b16 %v1059, %v1059
  %v1092 = vpack.c.b16 %v1060, %v1060
  %v1093 = vpack.c.b16 %v1061, %v1061
  %v1094 = vpack.c.b16 %v1062, %v1062
  %v1095 = vpack.c.b16 %v1063, %v1063
  %v1096 = vpack.c.b16 %v1064, %v1064
  %1129 = vst [vmem:[#allocation4 + $0x100] sm:$0xf] %v1065
  %1130 = vst [vmem:[#allocation4 + $0x104] sm:$0xf] %v1066
  %1131 = vst [vmem:[#allocation4 + $0x108] sm:$0xf] %v1067
  %1132 = vst [vmem:[#allocation4 + $0x10c] sm:$0xf] %v1068
  %1133 = vst [vmem:[#allocation4 + $0x110] sm:$0xf] %v1069
  %1134 = vst [vmem:[#allocation4 + $0x114] sm:$0xf] %v1070
  %1135 = vst [vmem:[#allocation4 + $0x118] sm:$0xf] %v1071
  %1136 = vst [vmem:[#allocation4 + $0x11c] sm:$0xf] %v1072
  %1137 = vst [vmem:[#allocation4 + $0x120] sm:$0xf] %v1073
  %1138 = vst [vmem:[#allocation4 + $0x124] sm:$0xf] %v1074
  %1139 = vst [vmem:[#allocation4 + $0x128] sm:$0xf] %v1075
  %1140 = vst [vmem:[#allocation4 + $0x12c] sm:$0xf] %v1076
  %1141 = vst [vmem:[#allocation4 + $0x130] sm:$0xf] %v1077
  %1142 = vst [vmem:[#allocation4 + $0x134] sm:$0xf] %v1078
  %1143 = vst [vmem:[#allocation4 + $0x138] sm:$0xf] %v1079
  %1144 = vst [vmem:[#allocation4 + $0x13c] sm:$0xf] %v1080
  %1145 = vst [vmem:[#allocation4 + $0x140] sm:$0xf] %v1081
  %1146 = vst [vmem:[#allocation4 + $0x144] sm:$0xf] %v1082
  %1147 = vst [vmem:[#allocation4 + $0x148] sm:$0xf] %v1083
  %1148 = vst [vmem:[#allocation4 + $0x14c] sm:$0xf] %v1084
  %1149 = vst [vmem:[#allocation4 + $0x150] sm:$0xf] %v1085
  %1150 = vst [vmem:[#allocation4 + $0x154] sm:$0xf] %v1086
  %1151 = vst [vmem:[#allocation4 + $0x158] sm:$0xf] %v1087
  %1152 = vst [vmem:[#allocation4 + $0x15c] sm:$0xf] %v1088
  %1153 = vst [vmem:[#allocation4 + $0x160] sm:$0xf] %v1089
  %1154 = vst [vmem:[#allocation4 + $0x164] sm:$0xf] %v1090
  %1155 = vst [vmem:[#allocation4 + $0x168] sm:$0xf] %v1091
  %1156 = vst [vmem:[#allocation4 + $0x16c] sm:$0xf] %v1092
  %1157 = vst [vmem:[#allocation4 + $0x170] sm:$0xf] %v1093
  %1158 = vst [vmem:[#allocation4 + $0x174] sm:$0xf] %v1094
  %1159 = vst [vmem:[#allocation4 + $0x178] sm:$0xf] %v1095
  %1160 = vst [vmem:[#allocation4 + $0x17c] sm:$0xf] %v1096
  %s1161 = smul.u32 4, 16
  %s1162 = smul.u32 %s1161, 6
  %s1163 = sshll.u32 %s1162, 4
  %1164 = dma.done [#allocation6], %s1163
  %v1165 = vld [vmem:[#allocation5] sm:$0xff]
  %v1166 = vld [vmem:[#allocation5 + $0x8] sm:$0xff]
  %v1167 = vld [vmem:[#allocation5 + $0x10] sm:$0xff]
  %v1168 = vld [vmem:[#allocation5 + $0x18] sm:$0xff]
  %v1169 = vld [vmem:[#allocation5 + $0x20] sm:$0xff]
  %v1170 = vld [vmem:[#allocation5 + $0x28] sm:$0xff]
  %v1171 = vld [vmem:[#allocation5 + $0x30] sm:$0xff]
  %v1172 = vld [vmem:[#allocation5 + $0x38] sm:$0xff]
  %v1173 = vld [vmem:[#allocation5 + $0x40] sm:$0xff]
  %v1174 = vld [vmem:[#allocation5 + $0x48] sm:$0xff]
  %v1175 = vld [vmem:[#allocation5 + $0x50] sm:$0xff]
  %v1176 = vld [vmem:[#allocation5 + $0x58] sm:$0xff]
  %v1177 = vld [vmem:[#allocation5 + $0x60] sm:$0xff]
  %v1178 = vld [vmem:[#allocation5 + $0x68] sm:$0xff]
  %v1179 = vld [vmem:[#allocation5 + $0x70] sm:$0xff]
  %v1180 = vld [vmem:[#allocation5 + $0x78] sm:$0xff]
  %v1181 = vld [vmem:[#allocation5 + $0x80] sm:$0xff]
  %v1182 = vld [vmem:[#allocation5 + $0x88] sm:$0xff]
  %v1183 = vld [vmem:[#allocation5 + $0x90] sm:$0xff]
  %v1184 = vld [vmem:[#allocation5 + $0x98] sm:$0xff]
  %v1185 = vld [vmem:[#allocation5 + $0xa0] sm:$0xff]
  %v1186 = vld [vmem:[#allocation5 + $0xa8] sm:$0xff]
  %v1187 = vld [vmem:[#allocation5 + $0xb0] sm:$0xff]
  %v1188 = vld [vmem:[#allocation5 + $0xb8] sm:$0xff]
  %v1189 = vld [vmem:[#allocation5 + $0xc0] sm:$0xff]
  %v1190 = vld [vmem:[#allocation5 + $0xc8] sm:$0xff]
  %v1191 = vld [vmem:[#allocation5 + $0xd0] sm:$0xff]
  %v1192 = vld [vmem:[#allocation5 + $0xd8] sm:$0xff]
  %v1193 = vld [vmem:[#allocation5 + $0xe0] sm:$0xff]
  %v1194 = vld [vmem:[#allocation5 + $0xe8] sm:$0xff]
  %v1195 = vld [vmem:[#allocation5 + $0xf0] sm:$0xff]
  %v1196 = vld [vmem:[#allocation5 + $0xf8] sm:$0xff]
  %v1197 = vld [vmem:[#allocation5 + $0x100] sm:$0xff]
  %v1198 = vld [vmem:[#allocation5 + $0x108] sm:$0xff]
  %v1199 = vld [vmem:[#allocation5 + $0x110] sm:$0xff]
  %v1200 = vld [vmem:[#allocation5 + $0x118] sm:$0xff]
  %v1201 = vld [vmem:[#allocation5 + $0x120] sm:$0xff]
  %v1202 = vld [vmem:[#allocation5 + $0x128] sm:$0xff]
  %v1203 = vld [vmem:[#allocation5 + $0x130] sm:$0xff]
  %v1204 = vld [vmem:[#allocation5 + $0x138] sm:$0xff]
  %v1205 = vld [vmem:[#allocation5 + $0x140] sm:$0xff]
  %v1206 = vld [vmem:[#allocation5 + $0x148] sm:$0xff]
  %v1207 = vld [vmem:[#allocation5 + $0x150] sm:$0xff]
  %v1208 = vld [vmem:[#allocation5 + $0x158] sm:$0xff]
  %v1209 = vld [vmem:[#allocation5 + $0x160] sm:$0xff]
  %v1210 = vld [vmem:[#allocation5 + $0x168] sm:$0xff]
  %v1211 = vld [vmem:[#allocation5 + $0x170] sm:$0xff]
  %v1212 = vld [vmem:[#allocation5 + $0x178] sm:$0xff]
  %v1213 = vld [vmem:[#allocation4] sm:$0xf]
  %v1214 = vld [vmem:[#allocation4 + $0x4] sm:$0xf]
  %v1215 = vld [vmem:[#allocation4 + $0x8] sm:$0xf]
  %v1216 = vld [vmem:[#allocation4 + $0xc] sm:$0xf]
  %v1217 = vld [vmem:[#allocation4 + $0x10] sm:$0xf]
  %v1218 = vld [vmem:[#allocation4 + $0x14] sm:$0xf]
  %v1219 = vld [vmem:[#allocation4 + $0x18] sm:$0xf]
  %v1220 = vld [vmem:[#allocation4 + $0x1c] sm:$0xf]
  %v1221 = vld [vmem:[#allocation4 + $0x20] sm:$0xf]
  %v1222 = vld [vmem:[#allocation4 + $0x24] sm:$0xf]
  %v1223 = vld [vmem:[#allocation4 + $0x28] sm:$0xf]
  %v1224 = vld [vmem:[#allocation4 + $0x2c] sm:$0xf]
  %v1225 = vld [vmem:[#allocation4 + $0x30] sm:$0xf]
  %v1226 = vld [vmem:[#allocation4 + $0x34] sm:$0xf]
  %v1227 = vld [vmem:[#allocation4 + $0x38] sm:$0xf]
  %v1228 = vld [vmem:[#allocation4 + $0x3c] sm:$0xf]
  %v1229 = vld [vmem:[#allocation4 + $0x40] sm:$0xf]
  %v1230 = vld [vmem:[#allocation4 + $0x44] sm:$0xf]
  %v1231 = vld [vmem:[#allocation4 + $0x48] sm:$0xf]
  %v1232 = vld [vmem:[#allocation4 + $0x4c] sm:$0xf]
  %v1233 = vld [vmem:[#allocation4 + $0x50] sm:$0xf]
  %v1234 = vld [vmem:[#allocation4 + $0x54] sm:$0xf]
  %v1235 = vld [vmem:[#allocation4 + $0x58] sm:$0xf]
  %v1236 = vld [vmem:[#allocation4 + $0x5c] sm:$0xf]
  %v1237 = vld [vmem:[#allocation4 + $0x60] sm:$0xf]
  %v1238 = vld [vmem:[#allocation4 + $0x64] sm:$0xf]
  %v1239 = vld [vmem:[#allocation4 + $0x68] sm:$0xf]
  %v1240 = vld [vmem:[#allocation4 + $0x6c] sm:$0xf]
  %v1241 = vld [vmem:[#allocation4 + $0x70] sm:$0xf]
  %v1242 = vld [vmem:[#allocation4 + $0x74] sm:$0xf]
  %v1243 = vld [vmem:[#allocation4 + $0x78] sm:$0xf]
  %v1244 = vld [vmem:[#allocation4 + $0x7c] sm:$0xf]
  %v1245 = vld [vmem:[#allocation4 + $0x80] sm:$0xf]
  %v1246 = vld [vmem:[#allocation4 + $0x84] sm:$0xf]
  %v1247 = vld [vmem:[#allocation4 + $0x88] sm:$0xf]
  %v1248 = vld [vmem:[#allocation4 + $0x8c] sm:$0xf]
  %v1249 = vld [vmem:[#allocation4 + $0x90] sm:$0xf]
  %v1250 = vld [vmem:[#allocation4 + $0x94] sm:$0xf]
  %v1251 = vld [vmem:[#allocation4 + $0x98] sm:$0xf]
  %v1252 = vld [vmem:[#allocation4 + $0x9c] sm:$0xf]
  %v1253 = vld [vmem:[#allocation4 + $0xa0] sm:$0xf]
  %v1254 = vld [vmem:[#allocation4 + $0xa4] sm:$0xf]
  %v1255 = vld [vmem:[#allocation4 + $0xa8] sm:$0xf]
  %v1256 = vld [vmem:[#allocation4 + $0xac] sm:$0xf]
  %v1257 = vld [vmem:[#allocation4 + $0xb0] sm:$0xf]
  %v1258 = vld [vmem:[#allocation4 + $0xb4] sm:$0xf]
  %v1259 = vld [vmem:[#allocation4 + $0xb8] sm:$0xf]
  %v1260 = vld [vmem:[#allocation4 + $0xbc] sm:$0xf]
  %v1261 = vld [vmem:[#allocation4 + $0xc0] sm:$0xf]
  %v1262 = vld [vmem:[#allocation4 + $0xc4] sm:$0xf]
  %v1263 = vld [vmem:[#allocation4 + $0xc8] sm:$0xf]
  %v1264 = vld [vmem:[#allocation4 + $0xcc] sm:$0xf]
  %v1265 = vld [vmem:[#allocation4 + $0xd0] sm:$0xf]
  %v1266 = vld [vmem:[#allocation4 + $0xd4] sm:$0xf]
  %v1267 = vld [vmem:[#allocation4 + $0xd8] sm:$0xf]
  %v1268 = vld [vmem:[#allocation4 + $0xdc] sm:$0xf]
  %v1269 = vld [vmem:[#allocation4 + $0xe0] sm:$0xf]
  %v1270 = vld [vmem:[#allocation4 + $0xe4] sm:$0xf]
  %v1271 = vld [vmem:[#allocation4 + $0xe8] sm:$0xf]
  %v1272 = vld [vmem:[#allocation4 + $0xec] sm:$0xf]
  %v1273 = vld [vmem:[#allocation4 + $0xf0] sm:$0xf]
  %v1274 = vld [vmem:[#allocation4 + $0xf4] sm:$0xf]
  %v1275 = vld [vmem:[#allocation4 + $0xf8] sm:$0xf]
  %v1276 = vld [vmem:[#allocation4 + $0xfc] sm:$0xf]
  %v1277 = vld [vmem:[#allocation4 + $0x100] sm:$0xf]
  %v1278 = vld [vmem:[#allocation4 + $0x104] sm:$0xf]
  %v1279 = vld [vmem:[#allocation4 + $0x108] sm:$0xf]
  %v1280 = vld [vmem:[#allocation4 + $0x10c] sm:$0xf]
  %v1281 = vld [vmem:[#allocation4 + $0x110] sm:$0xf]
  %v1282 = vld [vmem:[#allocation4 + $0x114] sm:$0xf]
  %v1283 = vld [vmem:[#allocation4 + $0x118] sm:$0xf]
  %v1284 = vld [vmem:[#allocation4 + $0x11c] sm:$0xf]
  %v1285 = vld [vmem:[#allocation4 + $0x120] sm:$0xf]
  %v1286 = vld [vmem:[#allocation4 + $0x124] sm:$0xf]
  %v1287 = vld [vmem:[#allocation4 + $0x128] sm:$0xf]
  %v1288 = vld [vmem:[#allocation4 + $0x12c] sm:$0xf]
  %v1289 = vld [vmem:[#allocation4 + $0x130] sm:$0xf]
  %v1290 = vld [vmem:[#allocation4 + $0x134] sm:$0xf]
  %v1291 = vld [vmem:[#allocation4 + $0x138] sm:$0xf]
  %v1292 = vld [vmem:[#allocation4 + $0x13c] sm:$0xf]
  %v1293 = vld [vmem:[#allocation4 + $0x140] sm:$0xf]
  %v1294 = vld [vmem:[#allocation4 + $0x144] sm:$0xf]
  %v1295 = vld [vmem:[#allocation4 + $0x148] sm:$0xf]
  %v1296 = vld [vmem:[#allocation4 + $0x14c] sm:$0xf]
  %v1297 = vld [vmem:[#allocation4 + $0x150] sm:$0xf]
  %v1298 = vld [vmem:[#allocation4 + $0x154] sm:$0xf]
  %v1299 = vld [vmem:[#allocation4 + $0x158] sm:$0xf]
  %v1300 = vld [vmem:[#allocation4 + $0x15c] sm:$0xf]
  %v1301 = vld [vmem:[#allocation4 + $0x160] sm:$0xf]
  %v1302 = vld [vmem:[#allocation4 + $0x164] sm:$0xf]
  %v1303 = vld [vmem:[#allocation4 + $0x168] sm:$0xf]
  %v1304 = vld [vmem:[#allocation4 + $0x16c] sm:$0xf]
  %v1305 = vld [vmem:[#allocation4 + $0x170] sm:$0xf]
  %v1306 = vld [vmem:[#allocation4 + $0x174] sm:$0xf]
  %v1307 = vld [vmem:[#allocation4 + $0x178] sm:$0xf]
  %v1308 = vld [vmem:[#allocation4 + $0x17c] sm:$0xf]
  %v1357 = vunpack.c.l.b16 %v1165
  %v1358 = vunpack.c.h.b16 %v1165
  %v1359 = vunpack.c.l.b16 %v1166
  %v1360 = vunpack.c.h.b16 %v1166
  %v1361 = vunpack.c.l.b16 %v1167
  %v1362 = vunpack.c.h.b16 %v1167
  %v1363 = vunpack.c.l.b16 %v1168
  %v1364 = vunpack.c.h.b16 %v1168
  %v1365 = vunpack.c.l.b16 %v1169
  %v1366 = vunpack.c.h.b16 %v1169
  %v1367 = vunpack.c.l.b16 %v1170
  %v1368 = vunpack.c.h.b16 %v1170
  %v1369 = vunpack.c.l.b16 %v1171
  %v1370 = vunpack.c.h.b16 %v1171
  %v1371 = vunpack.c.l.b16 %v1172
  %v1372 = vunpack.c.h.b16 %v1172
  %v1373 = vunpack.c.l.b16 %v1173
  %v1374 = vunpack.c.h.b16 %v1173
  %v1375 = vunpack.c.l.b16 %v1174
  %v1376 = vunpack.c.h.b16 %v1174
  %v1377 = vunpack.c.l.b16 %v1175
  %v1378 = vunpack.c.h.b16 %v1175
  %v1379 = vunpack.c.l.b16 %v1176
  %v1380 = vunpack.c.h.b16 %v1176
  %v1381 = vunpack.c.l.b16 %v1177
  %v1382 = vunpack.c.h.b16 %v1177
  %v1383 = vunpack.c.l.b16 %v1178
  %v1384 = vunpack.c.h.b16 %v1178
  %v1385 = vunpack.c.l.b16 %v1179
  %v1386 = vunpack.c.h.b16 %v1179
  %v1387 = vunpack.c.l.b16 %v1180
  %v1388 = vunpack.c.h.b16 %v1180
  %v1389 = vunpack.c.l.b16 %v1181
  %v1390 = vunpack.c.h.b16 %v1181
  %v1391 = vunpack.c.l.b16 %v1182
  %v1392 = vunpack.c.h.b16 %v1182
  %v1393 = vunpack.c.l.b16 %v1183
  %v1394 = vunpack.c.h.b16 %v1183
  %v1395 = vunpack.c.l.b16 %v1184
  %v1396 = vunpack.c.h.b16 %v1184
  %v1397 = vunpack.c.l.b16 %v1185
  %v1398 = vunpack.c.h.b16 %v1185
  %v1399 = vunpack.c.l.b16 %v1186
  %v1400 = vunpack.c.h.b16 %v1186
  %v1401 = vunpack.c.l.b16 %v1187
  %v1402 = vunpack.c.h.b16 %v1187
  %v1403 = vunpack.c.l.b16 %v1188
  %v1404 = vunpack.c.h.b16 %v1188
  %v1405 = vunpack.c.l.b16 %v1189
  %v1406 = vunpack.c.h.b16 %v1189
  %v1407 = vunpack.c.l.b16 %v1190
  %v1408 = vunpack.c.h.b16 %v1190
  %v1409 = vunpack.c.l.b16 %v1191
  %v1410 = vunpack.c.h.b16 %v1191
  %v1411 = vunpack.c.l.b16 %v1192
  %v1412 = vunpack.c.h.b16 %v1192
  %v1413 = vunpack.c.l.b16 %v1193
  %v1414 = vunpack.c.h.b16 %v1193
  %v1415 = vunpack.c.l.b16 %v1194
  %v1416 = vunpack.c.h.b16 %v1194
  %v1417 = vunpack.c.l.b16 %v1195
  %v1418 = vunpack.c.h.b16 %v1195
  %v1419 = vunpack.c.l.b16 %v1196
  %v1420 = vunpack.c.h.b16 %v1196
  %v1421 = vunpack.c.l.b16 %v1197
  %v1422 = vunpack.c.h.b16 %v1197
  %v1423 = vunpack.c.l.b16 %v1198
  %v1424 = vunpack.c.h.b16 %v1198
  %v1425 = vunpack.c.l.b16 %v1199
  %v1426 = vunpack.c.h.b16 %v1199
  %v1427 = vunpack.c.l.b16 %v1200
  %v1428 = vunpack.c.h.b16 %v1200
  %v1429 = vunpack.c.l.b16 %v1201
  %v1430 = vunpack.c.h.b16 %v1201
  %v1431 = vunpack.c.l.b16 %v1202
  %v1432 = vunpack.c.h.b16 %v1202
  %v1433 = vunpack.c.l.b16 %v1203
  %v1434 = vunpack.c.h.b16 %v1203
  %v1435 = vunpack.c.l.b16 %v1204
  %v1436 = vunpack.c.h.b16 %v1204
  %v1437 = vunpack.c.l.b16 %v1205
  %v1438 = vunpack.c.h.b16 %v1205
  %v1439 = vunpack.c.l.b16 %v1206
  %v1440 = vunpack.c.h.b16 %v1206
  %v1441 = vunpack.c.l.b16 %v1207
  %v1442 = vunpack.c.h.b16 %v1207
  %v1443 = vunpack.c.l.b16 %v1208
  %v1444 = vunpack.c.h.b16 %v1208
  %v1445 = vunpack.c.l.b16 %v1209
  %v1446 = vunpack.c.h.b16 %v1209
  %v1447 = vunpack.c.l.b16 %v1210
  %v1448 = vunpack.c.h.b16 %v1210
  %v1449 = vunpack.c.l.b16 %v1211
  %v1450 = vunpack.c.h.b16 %v1211
  %v1451 = vunpack.c.l.b16 %v1212
  %v1452 = vunpack.c.h.b16 %v1212
  %v1453 = vpack.c.b16 %v1363, %v1357
  %v1454 = vpack.c.b16 %v1364, %v1358
  %v1455 = vpack.c.b16 %v1365, %v1359
  %v1456 = vpack.c.b16 %v1366, %v1360
  %v1457 = vpack.c.b16 %v1367, %v1361
  %v1458 = vpack.c.b16 %v1368, %v1362
  %v1459 = vpack.c.b16 %v1375, %v1369
  %v1460 = vpack.c.b16 %v1376, %v1370
  %v1461 = vpack.c.b16 %v1377, %v1371
  %v1462 = vpack.c.b16 %v1378, %v1372
  %v1463 = vpack.c.b16 %v1379, %v1373
  %v1464 = vpack.c.b16 %v1380, %v1374
  %v1465 = vpack.c.b16 %v1387, %v1381
  %v1466 = vpack.c.b16 %v1388, %v1382
  %v1467 = vpack.c.b16 %v1389, %v1383
  %v1468 = vpack.c.b16 %v1390, %v1384
  %v1469 = vpack.c.b16 %v1391, %v1385
  %v1470 = vpack.c.b16 %v1392, %v1386
  %v1471 = vpack.c.b16 %v1399, %v1393
  %v1472 = vpack.c.b16 %v1400, %v1394
  %v1473 = vpack.c.b16 %v1401, %v1395
  %v1474 = vpack.c.b16 %v1402, %v1396
  %v1475 = vpack.c.b16 %v1403, %v1397
  %v1476 = vpack.c.b16 %v1404, %v1398
  %v1477 = vpack.c.b16 %v1411, %v1405
  %v1478 = vpack.c.b16 %v1412, %v1406
  %v1479 = vpack.c.b16 %v1413, %v1407
  %v1480 = vpack.c.b16 %v1414, %v1408
  %v1481 = vpack.c.b16 %v1415, %v1409
  %v1482 = vpack.c.b16 %v1416, %v1410
  %v1483 = vpack.c.b16 %v1423, %v1417
  %v1484 = vpack.c.b16 %v1424, %v1418
  %v1485 = vpack.c.b16 %v1425, %v1419
  %v1486 = vpack.c.b16 %v1426, %v1420
  %v1487 = vpack.c.b16 %v1427, %v1421
  %v1488 = vpack.c.b16 %v1428, %v1422
  %v1489 = vpack.c.b16 %v1435, %v1429
  %v1490 = vpack.c.b16 %v1436, %v1430
  %v1491 = vpack.c.b16 %v1437, %v1431
  %v1492 = vpack.c.b16 %v1438, %v1432
  %v1493 = vpack.c.b16 %v1439, %v1433
  %v1494 = vpack.c.b16 %v1440, %v1434
  %v1495 = vpack.c.b16 %v1447, %v1441
  %v1496 = vpack.c.b16 %v1448, %v1442
  %v1497 = vpack.c.b16 %v1449, %v1443
  %v1498 = vpack.c.b16 %v1450, %v1444
  %v1499 = vpack.c.b16 %v1451, %v1445
  %v1500 = vpack.c.b16 %v1452, %v1446
  %v1645 = vunpack.c.l.b16 %v1213
  %v1646 = vunpack.c.l.b16 %v1214
  %v1647 = vunpack.c.l.b16 %v1215
  %v1648 = vunpack.c.l.b16 %v1216
  %v1649 = vunpack.c.l.b16 %v1217
  %v1650 = vunpack.c.l.b16 %v1218
  %v1651 = vunpack.c.l.b16 %v1219
  %v1652 = vunpack.c.l.b16 %v1220
  %v1653 = vunpack.c.l.b16 %v1221
  %v1654 = vunpack.c.l.b16 %v1222
  %v1655 = vunpack.c.l.b16 %v1223
  %v1656 = vunpack.c.l.b16 %v1224
  %v1657 = vunpack.c.l.b16 %v1225
  %v1658 = vunpack.c.l.b16 %v1226
  %v1659 = vunpack.c.l.b16 %v1227
  %v1660 = vunpack.c.l.b16 %v1228
  %v1661 = vunpack.c.l.b16 %v1229
  %v1662 = vunpack.c.l.b16 %v1230
  %v1663 = vunpack.c.l.b16 %v1231
  %v1664 = vunpack.c.l.b16 %v1232
  %v1665 = vunpack.c.l.b16 %v1233
  %v1666 = vunpack.c.l.b16 %v1234
  %v1667 = vunpack.c.l.b16 %v1235
  %v1668 = vunpack.c.l.b16 %v1236
  %v1669 = vunpack.c.l.b16 %v1237
  %v1670 = vunpack.c.l.b16 %v1238
  %v1671 = vunpack.c.l.b16 %v1239
  %v1672 = vunpack.c.l.b16 %v1240
  %v1673 = vunpack.c.l.b16 %v1241
  %v1674 = vunpack.c.l.b16 %v1242
  %v1675 = vunpack.c.l.b16 %v1243
  %v1676 = vunpack.c.l.b16 %v1244
  %v1677 = vunpack.c.l.b16 %v1245
  %v1678 = vunpack.c.l.b16 %v1246
  %v1679 = vunpack.c.l.b16 %v1247
  %v1680 = vunpack.c.l.b16 %v1248
  %v1681 = vunpack.c.l.b16 %v1249
  %v1682 = vunpack.c.l.b16 %v1250
  %v1683 = vunpack.c.l.b16 %v1251
  %v1684 = vunpack.c.l.b16 %v1252
  %v1685 = vunpack.c.l.b16 %v1253
  %v1686 = vunpack.c.l.b16 %v1254
  %v1687 = vunpack.c.l.b16 %v1255
  %v1688 = vunpack.c.l.b16 %v1256
  %v1689 = vunpack.c.l.b16 %v1257
  %v1690 = vunpack.c.l.b16 %v1258
  %v1691 = vunpack.c.l.b16 %v1259
  %v1692 = vunpack.c.l.b16 %v1260
  %v1693 = vunpack.c.l.b16 %v1261
  %v1694 = vunpack.c.l.b16 %v1262
  %v1695 = vunpack.c.l.b16 %v1263
  %v1696 = vunpack.c.l.b16 %v1264
  %v1697 = vunpack.c.l.b16 %v1265
  %v1698 = vunpack.c.l.b16 %v1266
  %v1699 = vunpack.c.l.b16 %v1267
  %v1700 = vunpack.c.l.b16 %v1268
  %v1701 = vunpack.c.l.b16 %v1269
  %v1702 = vunpack.c.l.b16 %v1270
  %v1703 = vunpack.c.l.b16 %v1271
  %v1704 = vunpack.c.l.b16 %v1272
  %v1705 = vunpack.c.l.b16 %v1273
  %v1706 = vunpack.c.l.b16 %v1274
  %v1707 = vunpack.c.l.b16 %v1275
  %v1708 = vunpack.c.l.b16 %v1276
  %v1709 = vunpack.c.l.b16 %v1277
  %v1710 = vunpack.c.l.b16 %v1278
  %v1711 = vunpack.c.l.b16 %v1279
  %v1712 = vunpack.c.l.b16 %v1280
  %v1713 = vunpack.c.l.b16 %v1281
  %v1714 = vunpack.c.l.b16 %v1282
  %v1715 = vunpack.c.l.b16 %v1283
  %v1716 = vunpack.c.l.b16 %v1284
  %v1717 = vunpack.c.l.b16 %v1285
  %v1718 = vunpack.c.l.b16 %v1286
  %v1719 = vunpack.c.l.b16 %v1287
  %v1720 = vunpack.c.l.b16 %v1288
  %v1721 = vunpack.c.l.b16 %v1289
  %v1722 = vunpack.c.l.b16 %v1290
  %v1723 = vunpack.c.l.b16 %v1291
  %v1724 = vunpack.c.l.b16 %v1292
  %v1725 = vunpack.c.l.b16 %v1293
  %v1726 = vunpack.c.l.b16 %v1294
  %v1727 = vunpack.c.l.b16 %v1295
  %v1728 = vunpack.c.l.b16 %v1296
  %v1729 = vunpack.c.l.b16 %v1297
  %v1730 = vunpack.c.l.b16 %v1298
  %v1731 = vunpack.c.l.b16 %v1299
  %v1732 = vunpack.c.l.b16 %v1300
  %v1733 = vunpack.c.l.b16 %v1301
  %v1734 = vunpack.c.l.b16 %v1302
  %v1735 = vunpack.c.l.b16 %v1303
  %v1736 = vunpack.c.l.b16 %v1304
  %v1737 = vunpack.c.l.b16 %v1305
  %v1738 = vunpack.c.l.b16 %v1306
  %v1739 = vunpack.c.l.b16 %v1307
  %v1740 = vunpack.c.l.b16 %v1308
  %v1741 = vpack.c.b16 %v1646, %v1645
  %v1742 = vpack.c.b16 %v1648, %v1647
  %v1743 = vpack.c.b16 %v1650, %v1649
  %v1744 = vpack.c.b16 %v1652, %v1651
  %v1745 = vpack.c.b16 %v1654, %v1653
  %v1746 = vpack.c.b16 %v1656, %v1655
  %v1747 = vpack.c.b16 %v1658, %v1657
  %v1748 = vpack.c.b16 %v1660, %v1659
  %v1749 = vpack.c.b16 %v1662, %v1661
  %v1750 = vpack.c.b16 %v1664, %v1663
  %v1751 = vpack.c.b16 %v1666, %v1665
  %v1752 = vpack.c.b16 %v1668, %v1667
  %v1753 = vpack.c.b16 %v1670, %v1669
  %v1754 = vpack.c.b16 %v1672, %v1671
  %v1755 = vpack.c.b16 %v1674, %v1673
  %v1756 = vpack.c.b16 %v1676, %v1675
  %v1757 = vpack.c.b16 %v1678, %v1677
  %v1758 = vpack.c.b16 %v1680, %v1679
  %v1759 = vpack.c.b16 %v1682, %v1681
  %v1760 = vpack.c.b16 %v1684, %v1683
  %v1761 = vpack.c.b16 %v1686, %v1685
  %v1762 = vpack.c.b16 %v1688, %v1687
  %v1763 = vpack.c.b16 %v1690, %v1689
  %v1764 = vpack.c.b16 %v1692, %v1691
  %v1765 = vpack.c.b16 %v1694, %v1693
  %v1766 = vpack.c.b16 %v1696, %v1695
  %v1767 = vpack.c.b16 %v1698, %v1697
  %v1768 = vpack.c.b16 %v1700, %v1699
  %v1769 = vpack.c.b16 %v1702, %v1701
  %v1770 = vpack.c.b16 %v1704, %v1703
  %v1771 = vpack.c.b16 %v1706, %v1705
  %v1772 = vpack.c.b16 %v1708, %v1707
  %v1773 = vpack.c.b16 %v1710, %v1709
  %v1774 = vpack.c.b16 %v1712, %v1711
  %v1775 = vpack.c.b16 %v1714, %v1713
  %v1776 = vpack.c.b16 %v1716, %v1715
  %v1777 = vpack.c.b16 %v1718, %v1717
  %v1778 = vpack.c.b16 %v1720, %v1719
  %v1779 = vpack.c.b16 %v1722, %v1721
  %v1780 = vpack.c.b16 %v1724, %v1723
  %v1781 = vpack.c.b16 %v1726, %v1725
  %v1782 = vpack.c.b16 %v1728, %v1727
  %v1783 = vpack.c.b16 %v1730, %v1729
  %v1784 = vpack.c.b16 %v1732, %v1731
  %v1785 = vpack.c.b16 %v1734, %v1733
  %v1786 = vpack.c.b16 %v1736, %v1735
  %v1787 = vpack.c.b16 %v1738, %v1737
  %v1788 = vpack.c.b16 %v1740, %v1739
  %1837 = vmatprep.subr.bf16.mxu0 0
  %1838 = vmatpush1.bf16.msra.mxu0 %v1748
  %1839 = vmatprep.subr.bf16.mxu0 0
  %1840 = vmatpush1.bf16.msra.mxu0 %v1747
  %1841 = vmatprep.subr.bf16.mxu0 0
  %1842 = vmatpush1.bf16.msra.mxu0 %v1746
  %1843 = vmatprep.subr.bf16.mxu0 0
  %1844 = vmatpush1.bf16.msra.mxu0 %v1745
  %1845 = vmatprep.subr.bf16.mxu0 0
  %1846 = vmatpush1.bf16.msra.mxu0 %v1744
  %1847 = vmatprep.subr.bf16.mxu0 0
  %1848 = vmatpush1.bf16.msra.mxu0 %v1743
  %1849 = vmatprep.subr.bf16.mxu0 0
  %1850 = vmatpush1.bf16.msra.mxu0 %v1742
  %1851 = vmatprep.subr.bf16.mxu0 0
  %1852 = vmatpush1.bf16.msra.mxu0 %v1741
  %1853 = vmatprep.subr.bf16.mxu0 0
  %1854 = vmatpush2.bf16.msra.mxu0 %v1756
  %1855 = vmatprep.subr.bf16.mxu0 0
  %1856 = vmatpush2.bf16.msra.mxu0 %v1755
  %1857 = vmatprep.subr.bf16.mxu0 0
  %1858 = vmatpush2.bf16.msra.mxu0 %v1754
  %1859 = vmatprep.subr.bf16.mxu0 0
  %1860 = vmatpush2.bf16.msra.mxu0 %v1753
  %1861 = vmatprep.subr.bf16.mxu0 0
  %1862 = vmatpush2.bf16.msra.mxu0 %v1752
  %1863 = vmatprep.subr.bf16.mxu0 0
  %1864 = vmatpush2.bf16.msra.mxu0 %v1751
  %1865 = vmatprep.subr.bf16.mxu0 0
  %1866 = vmatpush2.bf16.msra.mxu0 %v1750
  %1867 = vmatprep.subr.bf16.mxu0 0
  %1868 = vmatpush2.bf16.msra.mxu0 %v1749
  %1869 = vmatprep.mubr.bf16.mxu0 %v1454
  %1870 = vmatmul.mubr.bf16.gmra.mxu0 %v1453
  %v1871 = vpop.f32.mrf.mxu0
  %v1872 = vadd.f32 0.0, %v1871
  %v1873 = vpop.f32.mrf.mxu0
  %v1874 = vpop.f32.mrf.mxu0
  %v1875 = vadd.f32 0.0, %v1874
  %v1876 = vpop.f32.mrf.mxu0
  %1877 = vmatprep.mubr.bf16.mxu0 %v1460
  %1878 = vmatmul.mubr.bf16.gmra.mxu0 %v1459
  %v1879 = vpop.f32.mrf.mxu0
  %v1880 = vadd.f32 0.0, %v1879
  %v1881 = vpop.f32.mrf.mxu0
  %v1882 = vpop.f32.mrf.mxu0
  %v1883 = vadd.f32 0.0, %v1882
  %v1884 = vpop.f32.mrf.mxu0
  %1885 = vmatprep.mubr.bf16.mxu0 %v1466
  %1886 = vmatmul.mubr.bf16.gmra.mxu0 %v1465
  %v1887 = vpop.f32.mrf.mxu0
  %v1888 = vadd.f32 0.0, %v1887
  %v1889 = vpop.f32.mrf.mxu0
  %v1890 = vpop.f32.mrf.mxu0
  %v1891 = vadd.f32 0.0, %v1890
  %v1892 = vpop.f32.mrf.mxu0
  %1893 = vmatprep.mubr.bf16.mxu0 %v1472
  %1894 = vmatmul.mubr.bf16.gmra.mxu0 %v1471
  %v1895 = vpop.f32.mrf.mxu0
  %v1896 = vadd.f32 0.0, %v1895
  %v1897 = vpop.f32.mrf.mxu0
  %v1898 = vpop.f32.mrf.mxu0
  %v1899 = vadd.f32 0.0, %v1898
  %v1900 = vpop.f32.mrf.mxu0
  %1901 = vmatprep.mubr.bf16.mxu0 %v1478
  %1902 = vmatmul.mubr.bf16.gmra.mxu0 %v1477
  %v1903 = vpop.f32.mrf.mxu0
  %v1904 = vadd.f32 0.0, %v1903
  %v1905 = vpop.f32.mrf.mxu0
  %v1906 = vpop.f32.mrf.mxu0
  %v1907 = vadd.f32 0.0, %v1906
  %v1908 = vpop.f32.mrf.mxu0
  %1909 = vmatprep.mubr.bf16.mxu0 %v1484
  %1910 = vmatmul.mubr.bf16.gmra.mxu0 %v1483
  %v1911 = vpop.f32.mrf.mxu0
  %v1912 = vadd.f32 0.0, %v1911
  %v1913 = vpop.f32.mrf.mxu0
  %v1914 = vpop.f32.mrf.mxu0
  %v1915 = vadd.f32 0.0, %v1914
  %v1916 = vpop.f32.mrf.mxu0
  %1917 = vmatprep.mubr.bf16.mxu0 %v1490
  %1918 = vmatmul.mubr.bf16.gmra.mxu0 %v1489
  %v1919 = vpop.f32.mrf.mxu0
  %v1920 = vadd.f32 0.0, %v1919
  %v1921 = vpop.f32.mrf.mxu0
  %v1922 = vpop.f32.mrf.mxu0
  %v1923 = vadd.f32 0.0, %v1922
  %v1924 = vpop.f32.mrf.mxu0
  %1925 = vmatprep.mubr.bf16.mxu0 %v1496
  %1926 = vmatmul.mubr.bf16.gmra.mxu0 %v1495
  %v1927 = vpop.f32.mrf.mxu0
  %v1928 = vadd.f32 0.0, %v1927
  %v1929 = vpop.f32.mrf.mxu0
  %v1930 = vpop.f32.mrf.mxu0
  %v1931 = vadd.f32 0.0, %v1930
  %v1932 = vpop.f32.mrf.mxu0
  %1933 = vdwg.mxu0
  %1934 = vmatprep.subr.bf16.mxu0 0
  %1935 = vmatpush1.bf16.msra.mxu0 %v1764
  %1936 = vmatprep.subr.bf16.mxu0 0
  %1937 = vmatpush1.bf16.msra.mxu0 %v1763
  %1938 = vmatprep.subr.bf16.mxu0 0
  %1939 = vmatpush1.bf16.msra.mxu0 %v1762
  %1940 = vmatprep.subr.bf16.mxu0 0
  %1941 = vmatpush1.bf16.msra.mxu0 %v1761
  %1942 = vmatprep.subr.bf16.mxu0 0
  %1943 = vmatpush1.bf16.msra.mxu0 %v1760
  %1944 = vmatprep.subr.bf16.mxu0 0
  %1945 = vmatpush1.bf16.msra.mxu0 %v1759
  %1946 = vmatprep.subr.bf16.mxu0 0
  %1947 = vmatpush1.bf16.msra.mxu0 %v1758
  %1948 = vmatprep.subr.bf16.mxu0 0
  %1949 = vmatpush1.bf16.msra.mxu0 %v1757
  %1950 = vmatprep.subr.bf16.mxu0 0
  %1951 = vmatpush2.bf16.msra.mxu0 %v1772
  %1952 = vmatprep.subr.bf16.mxu0 0
  %1953 = vmatpush2.bf16.msra.mxu0 %v1771
  %1954 = vmatprep.subr.bf16.mxu0 0
  %1955 = vmatpush2.bf16.msra.mxu0 %v1770
  %1956 = vmatprep.subr.bf16.mxu0 0
  %1957 = vmatpush2.bf16.msra.mxu0 %v1769
  %1958 = vmatprep.subr.bf16.mxu0 0
  %1959 = vmatpush2.bf16.msra.mxu0 %v1768
  %1960 = vmatprep.subr.bf16.mxu0 0
  %1961 = vmatpush2.bf16.msra.mxu0 %v1767
  %1962 = vmatprep.subr.bf16.mxu0 0
  %1963 = vmatpush2.bf16.msra.mxu0 %v1766
  %1964 = vmatprep.subr.bf16.mxu0 0
  %1965 = vmatpush2.bf16.msra.mxu0 %v1765
  %1966 = vmatprep.mubr.bf16.mxu0 %v1456
  %1967 = vmatmul.mubr.bf16.gmra.mxu0 %v1455
  %v1968 = vpop.f32.mrf.mxu0
  %v1969 = vadd.f32 %v1872, %v1968
  %v1970 = vpop.f32.mrf.mxu0
  %v1971 = vpop.f32.mrf.mxu0
  %v1972 = vadd.f32 %v1875, %v1971
  %v1973 = vpop.f32.mrf.mxu0
  %1974 = vmatprep.mubr.bf16.mxu0 %v1462
  %1975 = vmatmul.mubr.bf16.gmra.mxu0 %v1461
  %v1976 = vpop.f32.mrf.mxu0
  %v1977 = vadd.f32 %v1880, %v1976
  %v1978 = vpop.f32.mrf.mxu0
  %v1979 = vpop.f32.mrf.mxu0
  %v1980 = vadd.f32 %v1883, %v1979
  %v1981 = vpop.f32.mrf.mxu0
  %1982 = vmatprep.mubr.bf16.mxu0 %v1468
  %1983 = vmatmul.mubr.bf16.gmra.mxu0 %v1467
  %v1984 = vpop.f32.mrf.mxu0
  %v1985 = vadd.f32 %v1888, %v1984
  %v1986 = vpop.f32.mrf.mxu0
  %v1987 = vpop.f32.mrf.mxu0
  %v1988 = vadd.f32 %v1891, %v1987
  %v1989 = vpop.f32.mrf.mxu0
  %1990 = vmatprep.mubr.bf16.mxu0 %v1474
  %1991 = vmatmul.mubr.bf16.gmra.mxu0 %v1473
  %v1992 = vpop.f32.mrf.mxu0
  %v1993 = vadd.f32 %v1896, %v1992
  %v1994 = vpop.f32.mrf.mxu0
  %v1995 = vpop.f32.mrf.mxu0
  %v1996 = vadd.f32 %v1899, %v1995
  %v1997 = vpop.f32.mrf.mxu0
  %1998 = vmatprep.mubr.bf16.mxu0 %v1480
  %1999 = vmatmul.mubr.bf16.gmra.mxu0 %v1479
  %v2000 = vpop.f32.mrf.mxu0
  %v2001 = vadd.f32 %v1904, %v2000
  %v2002 = vpop.f32.mrf.mxu0
  %v2003 = vpop.f32.mrf.mxu0
  %v2004 = vadd.f32 %v1907, %v2003
  %v2005 = vpop.f32.mrf.mxu0
  %2006 = vmatprep.mubr.bf16.mxu0 %v1486
  %2007 = vmatmul.mubr.bf16.gmra.mxu0 %v1485
  %v2008 = vpop.f32.mrf.mxu0
  %v2009 = vadd.f32 %v1912, %v2008
  %v2010 = vpop.f32.mrf.mxu0
  %v2011 = vpop.f32.mrf.mxu0
  %v2012 = vadd.f32 %v1915, %v2011
  %v2013 = vpop.f32.mrf.mxu0
  %2014 = vmatprep.mubr.bf16.mxu0 %v1492
  %2015 = vmatmul.mubr.bf16.gmra.mxu0 %v1491
  %v2016 = vpop.f32.mrf.mxu0
  %v2017 = vadd.f32 %v1920, %v2016
  %v2018 = vpop.f32.mrf.mxu0
  %v2019 = vpop.f32.mrf.mxu0
  %v2020 = vadd.f32 %v1923, %v2019
  %v2021 = vpop.f32.mrf.mxu0
  %2022 = vmatprep.mubr.bf16.mxu0 %v1498
  %2023 = vmatmul.mubr.bf16.gmra.mxu0 %v1497
  %v2024 = vpop.f32.mrf.mxu0
  %v2025 = vadd.f32 %v1928, %v2024
  %v2026 = vpop.f32.mrf.mxu0
  %v2027 = vpop.f32.mrf.mxu0
  %v2028 = vadd.f32 %v1931, %v2027
  %v2029 = vpop.f32.mrf.mxu0
  %2030 = vdwg.mxu0
  %2031 = vmatprep.subr.bf16.mxu0 0
  %2032 = vmatpush1.bf16.msra.mxu0 %v1780
  %2033 = vmatprep.subr.bf16.mxu0 0
  %2034 = vmatpush1.bf16.msra.mxu0 %v1779
  %2035 = vmatprep.subr.bf16.mxu0 0
  %2036 = vmatpush1.bf16.msra.mxu0 %v1778
  %2037 = vmatprep.subr.bf16.mxu0 0
  %2038 = vmatpush1.bf16.msra.mxu0 %v1777
  %2039 = vmatprep.subr.bf16.mxu0 0
  %2040 = vmatpush1.bf16.msra.mxu0 %v1776
  %2041 = vmatprep.subr.bf16.mxu0 0
  %2042 = vmatpush1.bf16.msra.mxu0 %v1775
  %2043 = vmatprep.subr.bf16.mxu0 0
  %2044 = vmatpush1.bf16.msra.mxu0 %v1774
  %2045 = vmatprep.subr.bf16.mxu0 0
  %2046 = vmatpush1.bf16.msra.mxu0 %v1773
  %2047 = vmatprep.subr.bf16.mxu0 0
  %2048 = vmatpush2.bf16.msra.mxu0 %v1788
  %2049 = vmatprep.subr.bf16.mxu0 0
  %2050 = vmatpush2.bf16.msra.mxu0 %v1787
  %2051 = vmatprep.subr.bf16.mxu0 0
  %2052 = vmatpush2.bf16.msra.mxu0 %v1786
  %2053 = vmatprep.subr.bf16.mxu0 0
  %2054 = vmatpush2.bf16.msra.mxu0 %v1785
  %2055 = vmatprep.subr.bf16.mxu0 0
  %2056 = vmatpush2.bf16.msra.mxu0 %v1784
  %2057 = vmatprep.subr.bf16.mxu0 0
  %2058 = vmatpush2.bf16.msra.mxu0 %v1783
  %2059 = vmatprep.subr.bf16.mxu0 0
  %2060 = vmatpush2.bf16.msra.mxu0 %v1782
  %2061 = vmatprep.subr.bf16.mxu0 0
  %2062 = vmatpush2.bf16.msra.mxu0 %v1781
  %2063 = vmatprep.mubr.bf16.mxu0 %v1458
  %2064 = vmatmul.mubr.bf16.gmra.mxu0 %v1457
  %v2065 = vpop.f32.mrf.mxu0
  %v2066 = vadd.f32 %v1969, %v2065
  %v2067 = vpop.f32.mrf.mxu0
  %v2068 = vpop.f32.mrf.mxu0
  %v2069 = vadd.f32 %v1972, %v2068
  %v2070 = vpop.f32.mrf.mxu0
  %2071 = vmatprep.mubr.bf16.mxu0 %v1464
  %2072 = vmatmul.mubr.bf16.gmra.mxu0 %v1463
  %v2073 = vpop.f32.mrf.mxu0
  %v2074 = vadd.f32 %v1977, %v2073
  %v2075 = vpop.f32.mrf.mxu0
  %v2076 = vpop.f32.mrf.mxu0
  %v2077 = vadd.f32 %v1980, %v2076
  %v2078 = vpop.f32.mrf.mxu0
  %2079 = vmatprep.mubr.bf16.mxu0 %v1470
  %2080 = vmatmul.mubr.bf16.gmra.mxu0 %v1469
  %v2081 = vpop.f32.mrf.mxu0
  %v2082 = vadd.f32 %v1985, %v2081
  %v2083 = vpop.f32.mrf.mxu0
  %v2084 = vpop.f32.mrf.mxu0
  %v2085 = vadd.f32 %v1988, %v2084
  %v2086 = vpop.f32.mrf.mxu0
  %2087 = vmatprep.mubr.bf16.mxu0 %v1476
  %2088 = vmatmul.mubr.bf16.gmra.mxu0 %v1475
  %v2089 = vpop.f32.mrf.mxu0
  %v2090 = vadd.f32 %v1993, %v2089
  %v2091 = vpop.f32.mrf.mxu0
  %v2092 = vpop.f32.mrf.mxu0
  %v2093 = vadd.f32 %v1996, %v2092
  %v2094 = vpop.f32.mrf.mxu0
  %2095 = vmatprep.mubr.bf16.mxu0 %v1482
  %2096 = vmatmul.mubr.bf16.gmra.mxu0 %v1481
  %v2097 = vpop.f32.mrf.mxu0
  %v2098 = vadd.f32 %v2001, %v2097
  %v2099 = vpop.f32.mrf.mxu0
  %v2100 = vpop.f32.mrf.mxu0
  %v2101 = vadd.f32 %v2004, %v2100
  %v2102 = vpop.f32.mrf.mxu0
  %2103 = vmatprep.mubr.bf16.mxu0 %v1488
  %2104 = vmatmul.mubr.bf16.gmra.mxu0 %v1487
  %v2105 = vpop.f32.mrf.mxu0
  %v2106 = vadd.f32 %v2009, %v2105
  %v2107 = vpop.f32.mrf.mxu0
  %v2108 = vpop.f32.mrf.mxu0
  %v2109 = vadd.f32 %v2012, %v2108
  %v2110 = vpop.f32.mrf.mxu0
  %2111 = vmatprep.mubr.bf16.mxu0 %v1494
  %2112 = vmatmul.mubr.bf16.gmra.mxu0 %v1493
  %v2113 = vpop.f32.mrf.mxu0
  %v2114 = vadd.f32 %v2017, %v2113
  %v2115 = vpop.f32.mrf.mxu0
  %v2116 = vpop.f32.mrf.mxu0
  %v2117 = vadd.f32 %v2020, %v2116
  %v2118 = vpop.f32.mrf.mxu0
  %2119 = vmatprep.mubr.bf16.mxu0 %v1500
  %2120 = vmatmul.mubr.bf16.gmra.mxu0 %v1499
  %v2121 = vpop.f32.mrf.mxu0
  %v2122 = vadd.f32 %v2025, %v2121
  %v2123 = vpop.f32.mrf.mxu0
  %v2124 = vpop.f32.mrf.mxu0
  %v2125 = vadd.f32 %v2028, %v2124
  %v2126 = vpop.f32.mrf.mxu0
  %2127 = vdwg.mxu0
  %2128 = vst [vmem:[#allocation3] sm:$0xff] %v2066
  %2129 = vst [vmem:[#allocation3 + $0x8] sm:$0xff] %v2069
  %2130 = vst [vmem:[#allocation3 + $0x10] sm:$0xff] %v2074
  %2131 = vst [vmem:[#allocation3 + $0x18] sm:$0xff] %v2077
  %2132 = vst [vmem:[#allocation3 + $0x20] sm:$0xff] %v2082
  %2133 = vst [vmem:[#allocation3 + $0x28] sm:$0xff] %v2085
  %2134 = vst [vmem:[#allocation3 + $0x30] sm:$0xff] %v2090
  %2135 = vst [vmem:[#allocation3 + $0x38] sm:$0xff] %v2093
  %2136 = vst [vmem:[#allocation3 + $0x40] sm:$0xff] %v2098
  %2137 = vst [vmem:[#allocation3 + $0x48] sm:$0xff] %v2101
  %2138 = vst [vmem:[#allocation3 + $0x50] sm:$0xff] %v2106
  %2139 = vst [vmem:[#allocation3 + $0x58] sm:$0xff] %v2109
  %2140 = vst [vmem:[#allocation3 + $0x60] sm:$0xff] %v2114
  %2141 = vst [vmem:[#allocation3 + $0x68] sm:$0xff] %v2117
  %2142 = vst [vmem:[#allocation3 + $0x70] sm:$0xff] %v2122
  %2143 = vst [vmem:[#allocation3 + $0x78] sm:$0xff] %v2125
  %s2144 = sshll.u32 %s1162, 4
  %2145 = dma.done %s32, %s2144
  %v2146 = vld [vmem:[#allocation5 + $0x180] sm:$0xff]
  %v2147 = vld [vmem:[#allocation5 + $0x188] sm:$0xff]
  %v2148 = vld [vmem:[#allocation5 + $0x190] sm:$0xff]
  %v2149 = vld [vmem:[#allocation5 + $0x198] sm:$0xff]
  %v2150 = vld [vmem:[#allocation5 + $0x1a0] sm:$0xff]
  %v2151 = vld [vmem:[#allocation5 + $0x1a8] sm:$0xff]
  %v2152 = vld [vmem:[#allocation5 + $0x1b0] sm:$0xff]
  %v2153 = vld [vmem:[#allocation5 + $0x1b8] sm:$0xff]
  %v2154 = vld [vmem:[#allocation5 + $0x1c0] sm:$0xff]
  %v2155 = vld [vmem:[#allocation5 + $0x1c8] sm:$0xff]
  %v2156 = vld [vmem:[#allocation5 + $0x1d0] sm:$0xff]
  %v2157 = vld [vmem:[#allocation5 + $0x1d8] sm:$0xff]
  %v2158 = vld [vmem:[#allocation5 + $0x1e0] sm:$0xff]
  %v2159 = vld [vmem:[#allocation5 + $0x1e8] sm:$0xff]
  %v2160 = vld [vmem:[#allocation5 + $0x1f0] sm:$0xff]
  %v2161 = vld [vmem:[#allocation5 + $0x1f8] sm:$0xff]
  %v2162 = vld [vmem:[#allocation5 + $0x200] sm:$0xff]
  %v2163 = vld [vmem:[#allocation5 + $0x208] sm:$0xff]
  %v2164 = vld [vmem:[#allocation5 + $0x210] sm:$0xff]
  %v2165 = vld [vmem:[#allocation5 + $0x218] sm:$0xff]
  %v2166 = vld [vmem:[#allocation5 + $0x220] sm:$0xff]
  %v2167 = vld [vmem:[#allocation5 + $0x228] sm:$0xff]
  %v2168 = vld [vmem:[#allocation5 + $0x230] sm:$0xff]
  %v2169 = vld [vmem:[#allocation5 + $0x238] sm:$0xff]
  %v2170 = vld [vmem:[#allocation5 + $0x240] sm:$0xff]
  %v2171 = vld [vmem:[#allocation5 + $0x248] sm:$0xff]
  %v2172 = vld [vmem:[#allocation5 + $0x250] sm:$0xff]
  %v2173 = vld [vmem:[#allocation5 + $0x258] sm:$0xff]
  %v2174 = vld [vmem:[#allocation5 + $0x260] sm:$0xff]
  %v2175 = vld [vmem:[#allocation5 + $0x268] sm:$0xff]
  %v2176 = vld [vmem:[#allocation5 + $0x270] sm:$0xff]
  %v2177 = vld [vmem:[#allocation5 + $0x278] sm:$0xff]
  %v2178 = vld [vmem:[#allocation5 + $0x280] sm:$0xff]
  %v2179 = vld [vmem:[#allocation5 + $0x288] sm:$0xff]
  %v2180 = vld [vmem:[#allocation5 + $0x290] sm:$0xff]
  %v2181 = vld [vmem:[#allocation5 + $0x298] sm:$0xff]
  %v2182 = vld [vmem:[#allocation5 + $0x2a0] sm:$0xff]
  %v2183 = vld [vmem:[#allocation5 + $0x2a8] sm:$0xff]
  %v2184 = vld [vmem:[#allocation5 + $0x2b0] sm:$0xff]
  %v2185 = vld [vmem:[#allocation5 + $0x2b8] sm:$0xff]
  %v2186 = vld [vmem:[#allocation5 + $0x2c0] sm:$0xff]
  %v2187 = vld [vmem:[#allocation5 + $0x2c8] sm:$0xff]
  %v2188 = vld [vmem:[#allocation5 + $0x2d0] sm:$0xff]
  %v2189 = vld [vmem:[#allocation5 + $0x2d8] sm:$0xff]
  %v2190 = vld [vmem:[#allocation5 + $0x2e0] sm:$0xff]
  %v2191 = vld [vmem:[#allocation5 + $0x2e8] sm:$0xff]
  %v2192 = vld [vmem:[#allocation5 + $0x2f0] sm:$0xff]
  %v2193 = vld [vmem:[#allocation5 + $0x2f8] sm:$0xff]
  %v2194 = vld [vmem:[#allocation4] sm:$0xf]
  %v2195 = vld [vmem:[#allocation4 + $0x4] sm:$0xf]
  %v2196 = vld [vmem:[#allocation4 + $0x8] sm:$0xf]
  %v2197 = vld [vmem:[#allocation4 + $0xc] sm:$0xf]
  %v2198 = vld [vmem:[#allocation4 + $0x10] sm:$0xf]
  %v2199 = vld [vmem:[#allocation4 + $0x14] sm:$0xf]
  %v2200 = vld [vmem:[#allocation4 + $0x18] sm:$0xf]
  %v2201 = vld [vmem:[#allocation4 + $0x1c] sm:$0xf]
  %v2202 = vld [vmem:[#allocation4 + $0x20] sm:$0xf]
  %v2203 = vld [vmem:[#allocation4 + $0x24] sm:$0xf]
  %v2204 = vld [vmem:[#allocation4 + $0x28] sm:$0xf]
  %v2205 = vld [vmem:[#allocation4 + $0x2c] sm:$0xf]
  %v2206 = vld [vmem:[#allocation4 + $0x30] sm:$0xf]
  %v2207 = vld [vmem:[#allocation4 + $0x34] sm:$0xf]
  %v2208 = vld [vmem:[#allocation4 + $0x38] sm:$0xf]
  %v2209 = vld [vmem:[#allocation4 + $0x3c] sm:$0xf]
  %v2210 = vld [vmem:[#allocation4 + $0x40] sm:$0xf]
  %v2211 = vld [vmem:[#allocation4 + $0x44] sm:$0xf]
  %v2212 = vld [vmem:[#allocation4 + $0x48] sm:$0xf]
  %v2213 = vld [vmem:[#allocation4 + $0x4c] sm:$0xf]
  %v2214 = vld [vmem:[#allocation4 + $0x50] sm:$0xf]
  %v2215 = vld [vmem:[#allocation4 + $0x54] sm:$0xf]
  %v2216 = vld [vmem:[#allocation4 + $0x58] sm:$0xf]
  %v2217 = vld [vmem:[#allocation4 + $0x5c] sm:$0xf]
  %v2218 = vld [vmem:[#allocation4 + $0x60] sm:$0xf]
  %v2219 = vld [vmem:[#allocation4 + $0x64] sm:$0xf]
  %v2220 = vld [vmem:[#allocation4 + $0x68] sm:$0xf]
  %v2221 = vld [vmem:[#allocation4 + $0x6c] sm:$0xf]
  %v2222 = vld [vmem:[#allocation4 + $0x70] sm:$0xf]
  %v2223 = vld [vmem:[#allocation4 + $0x74] sm:$0xf]
  %v2224 = vld [vmem:[#allocation4 + $0x78] sm:$0xf]
  %v2225 = vld [vmem:[#allocation4 + $0x7c] sm:$0xf]
  %v2226 = vld [vmem:[#allocation4 + $0x80] sm:$0xf]
  %v2227 = vld [vmem:[#allocation4 + $0x84] sm:$0xf]
  %v2228 = vld [vmem:[#allocation4 + $0x88] sm:$0xf]
  %v2229 = vld [vmem:[#allocation4 + $0x8c] sm:$0xf]
  %v2230 = vld [vmem:[#allocation4 + $0x90] sm:$0xf]
  %v2231 = vld [vmem:[#allocation4 + $0x94] sm:$0xf]
  %v2232 = vld [vmem:[#allocation4 + $0x98] sm:$0xf]
  %v2233 = vld [vmem:[#allocation4 + $0x9c] sm:$0xf]
  %v2234 = vld [vmem:[#allocation4 + $0xa0] sm:$0xf]
  %v2235 = vld [vmem:[#allocation4 + $0xa4] sm:$0xf]
  %v2236 = vld [vmem:[#allocation4 + $0xa8] sm:$0xf]
  %v2237 = vld [vmem:[#allocation4 + $0xac] sm:$0xf]
  %v2238 = vld [vmem:[#allocation4 + $0xb0] sm:$0xf]
  %v2239 = vld [vmem:[#allocation4 + $0xb4] sm:$0xf]
  %v2240 = vld [vmem:[#allocation4 + $0xb8] sm:$0xf]
  %v2241 = vld [vmem:[#allocation4 + $0xbc] sm:$0xf]
  %v2242 = vld [vmem:[#allocation4 + $0xc0] sm:$0xf]
  %v2243 = vld [vmem:[#allocation4 + $0xc4] sm:$0xf]
  %v2244 = vld [vmem:[#allocation4 + $0xc8] sm:$0xf]
  %v2245 = vld [vmem:[#allocation4 + $0xcc] sm:$0xf]
  %v2246 = vld [vmem:[#allocation4 + $0xd0] sm:$0xf]
  %v2247 = vld [vmem:[#allocation4 + $0xd4] sm:$0xf]
  %v2248 = vld [vmem:[#allocation4 + $0xd8] sm:$0xf]
  %v2249 = vld [vmem:[#allocation4 + $0xdc] sm:$0xf]
  %v2250 = vld [vmem:[#allocation4 + $0xe0] sm:$0xf]
  %v2251 = vld [vmem:[#allocation4 + $0xe4] sm:$0xf]
  %v2252 = vld [vmem:[#allocation4 + $0xe8] sm:$0xf]
  %v2253 = vld [vmem:[#allocation4 + $0xec] sm:$0xf]
  %v2254 = vld [vmem:[#allocation4 + $0xf0] sm:$0xf]
  %v2255 = vld [vmem:[#allocation4 + $0xf4] sm:$0xf]
  %v2256 = vld [vmem:[#allocation4 + $0xf8] sm:$0xf]
  %v2257 = vld [vmem:[#allocation4 + $0xfc] sm:$0xf]
  %v2258 = vld [vmem:[#allocation4 + $0x100] sm:$0xf]
  %v2259 = vld [vmem:[#allocation4 + $0x104] sm:$0xf]
  %v2260 = vld [vmem:[#allocation4 + $0x108] sm:$0xf]
  %v2261 = vld [vmem:[#allocation4 + $0x10c] sm:$0xf]
  %v2262 = vld [vmem:[#allocation4 + $0x110] sm:$0xf]
  %v2263 = vld [vmem:[#allocation4 + $0x114] sm:$0xf]
  %v2264 = vld [vmem:[#allocation4 + $0x118] sm:$0xf]
  %v2265 = vld [vmem:[#allocation4 + $0x11c] sm:$0xf]
  %v2266 = vld [vmem:[#allocation4 + $0x120] sm:$0xf]
  %v2267 = vld [vmem:[#allocation4 + $0x124] sm:$0xf]
  %v2268 = vld [vmem:[#allocation4 + $0x128] sm:$0xf]
  %v2269 = vld [vmem:[#allocation4 + $0x12c] sm:$0xf]
  %v2270 = vld [vmem:[#allocation4 + $0x130] sm:$0xf]
  %v2271 = vld [vmem:[#allocation4 + $0x134] sm:$0xf]
  %v2272 = vld [vmem:[#allocation4 + $0x138] sm:$0xf]
  %v2273 = vld [vmem:[#allocation4 + $0x13c] sm:$0xf]
  %v2274 = vld [vmem:[#allocation4 + $0x140] sm:$0xf]
  %v2275 = vld [vmem:[#allocation4 + $0x144] sm:$0xf]
  %v2276 = vld [vmem:[#allocation4 + $0x148] sm:$0xf]
  %v2277 = vld [vmem:[#allocation4 + $0x14c] sm:$0xf]
  %v2278 = vld [vmem:[#allocation4 + $0x150] sm:$0xf]
  %v2279 = vld [vmem:[#allocation4 + $0x154] sm:$0xf]
  %v2280 = vld [vmem:[#allocation4 + $0x158] sm:$0xf]
  %v2281 = vld [vmem:[#allocation4 + $0x15c] sm:$0xf]
  %v2282 = vld [vmem:[#allocation4 + $0x160] sm:$0xf]
  %v2283 = vld [vmem:[#allocation4 + $0x164] sm:$0xf]
  %v2284 = vld [vmem:[#allocation4 + $0x168] sm:$0xf]
  %v2285 = vld [vmem:[#allocation4 + $0x16c] sm:$0xf]
  %v2286 = vld [vmem:[#allocation4 + $0x170] sm:$0xf]
  %v2287 = vld [vmem:[#allocation4 + $0x174] sm:$0xf]
  %v2288 = vld [vmem:[#allocation4 + $0x178] sm:$0xf]
  %v2289 = vld [vmem:[#allocation4 + $0x17c] sm:$0xf]
  %v2338 = vunpack.c.l.b16 %v2146
  %v2339 = vunpack.c.h.b16 %v2146
  %v2340 = vunpack.c.l.b16 %v2147
  %v2341 = vunpack.c.h.b16 %v2147
  %v2342 = vunpack.c.l.b16 %v2148
  %v2343 = vunpack.c.h.b16 %v2148
  %v2344 = vunpack.c.l.b16 %v2149
  %v2345 = vunpack.c.h.b16 %v2149
  %v2346 = vunpack.c.l.b16 %v2150
  %v2347 = vunpack.c.h.b16 %v2150
  %v2348 = vunpack.c.l.b16 %v2151
  %v2349 = vunpack.c.h.b16 %v2151
  %v2350 = vunpack.c.l.b16 %v2152
  %v2351 = vunpack.c.h.b16 %v2152
  %v2352 = vunpack.c.l.b16 %v2153
  %v2353 = vunpack.c.h.b16 %v2153
  %v2354 = vunpack.c.l.b16 %v2154
  %v2355 = vunpack.c.h.b16 %v2154
  %v2356 = vunpack.c.l.b16 %v2155
  %v2357 = vunpack.c.h.b16 %v2155
  %v2358 = vunpack.c.l.b16 %v2156
  %v2359 = vunpack.c.h.b16 %v2156
  %v2360 = vunpack.c.l.b16 %v2157
  %v2361 = vunpack.c.h.b16 %v2157
  %v2362 = vunpack.c.l.b16 %v2158
  %v2363 = vunpack.c.h.b16 %v2158
  %v2364 = vunpack.c.l.b16 %v2159
  %v2365 = vunpack.c.h.b16 %v2159
  %v2366 = vunpack.c.l.b16 %v2160
  %v2367 = vunpack.c.h.b16 %v2160
  %v2368 = vunpack.c.l.b16 %v2161
  %v2369 = vunpack.c.h.b16 %v2161
  %v2370 = vunpack.c.l.b16 %v2162
  %v2371 = vunpack.c.h.b16 %v2162
  %v2372 = vunpack.c.l.b16 %v2163
  %v2373 = vunpack.c.h.b16 %v2163
  %v2374 = vunpack.c.l.b16 %v2164
  %v2375 = vunpack.c.h.b16 %v2164
  %v2376 = vunpack.c.l.b16 %v2165
  %v2377 = vunpack.c.h.b16 %v2165
  %v2378 = vunpack.c.l.b16 %v2166
  %v2379 = vunpack.c.h.b16 %v2166
  %v2380 = vunpack.c.l.b16 %v2167
  %v2381 = vunpack.c.h.b16 %v2167
  %v2382 = vunpack.c.l.b16 %v2168
  %v2383 = vunpack.c.h.b16 %v2168
  %v2384 = vunpack.c.l.b16 %v2169
  %v2385 = vunpack.c.h.b16 %v2169
  %v2386 = vunpack.c.l.b16 %v2170
  %v2387 = vunpack.c.h.b16 %v2170
  %v2388 = vunpack.c.l.b16 %v2171
  %v2389 = vunpack.c.h.b16 %v2171
  %v2390 = vunpack.c.l.b16 %v2172
  %v2391 = vunpack.c.h.b16 %v2172
  %v2392 = vunpack.c.l.b16 %v2173
  %v2393 = vunpack.c.h.b16 %v2173
  %v2394 = vunpack.c.l.b16 %v2174
  %v2395 = vunpack.c.h.b16 %v2174
  %v2396 = vunpack.c.l.b16 %v2175
  %v2397 = vunpack.c.h.b16 %v2175
  %v2398 = vunpack.c.l.b16 %v2176
  %v2399 = vunpack.c.h.b16 %v2176
  %v2400 = vunpack.c.l.b16 %v2177
  %v2401 = vunpack.c.h.b16 %v2177
  %v2402 = vunpack.c.l.b16 %v2178
  %v2403 = vunpack.c.h.b16 %v2178
  %v2404 = vunpack.c.l.b16 %v2179
  %v2405 = vunpack.c.h.b16 %v2179
  %v2406 = vunpack.c.l.b16 %v2180
  %v2407 = vunpack.c.h.b16 %v2180
  %v2408 = vunpack.c.l.b16 %v2181
  %v2409 = vunpack.c.h.b16 %v2181
  %v2410 = vunpack.c.l.b16 %v2182
  %v2411 = vunpack.c.h.b16 %v2182
  %v2412 = vunpack.c.l.b16 %v2183
  %v2413 = vunpack.c.h.b16 %v2183
  %v2414 = vunpack.c.l.b16 %v2184
  %v2415 = vunpack.c.h.b16 %v2184
  %v2416 = vunpack.c.l.b16 %v2185
  %v2417 = vunpack.c.h.b16 %v2185
  %v2418 = vunpack.c.l.b16 %v2186
  %v2419 = vunpack.c.h.b16 %v2186
  %v2420 = vunpack.c.l.b16 %v2187
  %v2421 = vunpack.c.h.b16 %v2187
  %v2422 = vunpack.c.l.b16 %v2188
  %v2423 = vunpack.c.h.b16 %v2188
  %v2424 = vunpack.c.l.b16 %v2189
  %v2425 = vunpack.c.h.b16 %v2189
  %v2426 = vunpack.c.l.b16 %v2190
  %v2427 = vunpack.c.h.b16 %v2190
  %v2428 = vunpack.c.l.b16 %v2191
  %v2429 = vunpack.c.h.b16 %v2191
  %v2430 = vunpack.c.l.b16 %v2192
  %v2431 = vunpack.c.h.b16 %v2192
  %v2432 = vunpack.c.l.b16 %v2193
  %v2433 = vunpack.c.h.b16 %v2193
  %v2434 = vpack.c.b16 %v2344, %v2338
  %v2435 = vpack.c.b16 %v2345, %v2339
  %v2436 = vpack.c.b16 %v2346, %v2340
  %v2437 = vpack.c.b16 %v2347, %v2341
  %v2438 = vpack.c.b16 %v2348, %v2342
  %v2439 = vpack.c.b16 %v2349, %v2343
  %v2440 = vpack.c.b16 %v2356, %v2350
  %v2441 = vpack.c.b16 %v2357, %v2351
  %v2442 = vpack.c.b16 %v2358, %v2352
  %v2443 = vpack.c.b16 %v2359, %v2353
  %v2444 = vpack.c.b16 %v2360, %v2354
  %v2445 = vpack.c.b16 %v2361, %v2355
  %v2446 = vpack.c.b16 %v2368, %v2362
  %v2447 = vpack.c.b16 %v2369, %v2363
  %v2448 = vpack.c.b16 %v2370, %v2364
  %v2449 = vpack.c.b16 %v2371, %v2365
  %v2450 = vpack.c.b16 %v2372, %v2366
  %v2451 = vpack.c.b16 %v2373, %v2367
  %v2452 = vpack.c.b16 %v2380, %v2374
  %v2453 = vpack.c.b16 %v2381, %v2375
  %v2454 = vpack.c.b16 %v2382, %v2376
  %v2455 = vpack.c.b16 %v2383, %v2377
  %v2456 = vpack.c.b16 %v2384, %v2378
  %v2457 = vpack.c.b16 %v2385, %v2379
  %v2458 = vpack.c.b16 %v2392, %v2386
  %v2459 = vpack.c.b16 %v2393, %v2387
  %v2460 = vpack.c.b16 %v2394, %v2388
  %v2461 = vpack.c.b16 %v2395, %v2389
  %v2462 = vpack.c.b16 %v2396, %v2390
  %v2463 = vpack.c.b16 %v2397, %v2391
  %v2464 = vpack.c.b16 %v2404, %v2398
  %v2465 = vpack.c.b16 %v2405, %v2399
  %v2466 = vpack.c.b16 %v2406, %v2400
  %v2467 = vpack.c.b16 %v2407, %v2401
  %v2468 = vpack.c.b16 %v2408, %v2402
  %v2469 = vpack.c.b16 %v2409, %v2403
  %v2470 = vpack.c.b16 %v2416, %v2410
  %v2471 = vpack.c.b16 %v2417, %v2411
  %v2472 = vpack.c.b16 %v2418, %v2412
  %v2473 = vpack.c.b16 %v2419, %v2413
  %v2474 = vpack.c.b16 %v2420, %v2414
  %v2475 = vpack.c.b16 %v2421, %v2415
  %v2476 = vpack.c.b16 %v2428, %v2422
  %v2477 = vpack.c.b16 %v2429, %v2423
  %v2478 = vpack.c.b16 %v2430, %v2424
  %v2479 = vpack.c.b16 %v2431, %v2425
  %v2480 = vpack.c.b16 %v2432, %v2426
  %v2481 = vpack.c.b16 %v2433, %v2427
  %v2626 = vunpack.c.l.b16 %v2194
  %v2627 = vunpack.c.l.b16 %v2195
  %v2628 = vunpack.c.l.b16 %v2196
  %v2629 = vunpack.c.l.b16 %v2197
  %v2630 = vunpack.c.l.b16 %v2198
  %v2631 = vunpack.c.l.b16 %v2199
  %v2632 = vunpack.c.l.b16 %v2200
  %v2633 = vunpack.c.l.b16 %v2201
  %v2634 = vunpack.c.l.b16 %v2202
  %v2635 = vunpack.c.l.b16 %v2203
  %v2636 = vunpack.c.l.b16 %v2204
  %v2637 = vunpack.c.l.b16 %v2205
  %v2638 = vunpack.c.l.b16 %v2206
  %v2639 = vunpack.c.l.b16 %v2207
  %v2640 = vunpack.c.l.b16 %v2208
  %v2641 = vunpack.c.l.b16 %v2209
  %v2642 = vunpack.c.l.b16 %v2210
  %v2643 = vunpack.c.l.b16 %v2211
  %v2644 = vunpack.c.l.b16 %v2212
  %v2645 = vunpack.c.l.b16 %v2213
  %v2646 = vunpack.c.l.b16 %v2214
  %v2647 = vunpack.c.l.b16 %v2215
  %v2648 = vunpack.c.l.b16 %v2216
  %v2649 = vunpack.c.l.b16 %v2217
  %v2650 = vunpack.c.l.b16 %v2218
  %v2651 = vunpack.c.l.b16 %v2219
  %v2652 = vunpack.c.l.b16 %v2220
  %v2653 = vunpack.c.l.b16 %v2221
  %v2654 = vunpack.c.l.b16 %v2222
  %v2655 = vunpack.c.l.b16 %v2223
  %v2656 = vunpack.c.l.b16 %v2224
  %v2657 = vunpack.c.l.b16 %v2225
  %v2658 = vunpack.c.l.b16 %v2226
  %v2659 = vunpack.c.l.b16 %v2227
  %v2660 = vunpack.c.l.b16 %v2228
  %v2661 = vunpack.c.l.b16 %v2229
  %v2662 = vunpack.c.l.b16 %v2230
  %v2663 = vunpack.c.l.b16 %v2231
  %v2664 = vunpack.c.l.b16 %v2232
  %v2665 = vunpack.c.l.b16 %v2233
  %v2666 = vunpack.c.l.b16 %v2234
  %v2667 = vunpack.c.l.b16 %v2235
  %v2668 = vunpack.c.l.b16 %v2236
  %v2669 = vunpack.c.l.b16 %v2237
  %v2670 = vunpack.c.l.b16 %v2238
  %v2671 = vunpack.c.l.b16 %v2239
  %v2672 = vunpack.c.l.b16 %v2240
  %v2673 = vunpack.c.l.b16 %v2241
  %v2674 = vunpack.c.l.b16 %v2242
  %v2675 = vunpack.c.l.b16 %v2243
  %v2676 = vunpack.c.l.b16 %v2244
  %v2677 = vunpack.c.l.b16 %v2245
  %v2678 = vunpack.c.l.b16 %v2246
  %v2679 = vunpack.c.l.b16 %v2247
  %v2680 = vunpack.c.l.b16 %v2248
  %v2681 = vunpack.c.l.b16 %v2249
  %v2682 = vunpack.c.l.b16 %v2250
  %v2683 = vunpack.c.l.b16 %v2251
  %v2684 = vunpack.c.l.b16 %v2252
  %v2685 = vunpack.c.l.b16 %v2253
  %v2686 = vunpack.c.l.b16 %v2254
  %v2687 = vunpack.c.l.b16 %v2255
  %v2688 = vunpack.c.l.b16 %v2256
  %v2689 = vunpack.c.l.b16 %v2257
  %v2690 = vunpack.c.l.b16 %v2258
  %v2691 = vunpack.c.l.b16 %v2259
  %v2692 = vunpack.c.l.b16 %v2260
  %v2693 = vunpack.c.l.b16 %v2261
  %v2694 = vunpack.c.l.b16 %v2262
  %v2695 = vunpack.c.l.b16 %v2263
  %v2696 = vunpack.c.l.b16 %v2264
  %v2697 = vunpack.c.l.b16 %v2265
  %v2698 = vunpack.c.l.b16 %v2266
  %v2699 = vunpack.c.l.b16 %v2267
  %v2700 = vunpack.c.l.b16 %v2268
  %v2701 = vunpack.c.l.b16 %v2269
  %v2702 = vunpack.c.l.b16 %v2270
  %v2703 = vunpack.c.l.b16 %v2271
  %v2704 = vunpack.c.l.b16 %v2272
  %v2705 = vunpack.c.l.b16 %v2273
  %v2706 = vunpack.c.l.b16 %v2274
  %v2707 = vunpack.c.l.b16 %v2275
  %v2708 = vunpack.c.l.b16 %v2276
  %v2709 = vunpack.c.l.b16 %v2277
  %v2710 = vunpack.c.l.b16 %v2278
  %v2711 = vunpack.c.l.b16 %v2279
  %v2712 = vunpack.c.l.b16 %v2280
  %v2713 = vunpack.c.l.b16 %v2281
  %v2714 = vunpack.c.l.b16 %v2282
  %v2715 = vunpack.c.l.b16 %v2283
  %v2716 = vunpack.c.l.b16 %v2284
  %v2717 = vunpack.c.l.b16 %v2285
  %v2718 = vunpack.c.l.b16 %v2286
  %v2719 = vunpack.c.l.b16 %v2287
  %v2720 = vunpack.c.l.b16 %v2288
  %v2721 = vunpack.c.l.b16 %v2289
  %v2722 = vpack.c.b16 %v2627, %v2626
  %v2723 = vpack.c.b16 %v2629, %v2628
  %v2724 = vpack.c.b16 %v2631, %v2630
  %v2725 = vpack.c.b16 %v2633, %v2632
  %v2726 = vpack.c.b16 %v2635, %v2634
  %v2727 = vpack.c.b16 %v2637, %v2636
  %v2728 = vpack.c.b16 %v2639, %v2638
  %v2729 = vpack.c.b16 %v2641, %v2640
  %v2730 = vpack.c.b16 %v2643, %v2642
  %v2731 = vpack.c.b16 %v2645, %v2644
  %v2732 = vpack.c.b16 %v2647, %v2646
  %v2733 = vpack.c.b16 %v2649, %v2648
  %v2734 = vpack.c.b16 %v2651, %v2650
  %v2735 = vpack.c.b16 %v2653, %v2652
  %v2736 = vpack.c.b16 %v2655, %v2654
  %v2737 = vpack.c.b16 %v2657, %v2656
  %v2738 = vpack.c.b16 %v2659, %v2658
  %v2739 = vpack.c.b16 %v2661, %v2660
  %v2740 = vpack.c.b16 %v2663, %v2662
  %v2741 = vpack.c.b16 %v2665, %v2664
  %v2742 = vpack.c.b16 %v2667, %v2666
  %v2743 = vpack.c.b16 %v2669, %v2668
  %v2744 = vpack.c.b16 %v2671, %v2670
  %v2745 = vpack.c.b16 %v2673, %v2672
  %v2746 = vpack.c.b16 %v2675, %v2674
  %v2747 = vpack.c.b16 %v2677, %v2676
  %v2748 = vpack.c.b16 %v2679, %v2678
  %v2749 = vpack.c.b16 %v2681, %v2680
  %v2750 = vpack.c.b16 %v2683, %v2682
  %v2751 = vpack.c.b16 %v2685, %v2684
  %v2752 = vpack.c.b16 %v2687, %v2686
  %v2753 = vpack.c.b16 %v2689, %v2688
  %v2754 = vpack.c.b16 %v2691, %v2690
  %v2755 = vpack.c.b16 %v2693, %v2692
  %v2756 = vpack.c.b16 %v2695, %v2694
  %v2757 = vpack.c.b16 %v2697, %v2696
  %v2758 = vpack.c.b16 %v2699, %v2698
  %v2759 = vpack.c.b16 %v2701, %v2700
  %v2760 = vpack.c.b16 %v2703, %v2702
  %v2761 = vpack.c.b16 %v2705, %v2704
  %v2762 = vpack.c.b16 %v2707, %v2706
  %v2763 = vpack.c.b16 %v2709, %v2708
  %v2764 = vpack.c.b16 %v2711, %v2710
  %v2765 = vpack.c.b16 %v2713, %v2712
  %v2766 = vpack.c.b16 %v2715, %v2714
  %v2767 = vpack.c.b16 %v2717, %v2716
  %v2768 = vpack.c.b16 %v2719, %v2718
  %v2769 = vpack.c.b16 %v2721, %v2720
  %2818 = vmatprep.subr.bf16.mxu0 0
  %2819 = vmatpush1.bf16.msra.mxu0 %v2729
  %2820 = vmatprep.subr.bf16.mxu0 0
  %2821 = vmatpush1.bf16.msra.mxu0 %v2728
  %2822 = vmatprep.subr.bf16.mxu0 0
  %2823 = vmatpush1.bf16.msra.mxu0 %v2727
  %2824 = vmatprep.subr.bf16.mxu0 0
  %2825 = vmatpush1.bf16.msra.mxu0 %v2726
  %2826 = vmatprep.subr.bf16.mxu0 0
  %2827 = vmatpush1.bf16.msra.mxu0 %v2725
  %2828 = vmatprep.subr.bf16.mxu0 0
  %2829 = vmatpush1.bf16.msra.mxu0 %v2724
  %2830 = vmatprep.subr.bf16.mxu0 0
  %2831 = vmatpush1.bf16.msra.mxu0 %v2723
  %2832 = vmatprep.subr.bf16.mxu0 0
  %2833 = vmatpush1.bf16.msra.mxu0 %v2722
  %2834 = vmatprep.subr.bf16.mxu0 0
  %2835 = vmatpush2.bf16.msra.mxu0 %v2737
  %2836 = vmatprep.subr.bf16.mxu0 0
  %2837 = vmatpush2.bf16.msra.mxu0 %v2736
  %2838 = vmatprep.subr.bf16.mxu0 0
  %2839 = vmatpush2.bf16.msra.mxu0 %v2735
  %2840 = vmatprep.subr.bf16.mxu0 0
  %2841 = vmatpush2.bf16.msra.mxu0 %v2734
  %2842 = vmatprep.subr.bf16.mxu0 0
  %2843 = vmatpush2.bf16.msra.mxu0 %v2733
  %2844 = vmatprep.subr.bf16.mxu0 0
  %2845 = vmatpush2.bf16.msra.mxu0 %v2732
  %2846 = vmatprep.subr.bf16.mxu0 0
  %2847 = vmatpush2.bf16.msra.mxu0 %v2731
  %2848 = vmatprep.subr.bf16.mxu0 0
  %2849 = vmatpush2.bf16.msra.mxu0 %v2730
  %2850 = vmatprep.mubr.bf16.mxu0 %v2435
  %2851 = vmatmul.mubr.bf16.gmra.mxu0 %v2434
  %v2852 = vpop.f32.mrf.mxu0
  %v2853 = vadd.f32 0.0, %v2852
  %v2854 = vpop.f32.mrf.mxu0
  %v2855 = vpop.f32.mrf.mxu0
  %v2856 = vadd.f32 0.0, %v2855
  %v2857 = vpop.f32.mrf.mxu0
  %2858 = vmatprep.mubr.bf16.mxu0 %v2441
  %2859 = vmatmul.mubr.bf16.gmra.mxu0 %v2440
  %v2860 = vpop.f32.mrf.mxu0
  %v2861 = vadd.f32 0.0, %v2860
  %v2862 = vpop.f32.mrf.mxu0
  %v2863 = vpop.f32.mrf.mxu0
  %v2864 = vadd.f32 0.0, %v2863
  %v2865 = vpop.f32.mrf.mxu0
  %2866 = vmatprep.mubr.bf16.mxu0 %v2447
  %2867 = vmatmul.mubr.bf16.gmra.mxu0 %v2446
  %v2868 = vpop.f32.mrf.mxu0
  %v2869 = vadd.f32 0.0, %v2868
  %v2870 = vpop.f32.mrf.mxu0
  %v2871 = vpop.f32.mrf.mxu0
  %v2872 = vadd.f32 0.0, %v2871
  %v2873 = vpop.f32.mrf.mxu0
  %2874 = vmatprep.mubr.bf16.mxu0 %v2453
  %2875 = vmatmul.mubr.bf16.gmra.mxu0 %v2452
  %v2876 = vpop.f32.mrf.mxu0
  %v2877 = vadd.f32 0.0, %v2876
  %v2878 = vpop.f32.mrf.mxu0
  %v2879 = vpop.f32.mrf.mxu0
  %v2880 = vadd.f32 0.0, %v2879
  %v2881 = vpop.f32.mrf.mxu0
  %2882 = vmatprep.mubr.bf16.mxu0 %v2459
  %2883 = vmatmul.mubr.bf16.gmra.mxu0 %v2458
  %v2884 = vpop.f32.mrf.mxu0
  %v2885 = vadd.f32 0.0, %v2884
  %v2886 = vpop.f32.mrf.mxu0
  %v2887 = vpop.f32.mrf.mxu0
  %v2888 = vadd.f32 0.0, %v2887
  %v2889 = vpop.f32.mrf.mxu0
  %2890 = vmatprep.mubr.bf16.mxu0 %v2465
  %2891 = vmatmul.mubr.bf16.gmra.mxu0 %v2464
  %v2892 = vpop.f32.mrf.mxu0
  %v2893 = vadd.f32 0.0, %v2892
  %v2894 = vpop.f32.mrf.mxu0
  %v2895 = vpop.f32.mrf.mxu0
  %v2896 = vadd.f32 0.0, %v2895
  %v2897 = vpop.f32.mrf.mxu0
  %2898 = vmatprep.mubr.bf16.mxu0 %v2471
  %2899 = vmatmul.mubr.bf16.gmra.mxu0 %v2470
  %v2900 = vpop.f32.mrf.mxu0
  %v2901 = vadd.f32 0.0, %v2900
  %v2902 = vpop.f32.mrf.mxu0
  %v2903 = vpop.f32.mrf.mxu0
  %v2904 = vadd.f32 0.0, %v2903
  %v2905 = vpop.f32.mrf.mxu0
  %2906 = vmatprep.mubr.bf16.mxu0 %v2477
  %2907 = vmatmul.mubr.bf16.gmra.mxu0 %v2476
  %v2908 = vpop.f32.mrf.mxu0
  %v2909 = vadd.f32 0.0, %v2908
  %v2910 = vpop.f32.mrf.mxu0
  %v2911 = vpop.f32.mrf.mxu0
  %v2912 = vadd.f32 0.0, %v2911
  %v2913 = vpop.f32.mrf.mxu0
  %2914 = vdwg.mxu0
  %2915 = vmatprep.subr.bf16.mxu0 0
  %2916 = vmatpush1.bf16.msra.mxu0 %v2745
  %2917 = vmatprep.subr.bf16.mxu0 0
  %2918 = vmatpush1.bf16.msra.mxu0 %v2744
  %2919 = vmatprep.subr.bf16.mxu0 0
  %2920 = vmatpush1.bf16.msra.mxu0 %v2743
  %2921 = vmatprep.subr.bf16.mxu0 0
  %2922 = vmatpush1.bf16.msra.mxu0 %v2742
  %2923 = vmatprep.subr.bf16.mxu0 0
  %2924 = vmatpush1.bf16.msra.mxu0 %v2741
  %2925 = vmatprep.subr.bf16.mxu0 0
  %2926 = vmatpush1.bf16.msra.mxu0 %v2740
  %2927 = vmatprep.subr.bf16.mxu0 0
  %2928 = vmatpush1.bf16.msra.mxu0 %v2739
  %2929 = vmatprep.subr.bf16.mxu0 0
  %2930 = vmatpush1.bf16.msra.mxu0 %v2738
  %2931 = vmatprep.subr.bf16.mxu0 0
  %2932 = vmatpush2.bf16.msra.mxu0 %v2753
  %2933 = vmatprep.subr.bf16.mxu0 0
  %2934 = vmatpush2.bf16.msra.mxu0 %v2752
  %2935 = vmatprep.subr.bf16.mxu0 0
  %2936 = vmatpush2.bf16.msra.mxu0 %v2751
  %2937 = vmatprep.subr.bf16.mxu0 0
  %2938 = vmatpush2.bf16.msra.mxu0 %v2750
  %2939 = vmatprep.subr.bf16.mxu0 0
  %2940 = vmatpush2.bf16.msra.mxu0 %v2749
  %2941 = vmatprep.subr.bf16.mxu0 0
  %2942 = vmatpush2.bf16.msra.mxu0 %v2748
  %2943 = vmatprep.subr.bf16.mxu0 0
  %2944 = vmatpush2.bf16.msra.mxu0 %v2747
  %2945 = vmatprep.subr.bf16.mxu0 0
  %2946 = vmatpush2.bf16.msra.mxu0 %v2746
  %2947 = vmatprep.mubr.bf16.mxu0 %v2437
  %2948 = vmatmul.mubr.bf16.gmra.mxu0 %v2436
  %v2949 = vpop.f32.mrf.mxu0
  %v2950 = vadd.f32 %v2853, %v2949
  %v2951 = vpop.f32.mrf.mxu0
  %v2952 = vpop.f32.mrf.mxu0
  %v2953 = vadd.f32 %v2856, %v2952
  %v2954 = vpop.f32.mrf.mxu0
  %2955 = vmatprep.mubr.bf16.mxu0 %v2443
  %2956 = vmatmul.mubr.bf16.gmra.mxu0 %v2442
  %v2957 = vpop.f32.mrf.mxu0
  %v2958 = vadd.f32 %v2861, %v2957
  %v2959 = vpop.f32.mrf.mxu0
  %v2960 = vpop.f32.mrf.mxu0
  %v2961 = vadd.f32 %v2864, %v2960
  %v2962 = vpop.f32.mrf.mxu0
  %2963 = vmatprep.mubr.bf16.mxu0 %v2449
  %2964 = vmatmul.mubr.bf16.gmra.mxu0 %v2448
  %v2965 = vpop.f32.mrf.mxu0
  %v2966 = vadd.f32 %v2869, %v2965
  %v2967 = vpop.f32.mrf.mxu0
  %v2968 = vpop.f32.mrf.mxu0
  %v2969 = vadd.f32 %v2872, %v2968
  %v2970 = vpop.f32.mrf.mxu0
  %2971 = vmatprep.mubr.bf16.mxu0 %v2455
  %2972 = vmatmul.mubr.bf16.gmra.mxu0 %v2454
  %v2973 = vpop.f32.mrf.mxu0
  %v2974 = vadd.f32 %v2877, %v2973
  %v2975 = vpop.f32.mrf.mxu0
  %v2976 = vpop.f32.mrf.mxu0
  %v2977 = vadd.f32 %v2880, %v2976
  %v2978 = vpop.f32.mrf.mxu0
  %2979 = vmatprep.mubr.bf16.mxu0 %v2461
  %2980 = vmatmul.mubr.bf16.gmra.mxu0 %v2460
  %v2981 = vpop.f32.mrf.mxu0
  %v2982 = vadd.f32 %v2885, %v2981
  %v2983 = vpop.f32.mrf.mxu0
  %v2984 = vpop.f32.mrf.mxu0
  %v2985 = vadd.f32 %v2888, %v2984
  %v2986 = vpop.f32.mrf.mxu0
  %2987 = vmatprep.mubr.bf16.mxu0 %v2467
  %2988 = vmatmul.mubr.bf16.gmra.mxu0 %v2466
  %v2989 = vpop.f32.mrf.mxu0
  %v2990 = vadd.f32 %v2893, %v2989
  %v2991 = vpop.f32.mrf.mxu0
  %v2992 = vpop.f32.mrf.mxu0
  %v2993 = vadd.f32 %v2896, %v2992
  %v2994 = vpop.f32.mrf.mxu0
  %2995 = vmatprep.mubr.bf16.mxu0 %v2473
  %2996 = vmatmul.mubr.bf16.gmra.mxu0 %v2472
  %v2997 = vpop.f32.mrf.mxu0
  %v2998 = vadd.f32 %v2901, %v2997
  %v2999 = vpop.f32.mrf.mxu0
  %v3000 = vpop.f32.mrf.mxu0
  %v3001 = vadd.f32 %v2904, %v3000
  %v3002 = vpop.f32.mrf.mxu0
  %3003 = vmatprep.mubr.bf16.mxu0 %v2479
  %3004 = vmatmul.mubr.bf16.gmra.mxu0 %v2478
  %v3005 = vpop.f32.mrf.mxu0
  %v3006 = vadd.f32 %v2909, %v3005
  %v3007 = vpop.f32.mrf.mxu0
  %v3008 = vpop.f32.mrf.mxu0
  %v3009 = vadd.f32 %v2912, %v3008
  %v3010 = vpop.f32.mrf.mxu0
  %3011 = vdwg.mxu0
  %3012 = vmatprep.subr.bf16.mxu0 0
  %3013 = vmatpush1.bf16.msra.mxu0 %v2761
  %3014 = vmatprep.subr.bf16.mxu0 0
  %3015 = vmatpush1.bf16.msra.mxu0 %v2760
  %3016 = vmatprep.subr.bf16.mxu0 0
  %3017 = vmatpush1.bf16.msra.mxu0 %v2759
  %3018 = vmatprep.subr.bf16.mxu0 0
  %3019 = vmatpush1.bf16.msra.mxu0 %v2758
  %3020 = vmatprep.subr.bf16.mxu0 0
  %3021 = vmatpush1.bf16.msra.mxu0 %v2757
  %3022 = vmatprep.subr.bf16.mxu0 0
  %3023 = vmatpush1.bf16.msra.mxu0 %v2756
  %3024 = vmatprep.subr.bf16.mxu0 0
  %3025 = vmatpush1.bf16.msra.mxu0 %v2755
  %3026 = vmatprep.subr.bf16.mxu0 0
  %3027 = vmatpush1.bf16.msra.mxu0 %v2754
  %3028 = vmatprep.subr.bf16.mxu0 0
  %3029 = vmatpush2.bf16.msra.mxu0 %v2769
  %3030 = vmatprep.subr.bf16.mxu0 0
  %3031 = vmatpush2.bf16.msra.mxu0 %v2768
  %3032 = vmatprep.subr.bf16.mxu0 0
  %3033 = vmatpush2.bf16.msra.mxu0 %v2767
  %3034 = vmatprep.subr.bf16.mxu0 0
  %3035 = vmatpush2.bf16.msra.mxu0 %v2766
  %3036 = vmatprep.subr.bf16.mxu0 0
  %3037 = vmatpush2.bf16.msra.mxu0 %v2765
  %3038 = vmatprep.subr.bf16.mxu0 0
  %3039 = vmatpush2.bf16.msra.mxu0 %v2764
  %3040 = vmatprep.subr.bf16.mxu0 0
  %3041 = vmatpush2.bf16.msra.mxu0 %v2763
  %3042 = vmatprep.subr.bf16.mxu0 0
  %3043 = vmatpush2.bf16.msra.mxu0 %v2762
  %3044 = vmatprep.mubr.bf16.mxu0 %v2439
  %3045 = vmatmul.mubr.bf16.gmra.mxu0 %v2438
  %v3046 = vpop.f32.mrf.mxu0
  %v3047 = vadd.f32 %v2950, %v3046
  %v3048 = vpop.f32.mrf.mxu0
  %v3049 = vpop.f32.mrf.mxu0
  %v3050 = vadd.f32 %v2953, %v3049
  %v3051 = vpop.f32.mrf.mxu0
  %3052 = vmatprep.mubr.bf16.mxu0 %v2445
  %3053 = vmatmul.mubr.bf16.gmra.mxu0 %v2444
  %v3054 = vpop.f32.mrf.mxu0
  %v3055 = vadd.f32 %v2958, %v3054
  %v3056 = vpop.f32.mrf.mxu0
  %v3057 = vpop.f32.mrf.mxu0
  %v3058 = vadd.f32 %v2961, %v3057
  %v3059 = vpop.f32.mrf.mxu0
  %3060 = vmatprep.mubr.bf16.mxu0 %v2451
  %3061 = vmatmul.mubr.bf16.gmra.mxu0 %v2450
  %v3062 = vpop.f32.mrf.mxu0
  %v3063 = vadd.f32 %v2966, %v3062
  %v3064 = vpop.f32.mrf.mxu0
  %v3065 = vpop.f32.mrf.mxu0
  %v3066 = vadd.f32 %v2969, %v3065
  %v3067 = vpop.f32.mrf.mxu0
  %3068 = vmatprep.mubr.bf16.mxu0 %v2457
  %3069 = vmatmul.mubr.bf16.gmra.mxu0 %v2456
  %v3070 = vpop.f32.mrf.mxu0
  %v3071 = vadd.f32 %v2974, %v3070
  %v3072 = vpop.f32.mrf.mxu0
  %v3073 = vpop.f32.mrf.mxu0
  %v3074 = vadd.f32 %v2977, %v3073
  %v3075 = vpop.f32.mrf.mxu0
  %3076 = vmatprep.mubr.bf16.mxu0 %v2463
  %3077 = vmatmul.mubr.bf16.gmra.mxu0 %v2462
  %v3078 = vpop.f32.mrf.mxu0
  %v3079 = vadd.f32 %v2982, %v3078
  %v3080 = vpop.f32.mrf.mxu0
  %v3081 = vpop.f32.mrf.mxu0
  %v3082 = vadd.f32 %v2985, %v3081
  %v3083 = vpop.f32.mrf.mxu0
  %3084 = vmatprep.mubr.bf16.mxu0 %v2469
  %3085 = vmatmul.mubr.bf16.gmra.mxu0 %v2468
  %v3086 = vpop.f32.mrf.mxu0
  %v3087 = vadd.f32 %v2990, %v3086
  %v3088 = vpop.f32.mrf.mxu0
  %v3089 = vpop.f32.mrf.mxu0
  %v3090 = vadd.f32 %v2993, %v3089
  %v3091 = vpop.f32.mrf.mxu0
  %3092 = vmatprep.mubr.bf16.mxu0 %v2475
  %3093 = vmatmul.mubr.bf16.gmra.mxu0 %v2474
  %v3094 = vpop.f32.mrf.mxu0
  %v3095 = vadd.f32 %v2998, %v3094
  %v3096 = vpop.f32.mrf.mxu0
  %v3097 = vpop.f32.mrf.mxu0
  %v3098 = vadd.f32 %v3001, %v3097
  %v3099 = vpop.f32.mrf.mxu0
  %3100 = vmatprep.mubr.bf16.mxu0 %v2481
  %3101 = vmatmul.mubr.bf16.gmra.mxu0 %v2480
  %v3102 = vpop.f32.mrf.mxu0
  %v3103 = vadd.f32 %v3006, %v3102
  %v3104 = vpop.f32.mrf.mxu0
  %v3105 = vpop.f32.mrf.mxu0
  %v3106 = vadd.f32 %v3009, %v3105
  %v3107 = vpop.f32.mrf.mxu0
  %3108 = vdwg.mxu0
  %3109 = vst [vmem:[#allocation3 + $0x80] sm:$0xff] %v3047
  %3110 = vst [vmem:[#allocation3 + $0x88] sm:$0xff] %v3050
  %3111 = vst [vmem:[#allocation3 + $0x90] sm:$0xff] %v3055
  %3112 = vst [vmem:[#allocation3 + $0x98] sm:$0xff] %v3058
  %3113 = vst [vmem:[#allocation3 + $0xa0] sm:$0xff] %v3063
  %3114 = vst [vmem:[#allocation3 + $0xa8] sm:$0xff] %v3066
  %3115 = vst [vmem:[#allocation3 + $0xb0] sm:$0xff] %v3071
  %3116 = vst [vmem:[#allocation3 + $0xb8] sm:$0xff] %v3074
  %3117 = vst [vmem:[#allocation3 + $0xc0] sm:$0xff] %v3079
  %3118 = vst [vmem:[#allocation3 + $0xc8] sm:$0xff] %v3082
  %3119 = vst [vmem:[#allocation3 + $0xd0] sm:$0xff] %v3087
  %3120 = vst [vmem:[#allocation3 + $0xd8] sm:$0xff] %v3090
  %3121 = vst [vmem:[#allocation3 + $0xe0] sm:$0xff] %v3095
  %3122 = vst [vmem:[#allocation3 + $0xe8] sm:$0xff] %v3098
  %3123 = vst [vmem:[#allocation3 + $0xf0] sm:$0xff] %v3103
  %3124 = vst [vmem:[#allocation3 + $0xf8] sm:$0xff] %v3106
  %s3125 = scalar_lea.vmem %s0, 3
  %v3126 = vld [vmem:[%s3125] sm:$0x1]
  %v3127 = vld [vmem:[#allocation3] sm:$0xff]
  %v3128 = vld [vmem:[#allocation3 + $0x8] sm:$0xff]
  %v3129 = vld [vmem:[#allocation3 + $0x10] sm:$0xff]
  %v3130 = vld [vmem:[#allocation3 + $0x18] sm:$0xff]
  %v3131 = vld [vmem:[#allocation3 + $0x20] sm:$0xff]
  %v3132 = vld [vmem:[#allocation3 + $0x28] sm:$0xff]
  %v3133 = vld [vmem:[#allocation3 + $0x30] sm:$0xff]
  %v3134 = vld [vmem:[#allocation3 + $0x38] sm:$0xff]
  %v3135 = vld [vmem:[#allocation3 + $0x40] sm:$0xff]
  %v3136 = vld [vmem:[#allocation3 + $0x48] sm:$0xff]
  %v3137 = vld [vmem:[#allocation3 + $0x50] sm:$0xff]
  %v3138 = vld [vmem:[#allocation3 + $0x58] sm:$0xff]
  %v3139 = vld [vmem:[#allocation3 + $0x60] sm:$0xff]
  %v3140 = vld [vmem:[#allocation3 + $0x68] sm:$0xff]
  %v3141 = vld [vmem:[#allocation3 + $0x70] sm:$0xff]
  %v3142 = vld [vmem:[#allocation3 + $0x78] sm:$0xff]
  %v3143 = vld [vmem:[#allocation3 + $0x80] sm:$0xff]
  %v3144 = vld [vmem:[#allocation3 + $0x88] sm:$0xff]
  %v3145 = vld [vmem:[#allocation3 + $0x90] sm:$0xff]
  %v3146 = vld [vmem:[#allocation3 + $0x98] sm:$0xff]
  %v3147 = vld [vmem:[#allocation3 + $0xa0] sm:$0xff]
  %v3148 = vld [vmem:[#allocation3 + $0xa8] sm:$0xff]
  %v3149 = vld [vmem:[#allocation3 + $0xb0] sm:$0xff]
  %v3150 = vld [vmem:[#allocation3 + $0xb8] sm:$0xff]
  %v3151 = vld [vmem:[#allocation3 + $0xc0] sm:$0xff]
  %v3152 = vld [vmem:[#allocation3 + $0xc8] sm:$0xff]
  %v3153 = vld [vmem:[#allocation3 + $0xd0] sm:$0xff]
  %v3154 = vld [vmem:[#allocation3 + $0xd8] sm:$0xff]
  %v3155 = vld [vmem:[#allocation3 + $0xe0] sm:$0xff]
  %v3156 = vld [vmem:[#allocation3 + $0xe8] sm:$0xff]
  %v3157 = vld [vmem:[#allocation3 + $0xf0] sm:$0xff]
  %v3158 = vld [vmem:[#allocation3 + $0xf8] sm:$0xff]
  %v3160 = vlaneseq
  %v3161 = vshrl.u32 %v3160, 7
  %v3162 = vsub.s32 0, %v3161
  %v3163 = vrot.slane %v3126, %v3162
  %v3165 = vmul.f32 %v3163, %v3127
  %v3166 = vmul.f32 %v3163, %v3128
  %v3167 = vmul.f32 %v3163, %v3129
  %v3168 = vmul.f32 %v3163, %v3130
  %v3169 = vmul.f32 %v3163, %v3131
  %v3170 = vmul.f32 %v3163, %v3132
  %v3171 = vmul.f32 %v3163, %v3133
  %v3172 = vmul.f32 %v3163, %v3134
  %v3173 = vmul.f32 %v3163, %v3135
  %v3174 = vmul.f32 %v3163, %v3136
  %v3175 = vmul.f32 %v3163, %v3137
  %v3176 = vmul.f32 %v3163, %v3138
  %v3177 = vmul.f32 %v3163, %v3139
  %v3178 = vmul.f32 %v3163, %v3140
  %v3179 = vmul.f32 %v3163, %v3141
  %v3180 = vmul.f32 %v3163, %v3142
  %v3181 = vmul.f32 %v3163, %v3143
  %v3182 = vmul.f32 %v3163, %v3144
  %v3183 = vmul.f32 %v3163, %v3145
  %v3184 = vmul.f32 %v3163, %v3146
  %v3185 = vmul.f32 %v3163, %v3147
  %v3186 = vmul.f32 %v3163, %v3148
  %v3187 = vmul.f32 %v3163, %v3149
  %v3188 = vmul.f32 %v3163, %v3150
  %v3189 = vmul.f32 %v3163, %v3151
  %v3190 = vmul.f32 %v3163, %v3152
  %v3191 = vmul.f32 %v3163, %v3153
  %v3192 = vmul.f32 %v3163, %v3154
  %v3193 = vmul.f32 %v3163, %v3155
  %v3194 = vmul.f32 %v3163, %v3156
  %v3195 = vmul.f32 %v3163, %v3157
  %v3196 = vmul.f32 %v3163, %v3158
  %v3197 = vpack.c.bf16 %v3166, %v3165
  %v3198 = vpack.c.bf16 %v3168, %v3167
  %v3199 = vpack.c.bf16 %v3170, %v3169
  %v3200 = vpack.c.bf16 %v3172, %v3171
  %v3201 = vpack.c.bf16 %v3174, %v3173
  %v3202 = vpack.c.bf16 %v3176, %v3175
  %v3203 = vpack.c.bf16 %v3178, %v3177
  %v3204 = vpack.c.bf16 %v3180, %v3179
  %v3205 = vpack.c.bf16 %v3182, %v3181
  %v3206 = vpack.c.bf16 %v3184, %v3183
  %v3207 = vpack.c.bf16 %v3186, %v3185
  %v3208 = vpack.c.bf16 %v3188, %v3187
  %v3209 = vpack.c.bf16 %v3190, %v3189
  %v3210 = vpack.c.bf16 %v3192, %v3191
  %v3211 = vpack.c.bf16 %v3194, %v3193
  %v3212 = vpack.c.bf16 %v3196, %v3195
  %v3229 = vunpack.c.l.b16 %v3197
  %v3230 = vunpack.c.h.b16 %v3197
  %v3231 = vunpack.c.l.b16 %v3198
  %v3232 = vunpack.c.h.b16 %v3198
  %v3233 = vunpack.c.l.b16 %v3199
  %v3234 = vunpack.c.h.b16 %v3199
  %v3235 = vunpack.c.l.b16 %v3200
  %v3236 = vunpack.c.h.b16 %v3200
  %v3237 = vunpack.c.l.b16 %v3201
  %v3238 = vunpack.c.h.b16 %v3201
  %v3239 = vunpack.c.l.b16 %v3202
  %v3240 = vunpack.c.h.b16 %v3202
  %v3241 = vunpack.c.l.b16 %v3203
  %v3242 = vunpack.c.h.b16 %v3203
  %v3243 = vunpack.c.l.b16 %v3204
  %v3244 = vunpack.c.h.b16 %v3204
  %v3245 = vunpack.c.l.b16 %v3205
  %v3246 = vunpack.c.h.b16 %v3205
  %v3247 = vunpack.c.l.b16 %v3206
  %v3248 = vunpack.c.h.b16 %v3206
  %v3249 = vunpack.c.l.b16 %v3207
  %v3250 = vunpack.c.h.b16 %v3207
  %v3251 = vunpack.c.l.b16 %v3208
  %v3252 = vunpack.c.h.b16 %v3208
  %v3253 = vunpack.c.l.b16 %v3209
  %v3254 = vunpack.c.h.b16 %v3209
  %v3255 = vunpack.c.l.b16 %v3210
  %v3256 = vunpack.c.h.b16 %v3210
  %v3257 = vunpack.c.l.b16 %v3211
  %v3258 = vunpack.c.h.b16 %v3211
  %v3259 = vunpack.c.l.b16 %v3212
  %v3260 = vunpack.c.h.b16 %v3212
  %v3261 = vpack.c.b16 %v3229, %v3229
  %v3262 = vpack.c.b16 %v3230, %v3230
  %v3263 = vpack.c.b16 %v3231, %v3231
  %v3264 = vpack.c.b16 %v3232, %v3232
  %v3265 = vpack.c.b16 %v3233, %v3233
  %v3266 = vpack.c.b16 %v3234, %v3234
  %v3267 = vpack.c.b16 %v3235, %v3235
  %v3268 = vpack.c.b16 %v3236, %v3236
  %v3269 = vpack.c.b16 %v3237, %v3237
  %v3270 = vpack.c.b16 %v3238, %v3238
  %v3271 = vpack.c.b16 %v3239, %v3239
  %v3272 = vpack.c.b16 %v3240, %v3240
  %v3273 = vpack.c.b16 %v3241, %v3241
  %v3274 = vpack.c.b16 %v3242, %v3242
  %v3275 = vpack.c.b16 %v3243, %v3243
  %v3276 = vpack.c.b16 %v3244, %v3244
  %v3277 = vpack.c.b16 %v3245, %v3245
  %v3278 = vpack.c.b16 %v3246, %v3246
  %v3279 = vpack.c.b16 %v3247, %v3247
  %v3280 = vpack.c.b16 %v3248, %v3248
  %v3281 = vpack.c.b16 %v3249, %v3249
  %v3282 = vpack.c.b16 %v3250, %v3250
  %v3283 = vpack.c.b16 %v3251, %v3251
  %v3284 = vpack.c.b16 %v3252, %v3252
  %v3285 = vpack.c.b16 %v3253, %v3253
  %v3286 = vpack.c.b16 %v3254, %v3254
  %v3287 = vpack.c.b16 %v3255, %v3255
  %v3288 = vpack.c.b16 %v3256, %v3256
  %v3289 = vpack.c.b16 %v3257, %v3257
  %v3290 = vpack.c.b16 %v3258, %v3258
  %v3291 = vpack.c.b16 %v3259, %v3259
  %v3292 = vpack.c.b16 %v3260, %v3260
  %3325 = vst [vmem:[#allocation4] sm:$0xf] %v3261
  %3326 = vst [vmem:[#allocation4 + $0x4] sm:$0xf] %v3262
  %3327 = vst [vmem:[#allocation4 + $0x8] sm:$0xf] %v3263
  %3328 = vst [vmem:[#allocation4 + $0xc] sm:$0xf] %v3264
  %3329 = vst [vmem:[#allocation4 + $0x10] sm:$0xf] %v3265
  %3330 = vst [vmem:[#allocation4 + $0x14] sm:$0xf] %v3266
  %3331 = vst [vmem:[#allocation4 + $0x18] sm:$0xf] %v3267
  %3332 = vst [vmem:[#allocation4 + $0x1c] sm:$0xf] %v3268
  %3333 = vst [vmem:[#allocation4 + $0x20] sm:$0xf] %v3269
  %3334 = vst [vmem:[#allocation4 + $0x24] sm:$0xf] %v3270
  %3335 = vst [vmem:[#allocation4 + $0x28] sm:$0xf] %v3271
  %3336 = vst [vmem:[#allocation4 + $0x2c] sm:$0xf] %v3272
  %3337 = vst [vmem:[#allocation4 + $0x30] sm:$0xf] %v3273
  %3338 = vst [vmem:[#allocation4 + $0x34] sm:$0xf] %v3274
  %3339 = vst [vmem:[#allocation4 + $0x38] sm:$0xf] %v3275
  %3340 = vst [vmem:[#allocation4 + $0x3c] sm:$0xf] %v3276
  %3341 = vst [vmem:[#allocation4 + $0x40] sm:$0xf] %v3277
  %3342 = vst [vmem:[#allocation4 + $0x44] sm:$0xf] %v3278
  %3343 = vst [vmem:[#allocation4 + $0x48] sm:$0xf] %v3279
  %3344 = vst [vmem:[#allocation4 + $0x4c] sm:$0xf] %v3280
  %3345 = vst [vmem:[#allocation4 + $0x50] sm:$0xf] %v3281
  %3346 = vst [vmem:[#allocation4 + $0x54] sm:$0xf] %v3282
  %3347 = vst [vmem:[#allocation4 + $0x58] sm:$0xf] %v3283
  %3348 = vst [vmem:[#allocation4 + $0x5c] sm:$0xf] %v3284
  %3349 = vst [vmem:[#allocation4 + $0x60] sm:$0xf] %v3285
  %3350 = vst [vmem:[#allocation4 + $0x64] sm:$0xf] %v3286
  %3351 = vst [vmem:[#allocation4 + $0x68] sm:$0xf] %v3287
  %3352 = vst [vmem:[#allocation4 + $0x6c] sm:$0xf] %v3288
  %3353 = vst [vmem:[#allocation4 + $0x70] sm:$0xf] %v3289
  %3354 = vst [vmem:[#allocation4 + $0x74] sm:$0xf] %v3290
  %3355 = vst [vmem:[#allocation4 + $0x78] sm:$0xf] %v3291
  %3356 = vst [vmem:[#allocation4 + $0x7c] sm:$0xf] %v3292
  %s3357 = scalar_lea.vmem %s0, 4
  %v3358 = vld [vmem:[%s3357] sm:$0x1]
  %v3359 = vld [vmem:[#allocation3] sm:$0xff]
  %v3360 = vld [vmem:[#allocation3 + $0x8] sm:$0xff]
  %v3361 = vld [vmem:[#allocation3 + $0x10] sm:$0xff]
  %v3362 = vld [vmem:[#allocation3 + $0x18] sm:$0xff]
  %v3363 = vld [vmem:[#allocation3 + $0x20] sm:$0xff]
  %v3364 = vld [vmem:[#allocation3 + $0x28] sm:$0xff]
  %v3365 = vld [vmem:[#allocation3 + $0x30] sm:$0xff]
  %v3366 = vld [vmem:[#allocation3 + $0x38] sm:$0xff]
  %v3367 = vld [vmem:[#allocation3 + $0x40] sm:$0xff]
  %v3368 = vld [vmem:[#allocation3 + $0x48] sm:$0xff]
  %v3369 = vld [vmem:[#allocation3 + $0x50] sm:$0xff]
  %v3370 = vld [vmem:[#allocation3 + $0x58] sm:$0xff]
  %v3371 = vld [vmem:[#allocation3 + $0x60] sm:$0xff]
  %v3372 = vld [vmem:[#allocation3 + $0x68] sm:$0xff]
  %v3373 = vld [vmem:[#allocation3 + $0x70] sm:$0xff]
  %v3374 = vld [vmem:[#allocation3 + $0x78] sm:$0xff]
  %v3375 = vld [vmem:[#allocation3 + $0x80] sm:$0xff]
  %v3376 = vld [vmem:[#allocation3 + $0x88] sm:$0xff]
  %v3377 = vld [vmem:[#allocation3 + $0x90] sm:$0xff]
  %v3378 = vld [vmem:[#allocation3 + $0x98] sm:$0xff]
  %v3379 = vld [vmem:[#allocation3 + $0xa0] sm:$0xff]
  %v3380 = vld [vmem:[#allocation3 + $0xa8] sm:$0xff]
  %v3381 = vld [vmem:[#allocation3 + $0xb0] sm:$0xff]
  %v3382 = vld [vmem:[#allocation3 + $0xb8] sm:$0xff]
  %v3383 = vld [vmem:[#allocation3 + $0xc0] sm:$0xff]
  %v3384 = vld [vmem:[#allocation3 + $0xc8] sm:$0xff]
  %v3385 = vld [vmem:[#allocation3 + $0xd0] sm:$0xff]
  %v3386 = vld [vmem:[#allocation3 + $0xd8] sm:$0xff]
  %v3387 = vld [vmem:[#allocation3 + $0xe0] sm:$0xff]
  %v3388 = vld [vmem:[#allocation3 + $0xe8] sm:$0xff]
  %v3389 = vld [vmem:[#allocation3 + $0xf0] sm:$0xff]
  %v3390 = vld [vmem:[#allocation3 + $0xf8] sm:$0xff]
  %v3392 = vlaneseq
  %v3393 = vshrl.u32 %v3392, 7
  %v3394 = vsub.s32 0, %v3393
  %v3395 = vrot.slane %v3358, %v3394
  %v3397 = vmul.f32 %v3395, %v3359
  %v3398 = vmul.f32 %v3395, %v3360
  %v3399 = vmul.f32 %v3395, %v3361
  %v3400 = vmul.f32 %v3395, %v3362
  %v3401 = vmul.f32 %v3395, %v3363
  %v3402 = vmul.f32 %v3395, %v3364
  %v3403 = vmul.f32 %v3395, %v3365
  %v3404 = vmul.f32 %v3395, %v3366
  %v3405 = vmul.f32 %v3395, %v3367
  %v3406 = vmul.f32 %v3395, %v3368
  %v3407 = vmul.f32 %v3395, %v3369
  %v3408 = vmul.f32 %v3395, %v3370
  %v3409 = vmul.f32 %v3395, %v3371
  %v3410 = vmul.f32 %v3395, %v3372
  %v3411 = vmul.f32 %v3395, %v3373
  %v3412 = vmul.f32 %v3395, %v3374
  %v3413 = vmul.f32 %v3395, %v3375
  %v3414 = vmul.f32 %v3395, %v3376
  %v3415 = vmul.f32 %v3395, %v3377
  %v3416 = vmul.f32 %v3395, %v3378
  %v3417 = vmul.f32 %v3395, %v3379
  %v3418 = vmul.f32 %v3395, %v3380
  %v3419 = vmul.f32 %v3395, %v3381
  %v3420 = vmul.f32 %v3395, %v3382
  %v3421 = vmul.f32 %v3395, %v3383
  %v3422 = vmul.f32 %v3395, %v3384
  %v3423 = vmul.f32 %v3395, %v3385
  %v3424 = vmul.f32 %v3395, %v3386
  %v3425 = vmul.f32 %v3395, %v3387
  %v3426 = vmul.f32 %v3395, %v3388
  %v3427 = vmul.f32 %v3395, %v3389
  %v3428 = vmul.f32 %v3395, %v3390
  %v3429 = vpack.c.bf16 %v3398, %v3397
  %v3430 = vpack.c.bf16 %v3400, %v3399
  %v3431 = vpack.c.bf16 %v3402, %v3401
  %v3432 = vpack.c.bf16 %v3404, %v3403
  %v3433 = vpack.c.bf16 %v3406, %v3405
  %v3434 = vpack.c.bf16 %v3408, %v3407
  %v3435 = vpack.c.bf16 %v3410, %v3409
  %v3436 = vpack.c.bf16 %v3412, %v3411
  %v3437 = vpack.c.bf16 %v3414, %v3413
  %v3438 = vpack.c.bf16 %v3416, %v3415
  %v3439 = vpack.c.bf16 %v3418, %v3417
  %v3440 = vpack.c.bf16 %v3420, %v3419
  %v3441 = vpack.c.bf16 %v3422, %v3421
  %v3442 = vpack.c.bf16 %v3424, %v3423
  %v3443 = vpack.c.bf16 %v3426, %v3425
  %v3444 = vpack.c.bf16 %v3428, %v3427
  %v3461 = vunpack.c.l.b16 %v3429
  %v3462 = vunpack.c.h.b16 %v3429
  %v3463 = vunpack.c.l.b16 %v3430
  %v3464 = vunpack.c.h.b16 %v3430
  %v3465 = vunpack.c.l.b16 %v3431
  %v3466 = vunpack.c.h.b16 %v3431
  %v3467 = vunpack.c.l.b16 %v3432
  %v3468 = vunpack.c.h.b16 %v3432
  %v3469 = vunpack.c.l.b16 %v3433
  %v3470 = vunpack.c.h.b16 %v3433
  %v3471 = vunpack.c.l.b16 %v3434
  %v3472 = vunpack.c.h.b16 %v3434
  %v3473 = vunpack.c.l.b16 %v3435
  %v3474 = vunpack.c.h.b16 %v3435
  %v3475 = vunpack.c.l.b16 %v3436
  %v3476 = vunpack.c.h.b16 %v3436
  %v3477 = vunpack.c.l.b16 %v3437
  %v3478 = vunpack.c.h.b16 %v3437
  %v3479 = vunpack.c.l.b16 %v3438
  %v3480 = vunpack.c.h.b16 %v3438
  %v3481 = vunpack.c.l.b16 %v3439
  %v3482 = vunpack.c.h.b16 %v3439
  %v3483 = vunpack.c.l.b16 %v3440
  %v3484 = vunpack.c.h.b16 %v3440
  %v3485 = vunpack.c.l.b16 %v3441
  %v3486 = vunpack.c.h.b16 %v3441
  %v3487 = vunpack.c.l.b16 %v3442
  %v3488 = vunpack.c.h.b16 %v3442
  %v3489 = vunpack.c.l.b16 %v3443
  %v3490 = vunpack.c.h.b16 %v3443
  %v3491 = vunpack.c.l.b16 %v3444
  %v3492 = vunpack.c.h.b16 %v3444
  %v3493 = vpack.c.b16 %v3461, %v3461
  %v3494 = vpack.c.b16 %v3462, %v3462
  %v3495 = vpack.c.b16 %v3463, %v3463
  %v3496 = vpack.c.b16 %v3464, %v3464
  %v3497 = vpack.c.b16 %v3465, %v3465
  %v3498 = vpack.c.b16 %v3466, %v3466
  %v3499 = vpack.c.b16 %v3467, %v3467
  %v3500 = vpack.c.b16 %v3468, %v3468
  %v3501 = vpack.c.b16 %v3469, %v3469
  %v3502 = vpack.c.b16 %v3470, %v3470
  %v3503 = vpack.c.b16 %v3471, %v3471
  %v3504 = vpack.c.b16 %v3472, %v3472
  %v3505 = vpack.c.b16 %v3473, %v3473
  %v3506 = vpack.c.b16 %v3474, %v3474
  %v3507 = vpack.c.b16 %v3475, %v3475
  %v3508 = vpack.c.b16 %v3476, %v3476
  %v3509 = vpack.c.b16 %v3477, %v3477
  %v3510 = vpack.c.b16 %v3478, %v3478
  %v3511 = vpack.c.b16 %v3479, %v3479
  %v3512 = vpack.c.b16 %v3480, %v3480
  %v3513 = vpack.c.b16 %v3481, %v3481
  %v3514 = vpack.c.b16 %v3482, %v3482
  %v3515 = vpack.c.b16 %v3483, %v3483
  %v3516 = vpack.c.b16 %v3484, %v3484
  %v3517 = vpack.c.b16 %v3485, %v3485
  %v3518 = vpack.c.b16 %v3486, %v3486
  %v3519 = vpack.c.b16 %v3487, %v3487
  %v3520 = vpack.c.b16 %v3488, %v3488
  %v3521 = vpack.c.b16 %v3489, %v3489
  %v3522 = vpack.c.b16 %v3490, %v3490
  %v3523 = vpack.c.b16 %v3491, %v3491
  %v3524 = vpack.c.b16 %v3492, %v3492
  %3557 = vst [vmem:[#allocation4 + $0x80] sm:$0xf] %v3493
  %3558 = vst [vmem:[#allocation4 + $0x84] sm:$0xf] %v3494
  %3559 = vst [vmem:[#allocation4 + $0x88] sm:$0xf] %v3495
  %3560 = vst [vmem:[#allocation4 + $0x8c] sm:$0xf] %v3496
  %3561 = vst [vmem:[#allocation4 + $0x90] sm:$0xf] %v3497
  %3562 = vst [vmem:[#allocation4 + $0x94] sm:$0xf] %v3498
  %3563 = vst [vmem:[#allocation4 + $0x98] sm:$0xf] %v3499
  %3564 = vst [vmem:[#allocation4 + $0x9c] sm:$0xf] %v3500
  %3565 = vst [vmem:[#allocation4 + $0xa0] sm:$0xf] %v3501
  %3566 = vst [vmem:[#allocation4 + $0xa4] sm:$0xf] %v3502
  %3567 = vst [vmem:[#allocation4 + $0xa8] sm:$0xf] %v3503
  %3568 = vst [vmem:[#allocation4 + $0xac] sm:$0xf] %v3504
  %3569 = vst [vmem:[#allocation4 + $0xb0] sm:$0xf] %v3505
  %3570 = vst [vmem:[#allocation4 + $0xb4] sm:$0xf] %v3506
  %3571 = vst [vmem:[#allocation4 + $0xb8] sm:$0xf] %v3507
  %3572 = vst [vmem:[#allocation4 + $0xbc] sm:$0xf] %v3508
  %3573 = vst [vmem:[#allocation4 + $0xc0] sm:$0xf] %v3509
  %3574 = vst [vmem:[#allocation4 + $0xc4] sm:$0xf] %v3510
  %3575 = vst [vmem:[#allocation4 + $0xc8] sm:$0xf] %v3511
  %3576 = vst [vmem:[#allocation4 + $0xcc] sm:$0xf] %v3512
  %3577 = vst [vmem:[#allocation4 + $0xd0] sm:$0xf] %v3513
  %3578 = vst [vmem:[#allocation4 + $0xd4] sm:$0xf] %v3514
  %3579 = vst [vmem:[#allocation4 + $0xd8] sm:$0xf] %v3515
  %3580 = vst [vmem:[#allocation4 + $0xdc] sm:$0xf] %v3516
  %3581 = vst [vmem:[#allocation4 + $0xe0] sm:$0xf] %v3517
  %3582 = vst [vmem:[#allocation4 + $0xe4] sm:$0xf] %v3518
  %3583 = vst [vmem:[#allocation4 + $0xe8] sm:$0xf] %v3519
  %3584 = vst [vmem:[#allocation4 + $0xec] sm:$0xf] %v3520
  %3585 = vst [vmem:[#allocation4 + $0xf0] sm:$0xf] %v3521
  %3586 = vst [vmem:[#allocation4 + $0xf4] sm:$0xf] %v3522
  %3587 = vst [vmem:[#allocation4 + $0xf8] sm:$0xf] %v3523
  %3588 = vst [vmem:[#allocation4 + $0xfc] sm:$0xf] %v3524
  %s3589 = scalar_lea.vmem %s0, 5
  %v3590 = vld [vmem:[%s3589] sm:$0x1]
  %v3591 = vld [vmem:[#allocation3] sm:$0xff]
  %v3592 = vld [vmem:[#allocation3 + $0x8] sm:$0xff]
  %v3593 = vld [vmem:[#allocation3 + $0x10] sm:$0xff]
  %v3594 = vld [vmem:[#allocation3 + $0x18] sm:$0xff]
  %v3595 = vld [vmem:[#allocation3 + $0x20] sm:$0xff]
  %v3596 = vld [vmem:[#allocation3 + $0x28] sm:$0xff]
  %v3597 = vld [vmem:[#allocation3 + $0x30] sm:$0xff]
  %v3598 = vld [vmem:[#allocation3 + $0x38] sm:$0xff]
  %v3599 = vld [vmem:[#allocation3 + $0x40] sm:$0xff]
  %v3600 = vld [vmem:[#allocation3 + $0x48] sm:$0xff]
  %v3601 = vld [vmem:[#allocation3 + $0x50] sm:$0xff]
  %v3602 = vld [vmem:[#allocation3 + $0x58] sm:$0xff]
  %v3603 = vld [vmem:[#allocation3 + $0x60] sm:$0xff]
  %v3604 = vld [vmem:[#allocation3 + $0x68] sm:$0xff]
  %v3605 = vld [vmem:[#allocation3 + $0x70] sm:$0xff]
  %v3606 = vld [vmem:[#allocation3 + $0x78] sm:$0xff]
  %v3607 = vld [vmem:[#allocation3 + $0x80] sm:$0xff]
  %v3608 = vld [vmem:[#allocation3 + $0x88] sm:$0xff]
  %v3609 = vld [vmem:[#allocation3 + $0x90] sm:$0xff]
  %v3610 = vld [vmem:[#allocation3 + $0x98] sm:$0xff]
  %v3611 = vld [vmem:[#allocation3 + $0xa0] sm:$0xff]
  %v3612 = vld [vmem:[#allocation3 + $0xa8] sm:$0xff]
  %v3613 = vld [vmem:[#allocation3 + $0xb0] sm:$0xff]
  %v3614 = vld [vmem:[#allocation3 + $0xb8] sm:$0xff]
  %v3615 = vld [vmem:[#allocation3 + $0xc0] sm:$0xff]
  %v3616 = vld [vmem:[#allocation3 + $0xc8] sm:$0xff]
  %v3617 = vld [vmem:[#allocation3 + $0xd0] sm:$0xff]
  %v3618 = vld [vmem:[#allocation3 + $0xd8] sm:$0xff]
  %v3619 = vld [vmem:[#allocation3 + $0xe0] sm:$0xff]
  %v3620 = vld [vmem:[#allocation3 + $0xe8] sm:$0xff]
  %v3621 = vld [vmem:[#allocation3 + $0xf0] sm:$0xff]
  %v3622 = vld [vmem:[#allocation3 + $0xf8] sm:$0xff]
  %v3624 = vlaneseq
  %v3625 = vshrl.u32 %v3624, 7
  %v3626 = vsub.s32 0, %v3625
  %v3627 = vrot.slane %v3590, %v3626
  %v3629 = vmul.f32 %v3627, %v3591
  %v3630 = vmul.f32 %v3627, %v3592
  %v3631 = vmul.f32 %v3627, %v3593
  %v3632 = vmul.f32 %v3627, %v3594
  %v3633 = vmul.f32 %v3627, %v3595
  %v3634 = vmul.f32 %v3627, %v3596
  %v3635 = vmul.f32 %v3627, %v3597
  %v3636 = vmul.f32 %v3627, %v3598
  %v3637 = vmul.f32 %v3627, %v3599
  %v3638 = vmul.f32 %v3627, %v3600
  %v3639 = vmul.f32 %v3627, %v3601
  %v3640 = vmul.f32 %v3627, %v3602
  %v3641 = vmul.f32 %v3627, %v3603
  %v3642 = vmul.f32 %v3627, %v3604
  %v3643 = vmul.f32 %v3627, %v3605
  %v3644 = vmul.f32 %v3627, %v3606
  %v3645 = vmul.f32 %v3627, %v3607
  %v3646 = vmul.f32 %v3627, %v3608
  %v3647 = vmul.f32 %v3627, %v3609
  %v3648 = vmul.f32 %v3627, %v3610
  %v3649 = vmul.f32 %v3627, %v3611
  %v3650 = vmul.f32 %v3627, %v3612
  %v3651 = vmul.f32 %v3627, %v3613
  %v3652 = vmul.f32 %v3627, %v3614
  %v3653 = vmul.f32 %v3627, %v3615
  %v3654 = vmul.f32 %v3627, %v3616
  %v3655 = vmul.f32 %v3627, %v3617
  %v3656 = vmul.f32 %v3627, %v3618
  %v3657 = vmul.f32 %v3627, %v3619
  %v3658 = vmul.f32 %v3627, %v3620
  %v3659 = vmul.f32 %v3627, %v3621
  %v3660 = vmul.f32 %v3627, %v3622
  %v3661 = vpack.c.bf16 %v3630, %v3629
  %v3662 = vpack.c.bf16 %v3632, %v3631
  %v3663 = vpack.c.bf16 %v3634, %v3633
  %v3664 = vpack.c.bf16 %v3636, %v3635
  %v3665 = vpack.c.bf16 %v3638, %v3637
  %v3666 = vpack.c.bf16 %v3640, %v3639
  %v3667 = vpack.c.bf16 %v3642, %v3641
  %v3668 = vpack.c.bf16 %v3644, %v3643
  %v3669 = vpack.c.bf16 %v3646, %v3645
  %v3670 = vpack.c.bf16 %v3648, %v3647
  %v3671 = vpack.c.bf16 %v3650, %v3649
  %v3672 = vpack.c.bf16 %v3652, %v3651
  %v3673 = vpack.c.bf16 %v3654, %v3653
  %v3674 = vpack.c.bf16 %v3656, %v3655
  %v3675 = vpack.c.bf16 %v3658, %v3657
  %v3676 = vpack.c.bf16 %v3660, %v3659
  %v3693 = vunpack.c.l.b16 %v3661
  %v3694 = vunpack.c.h.b16 %v3661
  %v3695 = vunpack.c.l.b16 %v3662
  %v3696 = vunpack.c.h.b16 %v3662
  %v3697 = vunpack.c.l.b16 %v3663
  %v3698 = vunpack.c.h.b16 %v3663
  %v3699 = vunpack.c.l.b16 %v3664
  %v3700 = vunpack.c.h.b16 %v3664
  %v3701 = vunpack.c.l.b16 %v3665
  %v3702 = vunpack.c.h.b16 %v3665
  %v3703 = vunpack.c.l.b16 %v3666
  %v3704 = vunpack.c.h.b16 %v3666
  %v3705 = vunpack.c.l.b16 %v3667
  %v3706 = vunpack.c.h.b16 %v3667
  %v3707 = vunpack.c.l.b16 %v3668
  %v3708 = vunpack.c.h.b16 %v3668
  %v3709 = vunpack.c.l.b16 %v3669
  %v3710 = vunpack.c.h.b16 %v3669
  %v3711 = vunpack.c.l.b16 %v3670
  %v3712 = vunpack.c.h.b16 %v3670
  %v3713 = vunpack.c.l.b16 %v3671
  %v3714 = vunpack.c.h.b16 %v3671
  %v3715 = vunpack.c.l.b16 %v3672
  %v3716 = vunpack.c.h.b16 %v3672
  %v3717 = vunpack.c.l.b16 %v3673
  %v3718 = vunpack.c.h.b16 %v3673
  %v3719 = vunpack.c.l.b16 %v3674
  %v3720 = vunpack.c.h.b16 %v3674
  %v3721 = vunpack.c.l.b16 %v3675
  %v3722 = vunpack.c.h.b16 %v3675
  %v3723 = vunpack.c.l.b16 %v3676
  %v3724 = vunpack.c.h.b16 %v3676
  %v3725 = vpack.c.b16 %v3693, %v3693
  %v3726 = vpack.c.b16 %v3694, %v3694
  %v3727 = vpack.c.b16 %v3695, %v3695
  %v3728 = vpack.c.b16 %v3696, %v3696
  %v3729 = vpack.c.b16 %v3697, %v3697
  %v3730 = vpack.c.b16 %v3698, %v3698
  %v3731 = vpack.c.b16 %v3699, %v3699
  %v3732 = vpack.c.b16 %v3700, %v3700
  %v3733 = vpack.c.b16 %v3701, %v3701
  %v3734 = vpack.c.b16 %v3702, %v3702
  %v3735 = vpack.c.b16 %v3703, %v3703
  %v3736 = vpack.c.b16 %v3704, %v3704
  %v3737 = vpack.c.b16 %v3705, %v3705
  %v3738 = vpack.c.b16 %v3706, %v3706
  %v3739 = vpack.c.b16 %v3707, %v3707
  %v3740 = vpack.c.b16 %v3708, %v3708
  %v3741 = vpack.c.b16 %v3709, %v3709
  %v3742 = vpack.c.b16 %v3710, %v3710
  %v3743 = vpack.c.b16 %v3711, %v3711
  %v3744 = vpack.c.b16 %v3712, %v3712
  %v3745 = vpack.c.b16 %v3713, %v3713
  %v3746 = vpack.c.b16 %v3714, %v3714
  %v3747 = vpack.c.b16 %v3715, %v3715
  %v3748 = vpack.c.b16 %v3716, %v3716
  %v3749 = vpack.c.b16 %v3717, %v3717
  %v3750 = vpack.c.b16 %v3718, %v3718
  %v3751 = vpack.c.b16 %v3719, %v3719
  %v3752 = vpack.c.b16 %v3720, %v3720
  %v3753 = vpack.c.b16 %v3721, %v3721
  %v3754 = vpack.c.b16 %v3722, %v3722
  %v3755 = vpack.c.b16 %v3723, %v3723
  %v3756 = vpack.c.b16 %v3724, %v3724
  %3789 = vst [vmem:[#allocation4 + $0x100] sm:$0xf] %v3725
  %3790 = vst [vmem:[#allocation4 + $0x104] sm:$0xf] %v3726
  %3791 = vst [vmem:[#allocation4 + $0x108] sm:$0xf] %v3727
  %3792 = vst [vmem:[#allocation4 + $0x10c] sm:$0xf] %v3728
  %3793 = vst [vmem:[#allocation4 + $0x110] sm:$0xf] %v3729
  %3794 = vst [vmem:[#allocation4 + $0x114] sm:$0xf] %v3730
  %3795 = vst [vmem:[#allocation4 + $0x118] sm:$0xf] %v3731
  %3796 = vst [vmem:[#allocation4 + $0x11c] sm:$0xf] %v3732
  %3797 = vst [vmem:[#allocation4 + $0x120] sm:$0xf] %v3733
  %3798 = vst [vmem:[#allocation4 + $0x124] sm:$0xf] %v3734
  %3799 = vst [vmem:[#allocation4 + $0x128] sm:$0xf] %v3735
  %3800 = vst [vmem:[#allocation4 + $0x12c] sm:$0xf] %v3736
  %3801 = vst [vmem:[#allocation4 + $0x130] sm:$0xf] %v3737
  %3802 = vst [vmem:[#allocation4 + $0x134] sm:$0xf] %v3738
  %3803 = vst [vmem:[#allocation4 + $0x138] sm:$0xf] %v3739
  %3804 = vst [vmem:[#allocation4 + $0x13c] sm:$0xf] %v3740
  %3805 = vst [vmem:[#allocation4 + $0x140] sm:$0xf] %v3741
  %3806 = vst [vmem:[#allocation4 + $0x144] sm:$0xf] %v3742
  %3807 = vst [vmem:[#allocation4 + $0x148] sm:$0xf] %v3743
  %3808 = vst [vmem:[#allocation4 + $0x14c] sm:$0xf] %v3744
  %3809 = vst [vmem:[#allocation4 + $0x150] sm:$0xf] %v3745
  %3810 = vst [vmem:[#allocation4 + $0x154] sm:$0xf] %v3746
  %3811 = vst [vmem:[#allocation4 + $0x158] sm:$0xf] %v3747
  %3812 = vst [vmem:[#allocation4 + $0x15c] sm:$0xf] %v3748
  %3813 = vst [vmem:[#allocation4 + $0x160] sm:$0xf] %v3749
  %3814 = vst [vmem:[#allocation4 + $0x164] sm:$0xf] %v3750
  %3815 = vst [vmem:[#allocation4 + $0x168] sm:$0xf] %v3751
  %3816 = vst [vmem:[#allocation4 + $0x16c] sm:$0xf] %v3752
  %3817 = vst [vmem:[#allocation4 + $0x170] sm:$0xf] %v3753
  %3818 = vst [vmem:[#allocation4 + $0x174] sm:$0xf] %v3754
  %3819 = vst [vmem:[#allocation4 + $0x178] sm:$0xf] %v3755
  %3820 = vst [vmem:[#allocation4 + $0x17c] sm:$0xf] %v3756
  %v3821 = vld [vmem:[#allocation5] sm:$0xff]
  %v3822 = vld [vmem:[#allocation5 + $0x8] sm:$0xff]
  %v3823 = vld [vmem:[#allocation5 + $0x10] sm:$0xff]
  %v3824 = vld [vmem:[#allocation5 + $0x18] sm:$0xff]
  %v3825 = vld [vmem:[#allocation5 + $0x20] sm:$0xff]
  %v3826 = vld [vmem:[#allocation5 + $0x28] sm:$0xff]
  %v3827 = vld [vmem:[#allocation5 + $0x30] sm:$0xff]
  %v3828 = vld [vmem:[#allocation5 + $0x38] sm:$0xff]
  %v3829 = vld [vmem:[#allocation5 + $0x40] sm:$0xff]
  %v3830 = vld [vmem:[#allocation5 + $0x48] sm:$0xff]
  %v3831 = vld [vmem:[#allocation5 + $0x50] sm:$0xff]
  %v3832 = vld [vmem:[#allocation5 + $0x58] sm:$0xff]
  %v3833 = vld [vmem:[#allocation5 + $0x60] sm:$0xff]
  %v3834 = vld [vmem:[#allocation5 + $0x68] sm:$0xff]
  %v3835 = vld [vmem:[#allocation5 + $0x70] sm:$0xff]
  %v3836 = vld [vmem:[#allocation5 + $0x78] sm:$0xff]
  %v3837 = vld [vmem:[#allocation5 + $0x80] sm:$0xff]
  %v3838 = vld [vmem:[#allocation5 + $0x88] sm:$0xff]
  %v3839 = vld [vmem:[#allocation5 + $0x90] sm:$0xff]
  %v3840 = vld [vmem:[#allocation5 + $0x98] sm:$0xff]
  %v3841 = vld [vmem:[#allocation5 + $0xa0] sm:$0xff]
  %v3842 = vld [vmem:[#allocation5 + $0xa8] sm:$0xff]
  %v3843 = vld [vmem:[#allocation5 + $0xb0] sm:$0xff]
  %v3844 = vld [vmem:[#allocation5 + $0xb8] sm:$0xff]
  %v3845 = vld [vmem:[#allocation5 + $0xc0] sm:$0xff]
  %v3846 = vld [vmem:[#allocation5 + $0xc8] sm:$0xff]
  %v3847 = vld [vmem:[#allocation5 + $0xd0] sm:$0xff]
  %v3848 = vld [vmem:[#allocation5 + $0xd8] sm:$0xff]
  %v3849 = vld [vmem:[#allocation5 + $0xe0] sm:$0xff]
  %v3850 = vld [vmem:[#allocation5 + $0xe8] sm:$0xff]
  %v3851 = vld [vmem:[#allocation5 + $0xf0] sm:$0xff]
  %v3852 = vld [vmem:[#allocation5 + $0xf8] sm:$0xff]
  %v3853 = vld [vmem:[#allocation5 + $0x100] sm:$0xff]
  %v3854 = vld [vmem:[#allocation5 + $0x108] sm:$0xff]
  %v3855 = vld [vmem:[#allocation5 + $0x110] sm:$0xff]
  %v3856 = vld [vmem:[#allocation5 + $0x118] sm:$0xff]
  %v3857 = vld [vmem:[#allocation5 + $0x120] sm:$0xff]
  %v3858 = vld [vmem:[#allocation5 + $0x128] sm:$0xff]
  %v3859 = vld [vmem:[#allocation5 + $0x130] sm:$0xff]
  %v3860 = vld [vmem:[#allocation5 + $0x138] sm:$0xff]
  %v3861 = vld [vmem:[#allocation5 + $0x140] sm:$0xff]
  %v3862 = vld [vmem:[#allocation5 + $0x148] sm:$0xff]
  %v3863 = vld [vmem:[#allocation5 + $0x150] sm:$0xff]
  %v3864 = vld [vmem:[#allocation5 + $0x158] sm:$0xff]
  %v3865 = vld [vmem:[#allocation5 + $0x160] sm:$0xff]
  %v3866 = vld [vmem:[#allocation5 + $0x168] sm:$0xff]
  %v3867 = vld [vmem:[#allocation5 + $0x170] sm:$0xff]
  %v3868 = vld [vmem:[#allocation5 + $0x178] sm:$0xff]
  %v3869 = vld [vmem:[#allocation5 + $0x180] sm:$0xff]
  %v3870 = vld [vmem:[#allocation5 + $0x188] sm:$0xff]
  %v3871 = vld [vmem:[#allocation5 + $0x190] sm:$0xff]
  %v3872 = vld [vmem:[#allocation5 + $0x198] sm:$0xff]
  %v3873 = vld [vmem:[#allocation5 + $0x1a0] sm:$0xff]
  %v3874 = vld [vmem:[#allocation5 + $0x1a8] sm:$0xff]
  %v3875 = vld [vmem:[#allocation5 + $0x1b0] sm:$0xff]
  %v3876 = vld [vmem:[#allocation5 + $0x1b8] sm:$0xff]
  %v3877 = vld [vmem:[#allocation5 + $0x1c0] sm:$0xff]
  %v3878 = vld [vmem:[#allocation5 + $0x1c8] sm:$0xff]
  %v3879 = vld [vmem:[#allocation5 + $0x1d0] sm:$0xff]
  %v3880 = vld [vmem:[#allocation5 + $0x1d8] sm:$0xff]
  %v3881 = vld [vmem:[#allocation5 + $0x1e0] sm:$0xff]
  %v3882 = vld [vmem:[#allocation5 + $0x1e8] sm:$0xff]
  %v3883 = vld [vmem:[#allocation5 + $0x1f0] sm:$0xff]
  %v3884 = vld [vmem:[#allocation5 + $0x1f8] sm:$0xff]
  %v3885 = vld [vmem:[#allocation5 + $0x200] sm:$0xff]
  %v3886 = vld [vmem:[#allocation5 + $0x208] sm:$0xff]
  %v3887 = vld [vmem:[#allocation5 + $0x210] sm:$0xff]
  %v3888 = vld [vmem:[#allocation5 + $0x218] sm:$0xff]
  %v3889 = vld [vmem:[#allocation5 + $0x220] sm:$0xff]
  %v3890 = vld [vmem:[#allocation5 + $0x228] sm:$0xff]
  %v3891 = vld [vmem:[#allocation5 + $0x230] sm:$0xff]
  %v3892 = vld [vmem:[#allocation5 + $0x238] sm:$0xff]
  %v3893 = vld [vmem:[#allocation5 + $0x240] sm:$0xff]
  %v3894 = vld [vmem:[#allocation5 + $0x248] sm:$0xff]
  %v3895 = vld [vmem:[#allocation5 + $0x250] sm:$0xff]
  %v3896 = vld [vmem:[#allocation5 + $0x258] sm:$0xff]
  %v3897 = vld [vmem:[#allocation5 + $0x260] sm:$0xff]
  %v3898 = vld [vmem:[#allocation5 + $0x268] sm:$0xff]
  %v3899 = vld [vmem:[#allocation5 + $0x270] sm:$0xff]
  %v3900 = vld [vmem:[#allocation5 + $0x278] sm:$0xff]
  %v3901 = vld [vmem:[#allocation5 + $0x280] sm:$0xff]
  %v3902 = vld [vmem:[#allocation5 + $0x288] sm:$0xff]
  %v3903 = vld [vmem:[#allocation5 + $0x290] sm:$0xff]
  %v3904 = vld [vmem:[#allocation5 + $0x298] sm:$0xff]
  %v3905 = vld [vmem:[#allocation5 + $0x2a0] sm:$0xff]
  %v3906 = vld [vmem:[#allocation5 + $0x2a8] sm:$0xff]
  %v3907 = vld [vmem:[#allocation5 + $0x2b0] sm:$0xff]
  %v3908 = vld [vmem:[#allocation5 + $0x2b8] sm:$0xff]
  %v3909 = vld [vmem:[#allocation5 + $0x2c0] sm:$0xff]
  %v3910 = vld [vmem:[#allocation5 + $0x2c8] sm:$0xff]
  %v3911 = vld [vmem:[#allocation5 + $0x2d0] sm:$0xff]
  %v3912 = vld [vmem:[#allocation5 + $0x2d8] sm:$0xff]
  %v3913 = vld [vmem:[#allocation5 + $0x2e0] sm:$0xff]
  %v3914 = vld [vmem:[#allocation5 + $0x2e8] sm:$0xff]
  %v3915 = vld [vmem:[#allocation5 + $0x2f0] sm:$0xff]
  %v3916 = vld [vmem:[#allocation5 + $0x2f8] sm:$0xff]
  %v3917 = vld [vmem:[#allocation4] sm:$0xf]
  %v3918 = vld [vmem:[#allocation4 + $0x4] sm:$0xf]
  %v3919 = vld [vmem:[#allocation4 + $0x8] sm:$0xf]
  %v3920 = vld [vmem:[#allocation4 + $0xc] sm:$0xf]
  %v3921 = vld [vmem:[#allocation4 + $0x10] sm:$0xf]
  %v3922 = vld [vmem:[#allocation4 + $0x14] sm:$0xf]
  %v3923 = vld [vmem:[#allocation4 + $0x18] sm:$0xf]
  %v3924 = vld [vmem:[#allocation4 + $0x1c] sm:$0xf]
  %v3925 = vld [vmem:[#allocation4 + $0x20] sm:$0xf]
  %v3926 = vld [vmem:[#allocation4 + $0x24] sm:$0xf]
  %v3927 = vld [vmem:[#allocation4 + $0x28] sm:$0xf]
  %v3928 = vld [vmem:[#allocation4 + $0x2c] sm:$0xf]
  %v3929 = vld [vmem:[#allocation4 + $0x30] sm:$0xf]
  %v3930 = vld [vmem:[#allocation4 + $0x34] sm:$0xf]
  %v3931 = vld [vmem:[#allocation4 + $0x38] sm:$0xf]
  %v3932 = vld [vmem:[#allocation4 + $0x3c] sm:$0xf]
  %v3933 = vld [vmem:[#allocation4 + $0x40] sm:$0xf]
  %v3934 = vld [vmem:[#allocation4 + $0x44] sm:$0xf]
  %v3935 = vld [vmem:[#allocation4 + $0x48] sm:$0xf]
  %v3936 = vld [vmem:[#allocation4 + $0x4c] sm:$0xf]
  %v3937 = vld [vmem:[#allocation4 + $0x50] sm:$0xf]
  %v3938 = vld [vmem:[#allocation4 + $0x54] sm:$0xf]
  %v3939 = vld [vmem:[#allocation4 + $0x58] sm:$0xf]
  %v3940 = vld [vmem:[#allocation4 + $0x5c] sm:$0xf]
  %v3941 = vld [vmem:[#allocation4 + $0x60] sm:$0xf]
  %v3942 = vld [vmem:[#allocation4 + $0x64] sm:$0xf]
  %v3943 = vld [vmem:[#allocation4 + $0x68] sm:$0xf]
  %v3944 = vld [vmem:[#allocation4 + $0x6c] sm:$0xf]
  %v3945 = vld [vmem:[#allocation4 + $0x70] sm:$0xf]
  %v3946 = vld [vmem:[#allocation4 + $0x74] sm:$0xf]
  %v3947 = vld [vmem:[#allocation4 + $0x78] sm:$0xf]
  %v3948 = vld [vmem:[#allocation4 + $0x7c] sm:$0xf]
  %v3949 = vld [vmem:[#allocation4 + $0x80] sm:$0xf]
  %v3950 = vld [vmem:[#allocation4 + $0x84] sm:$0xf]
  %v3951 = vld [vmem:[#allocation4 + $0x88] sm:$0xf]
  %v3952 = vld [vmem:[#allocation4 + $0x8c] sm:$0xf]
  %v3953 = vld [vmem:[#allocation4 + $0x90] sm:$0xf]
  %v3954 = vld [vmem:[#allocation4 + $0x94] sm:$0xf]
  %v3955 = vld [vmem:[#allocation4 + $0x98] sm:$0xf]
  %v3956 = vld [vmem:[#allocation4 + $0x9c] sm:$0xf]
  %v3957 = vld [vmem:[#allocation4 + $0xa0] sm:$0xf]
  %v3958 = vld [vmem:[#allocation4 + $0xa4] sm:$0xf]
  %v3959 = vld [vmem:[#allocation4 + $0xa8] sm:$0xf]
  %v3960 = vld [vmem:[#allocation4 + $0xac] sm:$0xf]
  %v3961 = vld [vmem:[#allocation4 + $0xb0] sm:$0xf]
  %v3962 = vld [vmem:[#allocation4 + $0xb4] sm:$0xf]
  %v3963 = vld [vmem:[#allocation4 + $0xb8] sm:$0xf]
  %v3964 = vld [vmem:[#allocation4 + $0xbc] sm:$0xf]
  %v3965 = vld [vmem:[#allocation4 + $0xc0] sm:$0xf]
  %v3966 = vld [vmem:[#allocation4 + $0xc4] sm:$0xf]
  %v3967 = vld [vmem:[#allocation4 + $0xc8] sm:$0xf]
  %v3968 = vld [vmem:[#allocation4 + $0xcc] sm:$0xf]
  %v3969 = vld [vmem:[#allocation4 + $0xd0] sm:$0xf]
  %v3970 = vld [vmem:[#allocation4 + $0xd4] sm:$0xf]
  %v3971 = vld [vmem:[#allocation4 + $0xd8] sm:$0xf]
  %v3972 = vld [vmem:[#allocation4 + $0xdc] sm:$0xf]
  %v3973 = vld [vmem:[#allocation4 + $0xe0] sm:$0xf]
  %v3974 = vld [vmem:[#allocation4 + $0xe4] sm:$0xf]
  %v3975 = vld [vmem:[#allocation4 + $0xe8] sm:$0xf]
  %v3976 = vld [vmem:[#allocation4 + $0xec] sm:$0xf]
  %v3977 = vld [vmem:[#allocation4 + $0xf0] sm:$0xf]
  %v3978 = vld [vmem:[#allocation4 + $0xf4] sm:$0xf]
  %v3979 = vld [vmem:[#allocation4 + $0xf8] sm:$0xf]
  %v3980 = vld [vmem:[#allocation4 + $0xfc] sm:$0xf]
  %v3981 = vld [vmem:[#allocation4 + $0x100] sm:$0xf]
  %v3982 = vld [vmem:[#allocation4 + $0x104] sm:$0xf]
  %v3983 = vld [vmem:[#allocation4 + $0x108] sm:$0xf]
  %v3984 = vld [vmem:[#allocation4 + $0x10c] sm:$0xf]
  %v3985 = vld [vmem:[#allocation4 + $0x110] sm:$0xf]
  %v3986 = vld [vmem:[#allocation4 + $0x114] sm:$0xf]
  %v3987 = vld [vmem:[#allocation4 + $0x118] sm:$0xf]
  %v3988 = vld [vmem:[#allocation4 + $0x11c] sm:$0xf]
  %v3989 = vld [vmem:[#allocation4 + $0x120] sm:$0xf]
  %v3990 = vld [vmem:[#allocation4 + $0x124] sm:$0xf]
  %v3991 = vld [vmem:[#allocation4 + $0x128] sm:$0xf]
  %v3992 = vld [vmem:[#allocation4 + $0x12c] sm:$0xf]
  %v3993 = vld [vmem:[#allocation4 + $0x130] sm:$0xf]
  %v3994 = vld [vmem:[#allocation4 + $0x134] sm:$0xf]
  %v3995 = vld [vmem:[#allocation4 + $0x138] sm:$0xf]
  %v3996 = vld [vmem:[#allocation4 + $0x13c] sm:$0xf]
  %v3997 = vld [vmem:[#allocation4 + $0x140] sm:$0xf]
  %v3998 = vld [vmem:[#allocation4 + $0x144] sm:$0xf]
  %v3999 = vld [vmem:[#allocation4 + $0x148] sm:$0xf]
  %v4000 = vld [vmem:[#allocation4 + $0x14c] sm:$0xf]
  %v4001 = vld [vmem:[#allocation4 + $0x150] sm:$0xf]
  %v4002 = vld [vmem:[#allocation4 + $0x154] sm:$0xf]
  %v4003 = vld [vmem:[#allocation4 + $0x158] sm:$0xf]
  %v4004 = vld [vmem:[#allocation4 + $0x15c] sm:$0xf]
  %v4005 = vld [vmem:[#allocation4 + $0x160] sm:$0xf]
  %v4006 = vld [vmem:[#allocation4 + $0x164] sm:$0xf]
  %v4007 = vld [vmem:[#allocation4 + $0x168] sm:$0xf]
  %v4008 = vld [vmem:[#allocation4 + $0x16c] sm:$0xf]
  %v4009 = vld [vmem:[#allocation4 + $0x170] sm:$0xf]
  %v4010 = vld [vmem:[#allocation4 + $0x174] sm:$0xf]
  %v4011 = vld [vmem:[#allocation4 + $0x178] sm:$0xf]
  %v4012 = vld [vmem:[#allocation4 + $0x17c] sm:$0xf]
  %v4109 = vunpack.c.l.b16 %v3821
  %v4110 = vunpack.c.h.b16 %v3821
  %v4111 = vunpack.c.l.b16 %v3822
  %v4112 = vunpack.c.h.b16 %v3822
  %v4113 = vunpack.c.l.b16 %v3823
  %v4114 = vunpack.c.h.b16 %v3823
  %v4115 = vunpack.c.l.b16 %v3824
  %v4116 = vunpack.c.h.b16 %v3824
  %v4117 = vunpack.c.l.b16 %v3825
  %v4118 = vunpack.c.h.b16 %v3825
  %v4119 = vunpack.c.l.b16 %v3826
  %v4120 = vunpack.c.h.b16 %v3826
  %v4121 = vunpack.c.l.b16 %v3827
  %v4122 = vunpack.c.h.b16 %v3827
  %v4123 = vunpack.c.l.b16 %v3828
  %v4124 = vunpack.c.h.b16 %v3828
  %v4125 = vunpack.c.l.b16 %v3829
  %v4126 = vunpack.c.h.b16 %v3829
  %v4127 = vunpack.c.l.b16 %v3830
  %v4128 = vunpack.c.h.b16 %v3830
  %v4129 = vunpack.c.l.b16 %v3831
  %v4130 = vunpack.c.h.b16 %v3831
  %v4131 = vunpack.c.l.b16 %v3832
  %v4132 = vunpack.c.h.b16 %v3832
  %v4133 = vunpack.c.l.b16 %v3833
  %v4134 = vunpack.c.h.b16 %v3833
  %v4135 = vunpack.c.l.b16 %v3834
  %v4136 = vunpack.c.h.b16 %v3834
  %v4137 = vunpack.c.l.b16 %v3835
  %v4138 = vunpack.c.h.b16 %v3835
  %v4139 = vunpack.c.l.b16 %v3836
  %v4140 = vunpack.c.h.b16 %v3836
  %v4141 = vunpack.c.l.b16 %v3837
  %v4142 = vunpack.c.h.b16 %v3837
  %v4143 = vunpack.c.l.b16 %v3838
  %v4144 = vunpack.c.h.b16 %v3838
  %v4145 = vunpack.c.l.b16 %v3839
  %v4146 = vunpack.c.h.b16 %v3839
  %v4147 = vunpack.c.l.b16 %v3840
  %v4148 = vunpack.c.h.b16 %v3840
  %v4149 = vunpack.c.l.b16 %v3841
  %v4150 = vunpack.c.h.b16 %v3841
  %v4151 = vunpack.c.l.b16 %v3842
  %v4152 = vunpack.c.h.b16 %v3842
  %v4153 = vunpack.c.l.b16 %v3843
  %v4154 = vunpack.c.h.b16 %v3843
  %v4155 = vunpack.c.l.b16 %v3844
  %v4156 = vunpack.c.h.b16 %v3844
  %v4157 = vunpack.c.l.b16 %v3845
  %v4158 = vunpack.c.h.b16 %v3845
  %v4159 = vunpack.c.l.b16 %v3846
  %v4160 = vunpack.c.h.b16 %v3846
  %v4161 = vunpack.c.l.b16 %v3847
  %v4162 = vunpack.c.h.b16 %v3847
  %v4163 = vunpack.c.l.b16 %v3848
  %v4164 = vunpack.c.h.b16 %v3848
  %v4165 = vunpack.c.l.b16 %v3849
  %v4166 = vunpack.c.h.b16 %v3849
  %v4167 = vunpack.c.l.b16 %v3850
  %v4168 = vunpack.c.h.b16 %v3850
  %v4169 = vunpack.c.l.b16 %v3851
  %v4170 = vunpack.c.h.b16 %v3851
  %v4171 = vunpack.c.l.b16 %v3852
  %v4172 = vunpack.c.h.b16 %v3852
  %v4173 = vunpack.c.l.b16 %v3853
  %v4174 = vunpack.c.h.b16 %v3853
  %v4175 = vunpack.c.l.b16 %v3854
  %v4176 = vunpack.c.h.b16 %v3854
  %v4177 = vunpack.c.l.b16 %v3855
  %v4178 = vunpack.c.h.b16 %v3855
  %v4179 = vunpack.c.l.b16 %v3856
  %v4180 = vunpack.c.h.b16 %v3856
  %v4181 = vunpack.c.l.b16 %v3857
  %v4182 = vunpack.c.h.b16 %v3857
  %v4183 = vunpack.c.l.b16 %v3858
  %v4184 = vunpack.c.h.b16 %v3858
  %v4185 = vunpack.c.l.b16 %v3859
  %v4186 = vunpack.c.h.b16 %v3859
  %v4187 = vunpack.c.l.b16 %v3860
  %v4188 = vunpack.c.h.b16 %v3860
  %v4189 = vunpack.c.l.b16 %v3861
  %v4190 = vunpack.c.h.b16 %v3861
  %v4191 = vunpack.c.l.b16 %v3862
  %v4192 = vunpack.c.h.b16 %v3862
  %v4193 = vunpack.c.l.b16 %v3863
  %v4194 = vunpack.c.h.b16 %v3863
  %v4195 = vunpack.c.l.b16 %v3864
  %v4196 = vunpack.c.h.b16 %v3864
  %v4197 = vunpack.c.l.b16 %v3865
  %v4198 = vunpack.c.h.b16 %v3865
  %v4199 = vunpack.c.l.b16 %v3866
  %v4200 = vunpack.c.h.b16 %v3866
  %v4201 = vunpack.c.l.b16 %v3867
  %v4202 = vunpack.c.h.b16 %v3867
  %v4203 = vunpack.c.l.b16 %v3868
  %v4204 = vunpack.c.h.b16 %v3868
  %v4205 = vunpack.c.l.b16 %v3869
  %v4206 = vunpack.c.h.b16 %v3869
  %v4207 = vunpack.c.l.b16 %v3870
  %v4208 = vunpack.c.h.b16 %v3870
  %v4209 = vunpack.c.l.b16 %v3871
  %v4210 = vunpack.c.h.b16 %v3871
  %v4211 = vunpack.c.l.b16 %v3872
  %v4212 = vunpack.c.h.b16 %v3872
  %v4213 = vunpack.c.l.b16 %v3873
  %v4214 = vunpack.c.h.b16 %v3873
  %v4215 = vunpack.c.l.b16 %v3874
  %v4216 = vunpack.c.h.b16 %v3874
  %v4217 = vunpack.c.l.b16 %v3875
  %v4218 = vunpack.c.h.b16 %v3875
  %v4219 = vunpack.c.l.b16 %v3876
  %v4220 = vunpack.c.h.b16 %v3876
  %v4221 = vunpack.c.l.b16 %v3877
  %v4222 = vunpack.c.h.b16 %v3877
  %v4223 = vunpack.c.l.b16 %v3878
  %v4224 = vunpack.c.h.b16 %v3878
  %v4225 = vunpack.c.l.b16 %v3879
  %v4226 = vunpack.c.h.b16 %v3879
  %v4227 = vunpack.c.l.b16 %v3880
  %v4228 = vunpack.c.h.b16 %v3880
  %v4229 = vunpack.c.l.b16 %v3881
  %v4230 = vunpack.c.h.b16 %v3881
  %v4231 = vunpack.c.l.b16 %v3882
  %v4232 = vunpack.c.h.b16 %v3882
  %v4233 = vunpack.c.l.b16 %v3883
  %v4234 = vunpack.c.h.b16 %v3883
  %v4235 = vunpack.c.l.b16 %v3884
  %v4236 = vunpack.c.h.b16 %v3884
  %v4237 = vunpack.c.l.b16 %v3885
  %v4238 = vunpack.c.h.b16 %v3885
  %v4239 = vunpack.c.l.b16 %v3886
  %v4240 = vunpack.c.h.b16 %v3886
  %v4241 = vunpack.c.l.b16 %v3887
  %v4242 = vunpack.c.h.b16 %v3887
  %v4243 = vunpack.c.l.b16 %v3888
  %v4244 = vunpack.c.h.b16 %v3888
  %v4245 = vunpack.c.l.b16 %v3889
  %v4246 = vunpack.c.h.b16 %v3889
  %v4247 = vunpack.c.l.b16 %v3890
  %v4248 = vunpack.c.h.b16 %v3890
  %v4249 = vunpack.c.l.b16 %v3891
  %v4250 = vunpack.c.h.b16 %v3891
  %v4251 = vunpack.c.l.b16 %v3892
  %v4252 = vunpack.c.h.b16 %v3892
  %v4253 = vunpack.c.l.b16 %v3893
  %v4254 = vunpack.c.h.b16 %v3893
  %v4255 = vunpack.c.l.b16 %v3894
  %v4256 = vunpack.c.h.b16 %v3894
  %v4257 = vunpack.c.l.b16 %v3895
  %v4258 = vunpack.c.h.b16 %v3895
  %v4259 = vunpack.c.l.b16 %v3896
  %v4260 = vunpack.c.h.b16 %v3896
  %v4261 = vunpack.c.l.b16 %v3897
  %v4262 = vunpack.c.h.b16 %v3897
  %v4263 = vunpack.c.l.b16 %v3898
  %v4264 = vunpack.c.h.b16 %v3898
  %v4265 = vunpack.c.l.b16 %v3899
  %v4266 = vunpack.c.h.b16 %v3899
  %v4267 = vunpack.c.l.b16 %v3900
  %v4268 = vunpack.c.h.b16 %v3900
  %v4269 = vunpack.c.l.b16 %v3901
  %v4270 = vunpack.c.h.b16 %v3901
  %v4271 = vunpack.c.l.b16 %v3902
  %v4272 = vunpack.c.h.b16 %v3902
  %v4273 = vunpack.c.l.b16 %v3903
  %v4274 = vunpack.c.h.b16 %v3903
  %v4275 = vunpack.c.l.b16 %v3904
  %v4276 = vunpack.c.h.b16 %v3904
  %v4277 = vunpack.c.l.b16 %v3905
  %v4278 = vunpack.c.h.b16 %v3905
  %v4279 = vunpack.c.l.b16 %v3906
  %v4280 = vunpack.c.h.b16 %v3906
  %v4281 = vunpack.c.l.b16 %v3907
  %v4282 = vunpack.c.h.b16 %v3907
  %v4283 = vunpack.c.l.b16 %v3908
  %v4284 = vunpack.c.h.b16 %v3908
  %v4285 = vunpack.c.l.b16 %v3909
  %v4286 = vunpack.c.h.b16 %v3909
  %v4287 = vunpack.c.l.b16 %v3910
  %v4288 = vunpack.c.h.b16 %v3910
  %v4289 = vunpack.c.l.b16 %v3911
  %v4290 = vunpack.c.h.b16 %v3911
  %v4291 = vunpack.c.l.b16 %v3912
  %v4292 = vunpack.c.h.b16 %v3912
  %v4293 = vunpack.c.l.b16 %v3913
  %v4294 = vunpack.c.h.b16 %v3913
  %v4295 = vunpack.c.l.b16 %v3914
  %v4296 = vunpack.c.h.b16 %v3914
  %v4297 = vunpack.c.l.b16 %v3915
  %v4298 = vunpack.c.h.b16 %v3915
  %v4299 = vunpack.c.l.b16 %v3916
  %v4300 = vunpack.c.h.b16 %v3916
  %v4301 = vpack.c.b16 %v4115, %v4109
  %v4302 = vpack.c.b16 %v4116, %v4110
  %v4303 = vpack.c.b16 %v4117, %v4111
  %v4304 = vpack.c.b16 %v4118, %v4112
  %v4305 = vpack.c.b16 %v4119, %v4113
  %v4306 = vpack.c.b16 %v4120, %v4114
  %v4307 = vpack.c.b16 %v4127, %v4121
  %v4308 = vpack.c.b16 %v4128, %v4122
  %v4309 = vpack.c.b16 %v4129, %v4123
  %v4310 = vpack.c.b16 %v4130, %v4124
  %v4311 = vpack.c.b16 %v4131, %v4125
  %v4312 = vpack.c.b16 %v4132, %v4126
  %v4313 = vpack.c.b16 %v4139, %v4133
  %v4314 = vpack.c.b16 %v4140, %v4134
  %v4315 = vpack.c.b16 %v4141, %v4135
  %v4316 = vpack.c.b16 %v4142, %v4136
  %v4317 = vpack.c.b16 %v4143, %v4137
  %v4318 = vpack.c.b16 %v4144, %v4138
  %v4319 = vpack.c.b16 %v4151, %v4145
  %v4320 = vpack.c.b16 %v4152, %v4146
  %v4321 = vpack.c.b16 %v4153, %v4147
  %v4322 = vpack.c.b16 %v4154, %v4148
  %v4323 = vpack.c.b16 %v4155, %v4149
  %v4324 = vpack.c.b16 %v4156, %v4150
  %v4325 = vpack.c.b16 %v4163, %v4157
  %v4326 = vpack.c.b16 %v4164, %v4158
  %v4327 = vpack.c.b16 %v4165, %v4159
  %v4328 = vpack.c.b16 %v4166, %v4160
  %v4329 = vpack.c.b16 %v4167, %v4161
  %v4330 = vpack.c.b16 %v4168, %v4162
  %v4331 = vpack.c.b16 %v4175, %v4169
  %v4332 = vpack.c.b16 %v4176, %v4170
  %v4333 = vpack.c.b16 %v4177, %v4171
  %v4334 = vpack.c.b16 %v4178, %v4172
  %v4335 = vpack.c.b16 %v4179, %v4173
  %v4336 = vpack.c.b16 %v4180, %v4174
  %v4337 = vpack.c.b16 %v4187, %v4181
  %v4338 = vpack.c.b16 %v4188, %v4182
  %v4339 = vpack.c.b16 %v4189, %v4183
  %v4340 = vpack.c.b16 %v4190, %v4184
  %v4341 = vpack.c.b16 %v4191, %v4185
  %v4342 = vpack.c.b16 %v4192, %v4186
  %v4343 = vpack.c.b16 %v4199, %v4193
  %v4344 = vpack.c.b16 %v4200, %v4194
  %v4345 = vpack.c.b16 %v4201, %v4195
  %v4346 = vpack.c.b16 %v4202, %v4196
  %v4347 = vpack.c.b16 %v4203, %v4197
  %v4348 = vpack.c.b16 %v4204, %v4198
  %v4349 = vpack.c.b16 %v4211, %v4205
  %v4350 = vpack.c.b16 %v4212, %v4206
  %v4351 = vpack.c.b16 %v4213, %v4207
  %v4352 = vpack.c.b16 %v4214, %v4208
  %v4353 = vpack.c.b16 %v4215, %v4209
  %v4354 = vpack.c.b16 %v4216, %v4210
  %v4355 = vpack.c.b16 %v4223, %v4217
  %v4356 = vpack.c.b16 %v4224, %v4218
  %v4357 = vpack.c.b16 %v4225, %v4219
  %v4358 = vpack.c.b16 %v4226, %v4220
  %v4359 = vpack.c.b16 %v4227, %v4221
  %v4360 = vpack.c.b16 %v4228, %v4222
  %v4361 = vpack.c.b16 %v4235, %v4229
  %v4362 = vpack.c.b16 %v4236, %v4230
  %v4363 = vpack.c.b16 %v4237, %v4231
  %v4364 = vpack.c.b16 %v4238, %v4232
  %v4365 = vpack.c.b16 %v4239, %v4233
  %v4366 = vpack.c.b16 %v4240, %v4234
  %v4367 = vpack.c.b16 %v4247, %v4241
  %v4368 = vpack.c.b16 %v4248, %v4242
  %v4369 = vpack.c.b16 %v4249, %v4243
  %v4370 = vpack.c.b16 %v4250, %v4244
  %v4371 = vpack.c.b16 %v4251, %v4245
  %v4372 = vpack.c.b16 %v4252, %v4246
  %v4373 = vpack.c.b16 %v4259, %v4253
  %v4374 = vpack.c.b16 %v4260, %v4254
  %v4375 = vpack.c.b16 %v4261, %v4255
  %v4376 = vpack.c.b16 %v4262, %v4256
  %v4377 = vpack.c.b16 %v4263, %v4257
  %v4378 = vpack.c.b16 %v4264, %v4258
  %v4379 = vpack.c.b16 %v4271, %v4265
  %v4380 = vpack.c.b16 %v4272, %v4266
  %v4381 = vpack.c.b16 %v4273, %v4267
  %v4382 = vpack.c.b16 %v4274, %v4268
  %v4383 = vpack.c.b16 %v4275, %v4269
  %v4384 = vpack.c.b16 %v4276, %v4270
  %v4385 = vpack.c.b16 %v4283, %v4277
  %v4386 = vpack.c.b16 %v4284, %v4278
  %v4387 = vpack.c.b16 %v4285, %v4279
  %v4388 = vpack.c.b16 %v4286, %v4280
  %v4389 = vpack.c.b16 %v4287, %v4281
  %v4390 = vpack.c.b16 %v4288, %v4282
  %v4391 = vpack.c.b16 %v4295, %v4289
  %v4392 = vpack.c.b16 %v4296, %v4290
  %v4393 = vpack.c.b16 %v4297, %v4291
  %v4394 = vpack.c.b16 %v4298, %v4292
  %v4395 = vpack.c.b16 %v4299, %v4293
  %v4396 = vpack.c.b16 %v4300, %v4294
  %v4589 = vunpack.c.l.b16 %v3917
  %v4590 = vunpack.c.l.b16 %v3918
  %v4591 = vunpack.c.l.b16 %v3919
  %v4592 = vunpack.c.l.b16 %v3920
  %v4593 = vunpack.c.l.b16 %v3921
  %v4594 = vunpack.c.l.b16 %v3922
  %v4595 = vunpack.c.l.b16 %v3923
  %v4596 = vunpack.c.l.b16 %v3924
  %v4597 = vunpack.c.l.b16 %v3925
  %v4598 = vunpack.c.l.b16 %v3926
  %v4599 = vunpack.c.l.b16 %v3927
  %v4600 = vunpack.c.l.b16 %v3928
  %v4601 = vunpack.c.l.b16 %v3929
  %v4602 = vunpack.c.l.b16 %v3930
  %v4603 = vunpack.c.l.b16 %v3931
  %v4604 = vunpack.c.l.b16 %v3932
  %v4605 = vunpack.c.l.b16 %v3933
  %v4606 = vunpack.c.l.b16 %v3934
  %v4607 = vunpack.c.l.b16 %v3935
  %v4608 = vunpack.c.l.b16 %v3936
  %v4609 = vunpack.c.l.b16 %v3937
  %v4610 = vunpack.c.l.b16 %v3938
  %v4611 = vunpack.c.l.b16 %v3939
  %v4612 = vunpack.c.l.b16 %v3940
  %v4613 = vunpack.c.l.b16 %v3941
  %v4614 = vunpack.c.l.b16 %v3942
  %v4615 = vunpack.c.l.b16 %v3943
  %v4616 = vunpack.c.l.b16 %v3944
  %v4617 = vunpack.c.l.b16 %v3945
  %v4618 = vunpack.c.l.b16 %v3946
  %v4619 = vunpack.c.l.b16 %v3947
  %v4620 = vunpack.c.l.b16 %v3948
  %v4621 = vunpack.c.l.b16 %v3949
  %v4622 = vunpack.c.l.b16 %v3950
  %v4623 = vunpack.c.l.b16 %v3951
  %v4624 = vunpack.c.l.b16 %v3952
  %v4625 = vunpack.c.l.b16 %v3953
  %v4626 = vunpack.c.l.b16 %v3954
  %v4627 = vunpack.c.l.b16 %v3955
  %v4628 = vunpack.c.l.b16 %v3956
  %v4629 = vunpack.c.l.b16 %v3957
  %v4630 = vunpack.c.l.b16 %v3958
  %v4631 = vunpack.c.l.b16 %v3959
  %v4632 = vunpack.c.l.b16 %v3960
  %v4633 = vunpack.c.l.b16 %v3961
  %v4634 = vunpack.c.l.b16 %v3962
  %v4635 = vunpack.c.l.b16 %v3963
  %v4636 = vunpack.c.l.b16 %v3964
  %v4637 = vunpack.c.l.b16 %v3965
  %v4638 = vunpack.c.l.b16 %v3966
  %v4639 = vunpack.c.l.b16 %v3967
  %v4640 = vunpack.c.l.b16 %v3968
  %v4641 = vunpack.c.l.b16 %v3969
  %v4642 = vunpack.c.l.b16 %v3970
  %v4643 = vunpack.c.l.b16 %v3971
  %v4644 = vunpack.c.l.b16 %v3972
  %v4645 = vunpack.c.l.b16 %v3973
  %v4646 = vunpack.c.l.b16 %v3974
  %v4647 = vunpack.c.l.b16 %v3975
  %v4648 = vunpack.c.l.b16 %v3976
  %v4649 = vunpack.c.l.b16 %v3977
  %v4650 = vunpack.c.l.b16 %v3978
  %v4651 = vunpack.c.l.b16 %v3979
  %v4652 = vunpack.c.l.b16 %v3980
  %v4653 = vunpack.c.l.b16 %v3981
  %v4654 = vunpack.c.l.b16 %v3982
  %v4655 = vunpack.c.l.b16 %v3983
  %v4656 = vunpack.c.l.b16 %v3984
  %v4657 = vunpack.c.l.b16 %v3985
  %v4658 = vunpack.c.l.b16 %v3986
  %v4659 = vunpack.c.l.b16 %v3987
  %v4660 = vunpack.c.l.b16 %v3988
  %v4661 = vunpack.c.l.b16 %v3989
  %v4662 = vunpack.c.l.b16 %v3990
  %v4663 = vunpack.c.l.b16 %v3991
  %v4664 = vunpack.c.l.b16 %v3992
  %v4665 = vunpack.c.l.b16 %v3993
  %v4666 = vunpack.c.l.b16 %v3994
  %v4667 = vunpack.c.l.b16 %v3995
  %v4668 = vunpack.c.l.b16 %v3996
  %v4669 = vunpack.c.l.b16 %v3997
  %v4670 = vunpack.c.l.b16 %v3998
  %v4671 = vunpack.c.l.b16 %v3999
  %v4672 = vunpack.c.l.b16 %v4000
  %v4673 = vunpack.c.l.b16 %v4001
  %v4674 = vunpack.c.l.b16 %v4002
  %v4675 = vunpack.c.l.b16 %v4003
  %v4676 = vunpack.c.l.b16 %v4004
  %v4677 = vunpack.c.l.b16 %v4005
  %v4678 = vunpack.c.l.b16 %v4006
  %v4679 = vunpack.c.l.b16 %v4007
  %v4680 = vunpack.c.l.b16 %v4008
  %v4681 = vunpack.c.l.b16 %v4009
  %v4682 = vunpack.c.l.b16 %v4010
  %v4683 = vunpack.c.l.b16 %v4011
  %v4684 = vunpack.c.l.b16 %v4012
  %v4685 = vpack.c.b16 %v4590, %v4589
  %v4686 = vpack.c.b16 %v4592, %v4591
  %v4687 = vpack.c.b16 %v4594, %v4593
  %v4688 = vpack.c.b16 %v4596, %v4595
  %v4689 = vpack.c.b16 %v4598, %v4597
  %v4690 = vpack.c.b16 %v4600, %v4599
  %v4691 = vpack.c.b16 %v4602, %v4601
  %v4692 = vpack.c.b16 %v4604, %v4603
  %v4693 = vpack.c.b16 %v4606, %v4605
  %v4694 = vpack.c.b16 %v4608, %v4607
  %v4695 = vpack.c.b16 %v4610, %v4609
  %v4696 = vpack.c.b16 %v4612, %v4611
  %v4697 = vpack.c.b16 %v4614, %v4613
  %v4698 = vpack.c.b16 %v4616, %v4615
  %v4699 = vpack.c.b16 %v4618, %v4617
  %v4700 = vpack.c.b16 %v4620, %v4619
  %v4701 = vpack.c.b16 %v4622, %v4621
  %v4702 = vpack.c.b16 %v4624, %v4623
  %v4703 = vpack.c.b16 %v4626, %v4625
  %v4704 = vpack.c.b16 %v4628, %v4627
  %v4705 = vpack.c.b16 %v4630, %v4629
  %v4706 = vpack.c.b16 %v4632, %v4631
  %v4707 = vpack.c.b16 %v4634, %v4633
  %v4708 = vpack.c.b16 %v4636, %v4635
  %v4709 = vpack.c.b16 %v4638, %v4637
  %v4710 = vpack.c.b16 %v4640, %v4639
  %v4711 = vpack.c.b16 %v4642, %v4641
  %v4712 = vpack.c.b16 %v4644, %v4643
  %v4713 = vpack.c.b16 %v4646, %v4645
  %v4714 = vpack.c.b16 %v4648, %v4647
  %v4715 = vpack.c.b16 %v4650, %v4649
  %v4716 = vpack.c.b16 %v4652, %v4651
  %v4717 = vpack.c.b16 %v4654, %v4653
  %v4718 = vpack.c.b16 %v4656, %v4655
  %v4719 = vpack.c.b16 %v4658, %v4657
  %v4720 = vpack.c.b16 %v4660, %v4659
  %v4721 = vpack.c.b16 %v4662, %v4661
  %v4722 = vpack.c.b16 %v4664, %v4663
  %v4723 = vpack.c.b16 %v4666, %v4665
  %v4724 = vpack.c.b16 %v4668, %v4667
  %v4725 = vpack.c.b16 %v4670, %v4669
  %v4726 = vpack.c.b16 %v4672, %v4671
  %v4727 = vpack.c.b16 %v4674, %v4673
  %v4728 = vpack.c.b16 %v4676, %v4675
  %v4729 = vpack.c.b16 %v4678, %v4677
  %v4730 = vpack.c.b16 %v4680, %v4679
  %v4731 = vpack.c.b16 %v4682, %v4681
  %v4732 = vpack.c.b16 %v4684, %v4683
  %4781 = vmatprep.subr.bf16.mxu0 0
  %4782 = vmatpush1.bf16.msra.mxu0 %v4692
  %4783 = vmatprep.subr.bf16.mxu0 0
  %4784 = vmatpush1.bf16.msra.mxu0 %v4691
  %4785 = vmatprep.subr.bf16.mxu0 0
  %4786 = vmatpush1.bf16.msra.mxu0 %v4690
  %4787 = vmatprep.subr.bf16.mxu0 0
  %4788 = vmatpush1.bf16.msra.mxu0 %v4689
  %4789 = vmatprep.subr.bf16.mxu0 0
  %4790 = vmatpush1.bf16.msra.mxu0 %v4688
  %4791 = vmatprep.subr.bf16.mxu0 0
  %4792 = vmatpush1.bf16.msra.mxu0 %v4687
  %4793 = vmatprep.subr.bf16.mxu0 0
  %4794 = vmatpush1.bf16.msra.mxu0 %v4686
  %4795 = vmatprep.subr.bf16.mxu0 0
  %4796 = vmatpush1.bf16.msra.mxu0 %v4685
  %4797 = vmatprep.subr.bf16.mxu0 0
  %4798 = vmatpush2.bf16.msra.mxu0 %v4700
  %4799 = vmatprep.subr.bf16.mxu0 0
  %4800 = vmatpush2.bf16.msra.mxu0 %v4699
  %4801 = vmatprep.subr.bf16.mxu0 0
  %4802 = vmatpush2.bf16.msra.mxu0 %v4698
  %4803 = vmatprep.subr.bf16.mxu0 0
  %4804 = vmatpush2.bf16.msra.mxu0 %v4697
  %4805 = vmatprep.subr.bf16.mxu0 0
  %4806 = vmatpush2.bf16.msra.mxu0 %v4696
  %4807 = vmatprep.subr.bf16.mxu0 0
  %4808 = vmatpush2.bf16.msra.mxu0 %v4695
  %4809 = vmatprep.subr.bf16.mxu0 0
  %4810 = vmatpush2.bf16.msra.mxu0 %v4694
  %4811 = vmatprep.subr.bf16.mxu0 0
  %4812 = vmatpush2.bf16.msra.mxu0 %v4693
  %4813 = vmatprep.mubr.bf16.mxu0 %v4302
  %4814 = vmatmul.mubr.bf16.gmra.mxu0 %v4301
  %v4815 = vpop.f32.mrf.mxu0
  %v4816 = vadd.f32 0.0, %v4815
  %v4817 = vpop.f32.mrf.mxu0
  %v4818 = vpop.f32.mrf.mxu0
  %v4819 = vadd.f32 0.0, %v4818
  %v4820 = vpop.f32.mrf.mxu0
  %4821 = vmatprep.mubr.bf16.mxu0 %v4308
  %4822 = vmatmul.mubr.bf16.gmra.mxu0 %v4307
  %v4823 = vpop.f32.mrf.mxu0
  %v4824 = vadd.f32 0.0, %v4823
  %v4825 = vpop.f32.mrf.mxu0
  %v4826 = vpop.f32.mrf.mxu0
  %v4827 = vadd.f32 0.0, %v4826
  %v4828 = vpop.f32.mrf.mxu0
  %4829 = vmatprep.mubr.bf16.mxu0 %v4314
  %4830 = vmatmul.mubr.bf16.gmra.mxu0 %v4313
  %v4831 = vpop.f32.mrf.mxu0
  %v4832 = vadd.f32 0.0, %v4831
  %v4833 = vpop.f32.mrf.mxu0
  %v4834 = vpop.f32.mrf.mxu0
  %v4835 = vadd.f32 0.0, %v4834
  %v4836 = vpop.f32.mrf.mxu0
  %4837 = vmatprep.mubr.bf16.mxu0 %v4320
  %4838 = vmatmul.mubr.bf16.gmra.mxu0 %v4319
  %v4839 = vpop.f32.mrf.mxu0
  %v4840 = vadd.f32 0.0, %v4839
  %v4841 = vpop.f32.mrf.mxu0
  %v4842 = vpop.f32.mrf.mxu0
  %v4843 = vadd.f32 0.0, %v4842
  %v4844 = vpop.f32.mrf.mxu0
  %4845 = vmatprep.mubr.bf16.mxu0 %v4326
  %4846 = vmatmul.mubr.bf16.gmra.mxu0 %v4325
  %v4847 = vpop.f32.mrf.mxu0
  %v4848 = vadd.f32 0.0, %v4847
  %v4849 = vpop.f32.mrf.mxu0
  %v4850 = vpop.f32.mrf.mxu0
  %v4851 = vadd.f32 0.0, %v4850
  %v4852 = vpop.f32.mrf.mxu0
  %4853 = vmatprep.mubr.bf16.mxu0 %v4332
  %4854 = vmatmul.mubr.bf16.gmra.mxu0 %v4331
  %v4855 = vpop.f32.mrf.mxu0
  %v4856 = vadd.f32 0.0, %v4855
  %v4857 = vpop.f32.mrf.mxu0
  %v4858 = vpop.f32.mrf.mxu0
  %v4859 = vadd.f32 0.0, %v4858
  %v4860 = vpop.f32.mrf.mxu0
  %4861 = vmatprep.mubr.bf16.mxu0 %v4338
  %4862 = vmatmul.mubr.bf16.gmra.mxu0 %v4337
  %v4863 = vpop.f32.mrf.mxu0
  %v4864 = vadd.f32 0.0, %v4863
  %v4865 = vpop.f32.mrf.mxu0
  %v4866 = vpop.f32.mrf.mxu0
  %v4867 = vadd.f32 0.0, %v4866
  %v4868 = vpop.f32.mrf.mxu0
  %4869 = vmatprep.mubr.bf16.mxu0 %v4344
  %4870 = vmatmul.mubr.bf16.gmra.mxu0 %v4343
  %v4871 = vpop.f32.mrf.mxu0
  %v4872 = vadd.f32 0.0, %v4871
  %v4873 = vpop.f32.mrf.mxu0
  %v4874 = vpop.f32.mrf.mxu0
  %v4875 = vadd.f32 0.0, %v4874
  %v4876 = vpop.f32.mrf.mxu0
  %4877 = vmatprep.mubr.bf16.mxu0 %v4350
  %4878 = vmatmul.mubr.bf16.gmra.mxu0 %v4349
  %v4879 = vpop.f32.mrf.mxu0
  %v4880 = vadd.f32 0.0, %v4879
  %v4881 = vpop.f32.mrf.mxu0
  %v4882 = vpop.f32.mrf.mxu0
  %v4883 = vadd.f32 0.0, %v4882
  %v4884 = vpop.f32.mrf.mxu0
  %4885 = vmatprep.mubr.bf16.mxu0 %v4356
  %4886 = vmatmul.mubr.bf16.gmra.mxu0 %v4355
  %v4887 = vpop.f32.mrf.mxu0
  %v4888 = vadd.f32 0.0, %v4887
  %v4889 = vpop.f32.mrf.mxu0
  %v4890 = vpop.f32.mrf.mxu0
  %v4891 = vadd.f32 0.0, %v4890
  %v4892 = vpop.f32.mrf.mxu0
  %4893 = vmatprep.mubr.bf16.mxu0 %v4362
  %4894 = vmatmul.mubr.bf16.gmra.mxu0 %v4361
  %v4895 = vpop.f32.mrf.mxu0
  %v4896 = vadd.f32 0.0, %v4895
  %v4897 = vpop.f32.mrf.mxu0
  %v4898 = vpop.f32.mrf.mxu0
  %v4899 = vadd.f32 0.0, %v4898
  %v4900 = vpop.f32.mrf.mxu0
  %4901 = vmatprep.mubr.bf16.mxu0 %v4368
  %4902 = vmatmul.mubr.bf16.gmra.mxu0 %v4367
  %v4903 = vpop.f32.mrf.mxu0
  %v4904 = vadd.f32 0.0, %v4903
  %v4905 = vpop.f32.mrf.mxu0
  %v4906 = vpop.f32.mrf.mxu0
  %v4907 = vadd.f32 0.0, %v4906
  %v4908 = vpop.f32.mrf.mxu0
  %4909 = vmatprep.mubr.bf16.mxu0 %v4374
  %4910 = vmatmul.mubr.bf16.gmra.mxu0 %v4373
  %v4911 = vpop.f32.mrf.mxu0
  %v4912 = vadd.f32 0.0, %v4911
  %v4913 = vpop.f32.mrf.mxu0
  %v4914 = vpop.f32.mrf.mxu0
  %v4915 = vadd.f32 0.0, %v4914
  %v4916 = vpop.f32.mrf.mxu0
  %4917 = vmatprep.mubr.bf16.mxu0 %v4380
  %4918 = vmatmul.mubr.bf16.gmra.mxu0 %v4379
  %v4919 = vpop.f32.mrf.mxu0
  %v4920 = vadd.f32 0.0, %v4919
  %v4921 = vpop.f32.mrf.mxu0
  %v4922 = vpop.f32.mrf.mxu0
  %v4923 = vadd.f32 0.0, %v4922
  %v4924 = vpop.f32.mrf.mxu0
  %4925 = vmatprep.mubr.bf16.mxu0 %v4386
  %4926 = vmatmul.mubr.bf16.gmra.mxu0 %v4385
  %v4927 = vpop.f32.mrf.mxu0
  %v4928 = vadd.f32 0.0, %v4927
  %v4929 = vpop.f32.mrf.mxu0
  %v4930 = vpop.f32.mrf.mxu0
  %v4931 = vadd.f32 0.0, %v4930
  %v4932 = vpop.f32.mrf.mxu0
  %4933 = vmatprep.mubr.bf16.mxu0 %v4392
  %4934 = vmatmul.mubr.bf16.gmra.mxu0 %v4391
  %v4935 = vpop.f32.mrf.mxu0
  %v4936 = vadd.f32 0.0, %v4935
  %v4937 = vpop.f32.mrf.mxu0
  %v4938 = vpop.f32.mrf.mxu0
  %v4939 = vadd.f32 0.0, %v4938
  %v4940 = vpop.f32.mrf.mxu0
  %4941 = vdwg.mxu0
  %4942 = vmatprep.subr.bf16.mxu0 0
  %4943 = vmatpush1.bf16.msra.mxu0 %v4708
  %4944 = vmatprep.subr.bf16.mxu0 0
  %4945 = vmatpush1.bf16.msra.mxu0 %v4707
  %4946 = vmatprep.subr.bf16.mxu0 0
  %4947 = vmatpush1.bf16.msra.mxu0 %v4706
  %4948 = vmatprep.subr.bf16.mxu0 0
  %4949 = vmatpush1.bf16.msra.mxu0 %v4705
  %4950 = vmatprep.subr.bf16.mxu0 0
  %4951 = vmatpush1.bf16.msra.mxu0 %v4704
  %4952 = vmatprep.subr.bf16.mxu0 0
  %4953 = vmatpush1.bf16.msra.mxu0 %v4703
  %4954 = vmatprep.subr.bf16.mxu0 0
  %4955 = vmatpush1.bf16.msra.mxu0 %v4702
  %4956 = vmatprep.subr.bf16.mxu0 0
  %4957 = vmatpush1.bf16.msra.mxu0 %v4701
  %4958 = vmatprep.subr.bf16.mxu0 0
  %4959 = vmatpush2.bf16.msra.mxu0 %v4716
  %4960 = vmatprep.subr.bf16.mxu0 0
  %4961 = vmatpush2.bf16.msra.mxu0 %v4715
  %4962 = vmatprep.subr.bf16.mxu0 0
  %4963 = vmatpush2.bf16.msra.mxu0 %v4714
  %4964 = vmatprep.subr.bf16.mxu0 0
  %4965 = vmatpush2.bf16.msra.mxu0 %v4713
  %4966 = vmatprep.subr.bf16.mxu0 0
  %4967 = vmatpush2.bf16.msra.mxu0 %v4712
  %4968 = vmatprep.subr.bf16.mxu0 0
  %4969 = vmatpush2.bf16.msra.mxu0 %v4711
  %4970 = vmatprep.subr.bf16.mxu0 0
  %4971 = vmatpush2.bf16.msra.mxu0 %v4710
  %4972 = vmatprep.subr.bf16.mxu0 0
  %4973 = vmatpush2.bf16.msra.mxu0 %v4709
  %4974 = vmatprep.mubr.bf16.mxu0 %v4304
  %4975 = vmatmul.mubr.bf16.gmra.mxu0 %v4303
  %v4976 = vpop.f32.mrf.mxu0
  %v4977 = vadd.f32 %v4816, %v4976
  %v4978 = vpop.f32.mrf.mxu0
  %v4979 = vpop.f32.mrf.mxu0
  %v4980 = vadd.f32 %v4819, %v4979
  %v4981 = vpop.f32.mrf.mxu0
  %4982 = vmatprep.mubr.bf16.mxu0 %v4310
  %4983 = vmatmul.mubr.bf16.gmra.mxu0 %v4309
  %v4984 = vpop.f32.mrf.mxu0
  %v4985 = vadd.f32 %v4824, %v4984
  %v4986 = vpop.f32.mrf.mxu0
  %v4987 = vpop.f32.mrf.mxu0
  %v4988 = vadd.f32 %v4827, %v4987
  %v4989 = vpop.f32.mrf.mxu0
  %4990 = vmatprep.mubr.bf16.mxu0 %v4316
  %4991 = vmatmul.mubr.bf16.gmra.mxu0 %v4315
  %v4992 = vpop.f32.mrf.mxu0
  %v4993 = vadd.f32 %v4832, %v4992
  %v4994 = vpop.f32.mrf.mxu0
  %v4995 = vpop.f32.mrf.mxu0
  %v4996 = vadd.f32 %v4835, %v4995
  %v4997 = vpop.f32.mrf.mxu0
  %4998 = vmatprep.mubr.bf16.mxu0 %v4322
  %4999 = vmatmul.mubr.bf16.gmra.mxu0 %v4321
  %v5000 = vpop.f32.mrf.mxu0
  %v5001 = vadd.f32 %v4840, %v5000
  %v5002 = vpop.f32.mrf.mxu0
  %v5003 = vpop.f32.mrf.mxu0
  %v5004 = vadd.f32 %v4843, %v5003
  %v5005 = vpop.f32.mrf.mxu0
  %5006 = vmatprep.mubr.bf16.mxu0 %v4328
  %5007 = vmatmul.mubr.bf16.gmra.mxu0 %v4327
  %v5008 = vpop.f32.mrf.mxu0
  %v5009 = vadd.f32 %v4848, %v5008
  %v5010 = vpop.f32.mrf.mxu0
  %v5011 = vpop.f32.mrf.mxu0
  %v5012 = vadd.f32 %v4851, %v5011
  %v5013 = vpop.f32.mrf.mxu0
  %5014 = vmatprep.mubr.bf16.mxu0 %v4334
  %5015 = vmatmul.mubr.bf16.gmra.mxu0 %v4333
  %v5016 = vpop.f32.mrf.mxu0
  %v5017 = vadd.f32 %v4856, %v5016
  %v5018 = vpop.f32.mrf.mxu0
  %v5019 = vpop.f32.mrf.mxu0
  %v5020 = vadd.f32 %v4859, %v5019
  %v5021 = vpop.f32.mrf.mxu0
  %5022 = vmatprep.mubr.bf16.mxu0 %v4340
  %5023 = vmatmul.mubr.bf16.gmra.mxu0 %v4339
  %v5024 = vpop.f32.mrf.mxu0
  %v5025 = vadd.f32 %v4864, %v5024
  %v5026 = vpop.f32.mrf.mxu0
  %v5027 = vpop.f32.mrf.mxu0
  %v5028 = vadd.f32 %v4867, %v5027
  %v5029 = vpop.f32.mrf.mxu0
  %5030 = vmatprep.mubr.bf16.mxu0 %v4346
  %5031 = vmatmul.mubr.bf16.gmra.mxu0 %v4345
  %v5032 = vpop.f32.mrf.mxu0
  %v5033 = vadd.f32 %v4872, %v5032
  %v5034 = vpop.f32.mrf.mxu0
  %v5035 = vpop.f32.mrf.mxu0
  %v5036 = vadd.f32 %v4875, %v5035
  %v5037 = vpop.f32.mrf.mxu0
  %5038 = vmatprep.mubr.bf16.mxu0 %v4352
  %5039 = vmatmul.mubr.bf16.gmra.mxu0 %v4351
  %v5040 = vpop.f32.mrf.mxu0
  %v5041 = vadd.f32 %v4880, %v5040
  %v5042 = vpop.f32.mrf.mxu0
  %v5043 = vpop.f32.mrf.mxu0
  %v5044 = vadd.f32 %v4883, %v5043
  %v5045 = vpop.f32.mrf.mxu0
  %5046 = vmatprep.mubr.bf16.mxu0 %v4358
  %5047 = vmatmul.mubr.bf16.gmra.mxu0 %v4357
  %v5048 = vpop.f32.mrf.mxu0
  %v5049 = vadd.f32 %v4888, %v5048
  %v5050 = vpop.f32.mrf.mxu0
  %v5051 = vpop.f32.mrf.mxu0
  %v5052 = vadd.f32 %v4891, %v5051
  %v5053 = vpop.f32.mrf.mxu0
  %5054 = vmatprep.mubr.bf16.mxu0 %v4364
  %5055 = vmatmul.mubr.bf16.gmra.mxu0 %v4363
  %v5056 = vpop.f32.mrf.mxu0
  %v5057 = vadd.f32 %v4896, %v5056
  %v5058 = vpop.f32.mrf.mxu0
  %v5059 = vpop.f32.mrf.mxu0
  %v5060 = vadd.f32 %v4899, %v5059
  %v5061 = vpop.f32.mrf.mxu0
  %5062 = vmatprep.mubr.bf16.mxu0 %v4370
  %5063 = vmatmul.mubr.bf16.gmra.mxu0 %v4369
  %v5064 = vpop.f32.mrf.mxu0
  %v5065 = vadd.f32 %v4904, %v5064
  %v5066 = vpop.f32.mrf.mxu0
  %v5067 = vpop.f32.mrf.mxu0
  %v5068 = vadd.f32 %v4907, %v5067
  %v5069 = vpop.f32.mrf.mxu0
  %5070 = vmatprep.mubr.bf16.mxu0 %v4376
  %5071 = vmatmul.mubr.bf16.gmra.mxu0 %v4375
  %v5072 = vpop.f32.mrf.mxu0
  %v5073 = vadd.f32 %v4912, %v5072
  %v5074 = vpop.f32.mrf.mxu0
  %v5075 = vpop.f32.mrf.mxu0
  %v5076 = vadd.f32 %v4915, %v5075
  %v5077 = vpop.f32.mrf.mxu0
  %5078 = vmatprep.mubr.bf16.mxu0 %v4382
  %5079 = vmatmul.mubr.bf16.gmra.mxu0 %v4381
  %v5080 = vpop.f32.mrf.mxu0
  %v5081 = vadd.f32 %v4920, %v5080
  %v5082 = vpop.f32.mrf.mxu0
  %v5083 = vpop.f32.mrf.mxu0
  %v5084 = vadd.f32 %v4923, %v5083
  %v5085 = vpop.f32.mrf.mxu0
  %5086 = vmatprep.mubr.bf16.mxu0 %v4388
  %5087 = vmatmul.mubr.bf16.gmra.mxu0 %v4387
  %v5088 = vpop.f32.mrf.mxu0
  %v5089 = vadd.f32 %v4928, %v5088
  %v5090 = vpop.f32.mrf.mxu0
  %v5091 = vpop.f32.mrf.mxu0
  %v5092 = vadd.f32 %v4931, %v5091
  %v5093 = vpop.f32.mrf.mxu0
  %5094 = vmatprep.mubr.bf16.mxu0 %v4394
  %5095 = vmatmul.mubr.bf16.gmra.mxu0 %v4393
  %v5096 = vpop.f32.mrf.mxu0
  %v5097 = vadd.f32 %v4936, %v5096
  %v5098 = vpop.f32.mrf.mxu0
  %v5099 = vpop.f32.mrf.mxu0
  %v5100 = vadd.f32 %v4939, %v5099
  %v5101 = vpop.f32.mrf.mxu0
  %5102 = vdwg.mxu0
  %5103 = vmatprep.subr.bf16.mxu0 0
  %5104 = vmatpush1.bf16.msra.mxu0 %v4724
  %5105 = vmatprep.subr.bf16.mxu0 0
  %5106 = vmatpush1.bf16.msra.mxu0 %v4723
  %5107 = vmatprep.subr.bf16.mxu0 0
  %5108 = vmatpush1.bf16.msra.mxu0 %v4722
  %5109 = vmatprep.subr.bf16.mxu0 0
  %5110 = vmatpush1.bf16.msra.mxu0 %v4721
  %5111 = vmatprep.subr.bf16.mxu0 0
  %5112 = vmatpush1.bf16.msra.mxu0 %v4720
  %5113 = vmatprep.subr.bf16.mxu0 0
  %5114 = vmatpush1.bf16.msra.mxu0 %v4719
  %5115 = vmatprep.subr.bf16.mxu0 0
  %5116 = vmatpush1.bf16.msra.mxu0 %v4718
  %5117 = vmatprep.subr.bf16.mxu0 0
  %5118 = vmatpush1.bf16.msra.mxu0 %v4717
  %5119 = vmatprep.subr.bf16.mxu0 0
  %5120 = vmatpush2.bf16.msra.mxu0 %v4732
  %5121 = vmatprep.subr.bf16.mxu0 0
  %5122 = vmatpush2.bf16.msra.mxu0 %v4731
  %5123 = vmatprep.subr.bf16.mxu0 0
  %5124 = vmatpush2.bf16.msra.mxu0 %v4730
  %5125 = vmatprep.subr.bf16.mxu0 0
  %5126 = vmatpush2.bf16.msra.mxu0 %v4729
  %5127 = vmatprep.subr.bf16.mxu0 0
  %5128 = vmatpush2.bf16.msra.mxu0 %v4728
  %5129 = vmatprep.subr.bf16.mxu0 0
  %5130 = vmatpush2.bf16.msra.mxu0 %v4727
  %5131 = vmatprep.subr.bf16.mxu0 0
  %5132 = vmatpush2.bf16.msra.mxu0 %v4726
  %5133 = vmatprep.subr.bf16.mxu0 0
  %5134 = vmatpush2.bf16.msra.mxu0 %v4725
  %5135 = vmatprep.mubr.bf16.mxu0 %v4306
  %5136 = vmatmul.mubr.bf16.gmra.mxu0 %v4305
  %v5137 = vpop.f32.mrf.mxu0
  %v5138 = vadd.f32 %v4977, %v5137
  %v5139 = vpop.f32.mrf.mxu0
  %v5140 = vpop.f32.mrf.mxu0
  %v5141 = vadd.f32 %v4980, %v5140
  %v5142 = vpop.f32.mrf.mxu0
  %5143 = vmatprep.mubr.bf16.mxu0 %v4312
  %5144 = vmatmul.mubr.bf16.gmra.mxu0 %v4311
  %v5145 = vpop.f32.mrf.mxu0
  %v5146 = vadd.f32 %v4985, %v5145
  %v5147 = vpop.f32.mrf.mxu0
  %v5148 = vpop.f32.mrf.mxu0
  %v5149 = vadd.f32 %v4988, %v5148
  %v5150 = vpop.f32.mrf.mxu0
  %5151 = vmatprep.mubr.bf16.mxu0 %v4318
  %5152 = vmatmul.mubr.bf16.gmra.mxu0 %v4317
  %v5153 = vpop.f32.mrf.mxu0
  %v5154 = vadd.f32 %v4993, %v5153
  %v5155 = vpop.f32.mrf.mxu0
  %v5156 = vpop.f32.mrf.mxu0
  %v5157 = vadd.f32 %v4996, %v5156
  %v5158 = vpop.f32.mrf.mxu0
  %5159 = vmatprep.mubr.bf16.mxu0 %v4324
  %5160 = vmatmul.mubr.bf16.gmra.mxu0 %v4323
  %v5161 = vpop.f32.mrf.mxu0
  %v5162 = vadd.f32 %v5001, %v5161
  %v5163 = vpop.f32.mrf.mxu0
  %v5164 = vpop.f32.mrf.mxu0
  %v5165 = vadd.f32 %v5004, %v5164
  %v5166 = vpop.f32.mrf.mxu0
  %5167 = vmatprep.mubr.bf16.mxu0 %v4330
  %5168 = vmatmul.mubr.bf16.gmra.mxu0 %v4329
  %v5169 = vpop.f32.mrf.mxu0
  %v5170 = vadd.f32 %v5009, %v5169
  %v5171 = vpop.f32.mrf.mxu0
  %v5172 = vpop.f32.mrf.mxu0
  %v5173 = vadd.f32 %v5012, %v5172
  %v5174 = vpop.f32.mrf.mxu0
  %5175 = vmatprep.mubr.bf16.mxu0 %v4336
  %5176 = vmatmul.mubr.bf16.gmra.mxu0 %v4335
  %v5177 = vpop.f32.mrf.mxu0
  %v5178 = vadd.f32 %v5017, %v5177
  %v5179 = vpop.f32.mrf.mxu0
  %v5180 = vpop.f32.mrf.mxu0
  %v5181 = vadd.f32 %v5020, %v5180
  %v5182 = vpop.f32.mrf.mxu0
  %5183 = vmatprep.mubr.bf16.mxu0 %v4342
  %5184 = vmatmul.mubr.bf16.gmra.mxu0 %v4341
  %v5185 = vpop.f32.mrf.mxu0
  %v5186 = vadd.f32 %v5025, %v5185
  %v5187 = vpop.f32.mrf.mxu0
  %v5188 = vpop.f32.mrf.mxu0
  %v5189 = vadd.f32 %v5028, %v5188
  %v5190 = vpop.f32.mrf.mxu0
  %5191 = vmatprep.mubr.bf16.mxu0 %v4348
  %5192 = vmatmul.mubr.bf16.gmra.mxu0 %v4347
  %v5193 = vpop.f32.mrf.mxu0
  %v5194 = vadd.f32 %v5033, %v5193
  %v5195 = vpop.f32.mrf.mxu0
  %v5196 = vpop.f32.mrf.mxu0
  %v5197 = vadd.f32 %v5036, %v5196
  %v5198 = vpop.f32.mrf.mxu0
  %5199 = vmatprep.mubr.bf16.mxu0 %v4354
  %5200 = vmatmul.mubr.bf16.gmra.mxu0 %v4353
  %v5201 = vpop.f32.mrf.mxu0
  %v5202 = vadd.f32 %v5041, %v5201
  %v5203 = vpop.f32.mrf.mxu0
  %v5204 = vpop.f32.mrf.mxu0
  %v5205 = vadd.f32 %v5044, %v5204
  %v5206 = vpop.f32.mrf.mxu0
  %5207 = vmatprep.mubr.bf16.mxu0 %v4360
  %5208 = vmatmul.mubr.bf16.gmra.mxu0 %v4359
  %v5209 = vpop.f32.mrf.mxu0
  %v5210 = vadd.f32 %v5049, %v5209
  %v5211 = vpop.f32.mrf.mxu0
  %v5212 = vpop.f32.mrf.mxu0
  %v5213 = vadd.f32 %v5052, %v5212
  %v5214 = vpop.f32.mrf.mxu0
  %5215 = vmatprep.mubr.bf16.mxu0 %v4366
  %5216 = vmatmul.mubr.bf16.gmra.mxu0 %v4365
  %v5217 = vpop.f32.mrf.mxu0
  %v5218 = vadd.f32 %v5057, %v5217
  %v5219 = vpop.f32.mrf.mxu0
  %v5220 = vpop.f32.mrf.mxu0
  %v5221 = vadd.f32 %v5060, %v5220
  %v5222 = vpop.f32.mrf.mxu0
  %5223 = vmatprep.mubr.bf16.mxu0 %v4372
  %5224 = vmatmul.mubr.bf16.gmra.mxu0 %v4371
  %v5225 = vpop.f32.mrf.mxu0
  %v5226 = vadd.f32 %v5065, %v5225
  %v5227 = vpop.f32.mrf.mxu0
  %v5228 = vpop.f32.mrf.mxu0
  %v5229 = vadd.f32 %v5068, %v5228
  %v5230 = vpop.f32.mrf.mxu0
  %5231 = vmatprep.mubr.bf16.mxu0 %v4378
  %5232 = vmatmul.mubr.bf16.gmra.mxu0 %v4377
  %v5233 = vpop.f32.mrf.mxu0
  %v5234 = vadd.f32 %v5073, %v5233
  %v5235 = vpop.f32.mrf.mxu0
  %v5236 = vpop.f32.mrf.mxu0
  %v5237 = vadd.f32 %v5076, %v5236
  %v5238 = vpop.f32.mrf.mxu0
  %5239 = vmatprep.mubr.bf16.mxu0 %v4384
  %5240 = vmatmul.mubr.bf16.gmra.mxu0 %v4383
  %v5241 = vpop.f32.mrf.mxu0
  %v5242 = vadd.f32 %v5081, %v5241
  %v5243 = vpop.f32.mrf.mxu0
  %v5244 = vpop.f32.mrf.mxu0
  %v5245 = vadd.f32 %v5084, %v5244
  %v5246 = vpop.f32.mrf.mxu0
  %5247 = vmatprep.mubr.bf16.mxu0 %v4390
  %5248 = vmatmul.mubr.bf16.gmra.mxu0 %v4389
  %v5249 = vpop.f32.mrf.mxu0
  %v5250 = vadd.f32 %v5089, %v5249
  %v5251 = vpop.f32.mrf.mxu0
  %v5252 = vpop.f32.mrf.mxu0
  %v5253 = vadd.f32 %v5092, %v5252
  %v5254 = vpop.f32.mrf.mxu0
  %5255 = vmatprep.mubr.bf16.mxu0 %v4396
  %5256 = vmatmul.mubr.bf16.gmra.mxu0 %v4395
  %v5257 = vpop.f32.mrf.mxu0
  %v5258 = vadd.f32 %v5097, %v5257
  %v5259 = vpop.f32.mrf.mxu0
  %v5260 = vpop.f32.mrf.mxu0
  %v5261 = vadd.f32 %v5100, %v5260
  %v5262 = vpop.f32.mrf.mxu0
  %5263 = vdwg.mxu0
  %5264 = vst [vmem:[#allocation3] sm:$0xff] %v5138
  %5265 = vst [vmem:[#allocation3 + $0x8] sm:$0xff] %v5141
  %5266 = vst [vmem:[#allocation3 + $0x10] sm:$0xff] %v5146
  %5267 = vst [vmem:[#allocation3 + $0x18] sm:$0xff] %v5149
  %5268 = vst [vmem:[#allocation3 + $0x20] sm:$0xff] %v5154
  %5269 = vst [vmem:[#allocation3 + $0x28] sm:$0xff] %v5157
  %5270 = vst [vmem:[#allocation3 + $0x30] sm:$0xff] %v5162
  %5271 = vst [vmem:[#allocation3 + $0x38] sm:$0xff] %v5165
  %5272 = vst [vmem:[#allocation3 + $0x40] sm:$0xff] %v5170
  %5273 = vst [vmem:[#allocation3 + $0x48] sm:$0xff] %v5173
  %5274 = vst [vmem:[#allocation3 + $0x50] sm:$0xff] %v5178
  %5275 = vst [vmem:[#allocation3 + $0x58] sm:$0xff] %v5181
  %5276 = vst [vmem:[#allocation3 + $0x60] sm:$0xff] %v5186
  %5277 = vst [vmem:[#allocation3 + $0x68] sm:$0xff] %v5189
  %5278 = vst [vmem:[#allocation3 + $0x70] sm:$0xff] %v5194
  %5279 = vst [vmem:[#allocation3 + $0x78] sm:$0xff] %v5197
  %5280 = vst [vmem:[#allocation3 + $0x80] sm:$0xff] %v5202
  %5281 = vst [vmem:[#allocation3 + $0x88] sm:$0xff] %v5205
  %5282 = vst [vmem:[#allocation3 + $0x90] sm:$0xff] %v5210
  %5283 = vst [vmem:[#allocation3 + $0x98] sm:$0xff] %v5213
  %5284 = vst [vmem:[#allocation3 + $0xa0] sm:$0xff] %v5218
  %5285 = vst [vmem:[#allocation3 + $0xa8] sm:$0xff] %v5221
  %5286 = vst [vmem:[#allocation3 + $0xb0] sm:$0xff] %v5226
  %5287 = vst [vmem:[#allocation3 + $0xb8] sm:$0xff] %v5229
  %5288 = vst [vmem:[#allocation3 + $0xc0] sm:$0xff] %v5234
  %5289 = vst [vmem:[#allocation3 + $0xc8] sm:$0xff] %v5237
  %5290 = vst [vmem:[#allocation3 + $0xd0] sm:$0xff] %v5242
  %5291 = vst [vmem:[#allocation3 + $0xd8] sm:$0xff] %v5245
  %5292 = vst [vmem:[#allocation3 + $0xe0] sm:$0xff] %v5250
  %5293 = vst [vmem:[#allocation3 + $0xe8] sm:$0xff] %v5253
  %5294 = vst [vmem:[#allocation3 + $0xf0] sm:$0xff] %v5258
  %5295 = vst [vmem:[#allocation3 + $0xf8] sm:$0xff] %v5261
  %v5296 = vld [vmem:[#allocation2] sm:$0xff]
  %v5297 = vld [vmem:[#allocation2 + $0x8] sm:$0xff]
  %v5298 = vld [vmem:[#allocation2 + $0x10] sm:$0xff]
  %v5299 = vld [vmem:[#allocation2 + $0x18] sm:$0xff]
  %v5300 = vld [vmem:[#allocation2 + $0x20] sm:$0xff]
  %v5301 = vld [vmem:[#allocation2 + $0x28] sm:$0xff]
  %v5302 = vld [vmem:[#allocation2 + $0x30] sm:$0xff]
  %v5303 = vld [vmem:[#allocation2 + $0x38] sm:$0xff]
  %v5304 = vld [vmem:[#allocation2 + $0x40] sm:$0xff]
  %v5305 = vld [vmem:[#allocation2 + $0x48] sm:$0xff]
  %v5306 = vld [vmem:[#allocation2 + $0x50] sm:$0xff]
  %v5307 = vld [vmem:[#allocation2 + $0x58] sm:$0xff]
  %v5308 = vld [vmem:[#allocation2 + $0x60] sm:$0xff]
  %v5309 = vld [vmem:[#allocation2 + $0x68] sm:$0xff]
  %v5310 = vld [vmem:[#allocation2 + $0x70] sm:$0xff]
  %v5311 = vld [vmem:[#allocation2 + $0x78] sm:$0xff]
  %v5312 = vld [vmem:[#allocation2 + $0x80] sm:$0xff]
  %v5313 = vld [vmem:[#allocation2 + $0x88] sm:$0xff]
  %v5314 = vld [vmem:[#allocation2 + $0x90] sm:$0xff]
  %v5315 = vld [vmem:[#allocation2 + $0x98] sm:$0xff]
  %v5316 = vld [vmem:[#allocation2 + $0xa0] sm:$0xff]
  %v5317 = vld [vmem:[#allocation2 + $0xa8] sm:$0xff]
  %v5318 = vld [vmem:[#allocation2 + $0xb0] sm:$0xff]
  %v5319 = vld [vmem:[#allocation2 + $0xb8] sm:$0xff]
  %v5320 = vld [vmem:[#allocation2 + $0xc0] sm:$0xff]
  %v5321 = vld [vmem:[#allocation2 + $0xc8] sm:$0xff]
  %v5322 = vld [vmem:[#allocation2 + $0xd0] sm:$0xff]
  %v5323 = vld [vmem:[#allocation2 + $0xd8] sm:$0xff]
  %v5324 = vld [vmem:[#allocation2 + $0xe0] sm:$0xff]
  %v5325 = vld [vmem:[#allocation2 + $0xe8] sm:$0xff]
  %v5326 = vld [vmem:[#allocation2 + $0xf0] sm:$0xff]
  %v5327 = vld [vmem:[#allocation2 + $0xf8] sm:$0xff]
  %v5328 = vmul.f32 %v5296, 0.5
  %v5329 = vmul.f32 %v5297, 0.5
  %v5330 = vmul.f32 %v5298, 0.5
  %v5331 = vmul.f32 %v5299, 0.5
  %v5332 = vmul.f32 %v5300, 0.5
  %v5333 = vmul.f32 %v5301, 0.5
  %v5334 = vmul.f32 %v5302, 0.5
  %v5335 = vmul.f32 %v5303, 0.5
  %v5336 = vmul.f32 %v5304, 0.5
  %v5337 = vmul.f32 %v5305, 0.5
  %v5338 = vmul.f32 %v5306, 0.5
  %v5339 = vmul.f32 %v5307, 0.5
  %v5340 = vmul.f32 %v5308, 0.5
  %v5341 = vmul.f32 %v5309, 0.5
  %v5342 = vmul.f32 %v5310, 0.5
  %v5343 = vmul.f32 %v5311, 0.5
  %v5344 = vmul.f32 %v5312, 0.5
  %v5345 = vmul.f32 %v5313, 0.5
  %v5346 = vmul.f32 %v5314, 0.5
  %v5347 = vmul.f32 %v5315, 0.5
  %v5348 = vmul.f32 %v5316, 0.5
  %v5349 = vmul.f32 %v5317, 0.5
  %v5350 = vmul.f32 %v5318, 0.5
  %v5351 = vmul.f32 %v5319, 0.5
  %v5352 = vmul.f32 %v5320, 0.5
  %v5353 = vmul.f32 %v5321, 0.5
  %v5354 = vmul.f32 %v5322, 0.5
  %v5355 = vmul.f32 %v5323, 0.5
  %v5356 = vmul.f32 %v5324, 0.5
  %v5357 = vmul.f32 %v5325, 0.5
  %v5358 = vmul.f32 %v5326, 0.5
  %v5359 = vmul.f32 %v5327, 0.5
  %v5360 = vld [vmem:[#allocation3] sm:$0xff]
  %v5361 = vld [vmem:[#allocation3 + $0x8] sm:$0xff]
  %v5362 = vld [vmem:[#allocation3 + $0x10] sm:$0xff]
  %v5363 = vld [vmem:[#allocation3 + $0x18] sm:$0xff]
  %v5364 = vld [vmem:[#allocation3 + $0x20] sm:$0xff]
  %v5365 = vld [vmem:[#allocation3 + $0x28] sm:$0xff]
  %v5366 = vld [vmem:[#allocation3 + $0x30] sm:$0xff]
  %v5367 = vld [vmem:[#allocation3 + $0x38] sm:$0xff]
  %v5368 = vld [vmem:[#allocation3 + $0x40] sm:$0xff]
  %v5369 = vld [vmem:[#allocation3 + $0x48] sm:$0xff]
  %v5370 = vld [vmem:[#allocation3 + $0x50] sm:$0xff]
  %v5371 = vld [vmem:[#allocation3 + $0x58] sm:$0xff]
  %v5372 = vld [vmem:[#allocation3 + $0x60] sm:$0xff]
  %v5373 = vld [vmem:[#allocation3 + $0x68] sm:$0xff]
  %v5374 = vld [vmem:[#allocation3 + $0x70] sm:$0xff]
  %v5375 = vld [vmem:[#allocation3 + $0x78] sm:$0xff]
  %v5376 = vld [vmem:[#allocation3 + $0x80] sm:$0xff]
  %v5377 = vld [vmem:[#allocation3 + $0x88] sm:$0xff]
  %v5378 = vld [vmem:[#allocation3 + $0x90] sm:$0xff]
  %v5379 = vld [vmem:[#allocation3 + $0x98] sm:$0xff]
  %v5380 = vld [vmem:[#allocation3 + $0xa0] sm:$0xff]
  %v5381 = vld [vmem:[#allocation3 + $0xa8] sm:$0xff]
  %v5382 = vld [vmem:[#allocation3 + $0xb0] sm:$0xff]
  %v5383 = vld [vmem:[#allocation3 + $0xb8] sm:$0xff]
  %v5384 = vld [vmem:[#allocation3 + $0xc0] sm:$0xff]
  %v5385 = vld [vmem:[#allocation3 + $0xc8] sm:$0xff]
  %v5386 = vld [vmem:[#allocation3 + $0xd0] sm:$0xff]
  %v5387 = vld [vmem:[#allocation3 + $0xd8] sm:$0xff]
  %v5388 = vld [vmem:[#allocation3 + $0xe0] sm:$0xff]
  %v5389 = vld [vmem:[#allocation3 + $0xe8] sm:$0xff]
  %v5390 = vld [vmem:[#allocation3 + $0xf0] sm:$0xff]
  %v5391 = vld [vmem:[#allocation3 + $0xf8] sm:$0xff]
  %v5392 = vmul.f32 %v5360, 0.5
  %v5393 = vmul.f32 %v5361, 0.5
  %v5394 = vmul.f32 %v5362, 0.5
  %v5395 = vmul.f32 %v5363, 0.5
  %v5396 = vmul.f32 %v5364, 0.5
  %v5397 = vmul.f32 %v5365, 0.5
  %v5398 = vmul.f32 %v5366, 0.5
  %v5399 = vmul.f32 %v5367, 0.5
  %v5400 = vmul.f32 %v5368, 0.5
  %v5401 = vmul.f32 %v5369, 0.5
  %v5402 = vmul.f32 %v5370, 0.5
  %v5403 = vmul.f32 %v5371, 0.5
  %v5404 = vmul.f32 %v5372, 0.5
  %v5405 = vmul.f32 %v5373, 0.5
  %v5406 = vmul.f32 %v5374, 0.5
  %v5407 = vmul.f32 %v5375, 0.5
  %v5408 = vmul.f32 %v5376, 0.5
  %v5409 = vmul.f32 %v5377, 0.5
  %v5410 = vmul.f32 %v5378, 0.5
  %v5411 = vmul.f32 %v5379, 0.5
  %v5412 = vmul.f32 %v5380, 0.5
  %v5413 = vmul.f32 %v5381, 0.5
  %v5414 = vmul.f32 %v5382, 0.5
  %v5415 = vmul.f32 %v5383, 0.5
  %v5416 = vmul.f32 %v5384, 0.5
  %v5417 = vmul.f32 %v5385, 0.5
  %v5418 = vmul.f32 %v5386, 0.5
  %v5419 = vmul.f32 %v5387, 0.5
  %v5420 = vmul.f32 %v5388, 0.5
  %v5421 = vmul.f32 %v5389, 0.5
  %v5422 = vmul.f32 %v5390, 0.5
  %v5423 = vmul.f32 %v5391, 0.5
  %v5424 = vadd.f32 %v5328, %v5392
  %v5425 = vadd.f32 %v5329, %v5393
  %v5426 = vadd.f32 %v5330, %v5394
  %v5427 = vadd.f32 %v5331, %v5395
  %v5428 = vadd.f32 %v5332, %v5396
  %v5429 = vadd.f32 %v5333, %v5397
  %v5430 = vadd.f32 %v5334, %v5398
  %v5431 = vadd.f32 %v5335, %v5399
  %v5432 = vadd.f32 %v5336, %v5400
  %v5433 = vadd.f32 %v5337, %v5401
  %v5434 = vadd.f32 %v5338, %v5402
  %v5435 = vadd.f32 %v5339, %v5403
  %v5436 = vadd.f32 %v5340, %v5404
  %v5437 = vadd.f32 %v5341, %v5405
  %v5438 = vadd.f32 %v5342, %v5406
  %v5439 = vadd.f32 %v5343, %v5407
  %v5440 = vadd.f32 %v5344, %v5408
  %v5441 = vadd.f32 %v5345, %v5409
  %v5442 = vadd.f32 %v5346, %v5410
  %v5443 = vadd.f32 %v5347, %v5411
  %v5444 = vadd.f32 %v5348, %v5412
  %v5445 = vadd.f32 %v5349, %v5413
  %v5446 = vadd.f32 %v5350, %v5414
  %v5447 = vadd.f32 %v5351, %v5415
  %v5448 = vadd.f32 %v5352, %v5416
  %v5449 = vadd.f32 %v5353, %v5417
  %v5450 = vadd.f32 %v5354, %v5418
  %v5451 = vadd.f32 %v5355, %v5419
  %v5452 = vadd.f32 %v5356, %v5420
  %v5453 = vadd.f32 %v5357, %v5421
  %v5454 = vadd.f32 %v5358, %v5422
  %v5455 = vadd.f32 %v5359, %v5423
  %v5456 = vmax.f32 %v5424, 0.0
  %v5457 = vmax.f32 %v5425, 0.0
  %v5458 = vmax.f32 %v5426, 0.0
  %v5459 = vmax.f32 %v5427, 0.0
  %v5460 = vmax.f32 %v5428, 0.0
  %v5461 = vmax.f32 %v5429, 0.0
  %v5462 = vmax.f32 %v5430, 0.0
  %v5463 = vmax.f32 %v5431, 0.0
  %v5464 = vmax.f32 %v5432, 0.0
  %v5465 = vmax.f32 %v5433, 0.0
  %v5466 = vmax.f32 %v5434, 0.0
  %v5467 = vmax.f32 %v5435, 0.0
  %v5468 = vmax.f32 %v5436, 0.0
  %v5469 = vmax.f32 %v5437, 0.0
  %v5470 = vmax.f32 %v5438, 0.0
  %v5471 = vmax.f32 %v5439, 0.0
  %v5472 = vmax.f32 %v5440, 0.0
  %v5473 = vmax.f32 %v5441, 0.0
  %v5474 = vmax.f32 %v5442, 0.0
  %v5475 = vmax.f32 %v5443, 0.0
  %v5476 = vmax.f32 %v5444, 0.0
  %v5477 = vmax.f32 %v5445, 0.0
  %v5478 = vmax.f32 %v5446, 0.0
  %v5479 = vmax.f32 %v5447, 0.0
  %v5480 = vmax.f32 %v5448, 0.0
  %v5481 = vmax.f32 %v5449, 0.0
  %v5482 = vmax.f32 %v5450, 0.0
  %v5483 = vmax.f32 %v5451, 0.0
  %v5484 = vmax.f32 %v5452, 0.0
  %v5485 = vmax.f32 %v5453, 0.0
  %v5486 = vmax.f32 %v5454, 0.0
  %v5487 = vmax.f32 %v5455, 0.0
  %v5488 = vld [vmem:[%s3] sm:$0xff]
  %v5489 = vld [vmem:[%s3 + $0x8] sm:$0xff]
  %v5490 = vld [vmem:[%s3 + $0x10] sm:$0xff]
  %v5491 = vld [vmem:[%s3 + $0x18] sm:$0xff]
  %v5492 = vld [vmem:[%s3 + $0x20] sm:$0xff]
  %v5493 = vld [vmem:[%s3 + $0x28] sm:$0xff]
  %v5494 = vld [vmem:[%s3 + $0x30] sm:$0xff]
  %v5495 = vld [vmem:[%s3 + $0x38] sm:$0xff]
  %v5496 = vld [vmem:[%s3 + $0x40] sm:$0xff]
  %v5497 = vld [vmem:[%s3 + $0x48] sm:$0xff]
  %v5498 = vld [vmem:[%s3 + $0x50] sm:$0xff]
  %v5499 = vld [vmem:[%s3 + $0x58] sm:$0xff]
  %v5500 = vld [vmem:[%s3 + $0x60] sm:$0xff]
  %v5501 = vld [vmem:[%s3 + $0x68] sm:$0xff]
  %v5502 = vld [vmem:[%s3 + $0x70] sm:$0xff]
  %v5503 = vld [vmem:[%s3 + $0x78] sm:$0xff]
  %5504 = vmatprep.subr.mxu0 0.0
  %5505 = vmatpush1.msra.mxu0 %v5503
  %5506 = vmatprep.subr.mxu0 0.0
  %5507 = vmatpush1.msra.mxu0 %v5502
  %5508 = vmatprep.subr.mxu0 0.0
  %5509 = vmatpush1.msra.mxu0 %v5501
  %5510 = vmatprep.subr.mxu0 0.0
  %5511 = vmatpush1.msra.mxu0 %v5500
  %5512 = vmatprep.subr.mxu0 0.0
  %5513 = vmatpush1.msra.mxu0 %v5499
  %5514 = vmatprep.subr.mxu0 0.0
  %5515 = vmatpush1.msra.mxu0 %v5498
  %5516 = vmatprep.subr.mxu0 0.0
  %5517 = vmatpush1.msra.mxu0 %v5497
  %5518 = vmatprep.subr.mxu0 0.0
  %5519 = vmatpush1.msra.mxu0 %v5496
  %5520 = vmatprep.subr.mxu0 0.0
  %5521 = vmatpush1.msra.mxu0 %v5495
  %5522 = vmatprep.subr.mxu0 0.0
  %5523 = vmatpush1.msra.mxu0 %v5494
  %5524 = vmatprep.subr.mxu0 0.0
  %5525 = vmatpush1.msra.mxu0 %v5493
  %5526 = vmatprep.subr.mxu0 0.0
  %5527 = vmatpush1.msra.mxu0 %v5492
  %5528 = vmatprep.subr.mxu0 0.0
  %5529 = vmatpush1.msra.mxu0 %v5491
  %5530 = vmatprep.subr.mxu0 0.0
  %5531 = vmatpush1.msra.mxu0 %v5490
  %5532 = vmatprep.subr.mxu0 0.0
  %5533 = vmatpush1.msra.mxu0 %v5489
  %5534 = vmatprep.subr.mxu0 0.0
  %5535 = vmatpush1.msra.mxu0 %v5488
  %5536 = vmatprep.subr.mxu0 0.0
  %5537 = vmatpush2.msra.mxu0 0.0
  %5538 = vmatprep.subr.mxu0 0.0
  %5539 = vmatpush2.msra.mxu0 0.0
  %5540 = vmatprep.subr.mxu0 0.0
  %5541 = vmatpush2.msra.mxu0 0.0
  %5542 = vmatprep.subr.mxu0 0.0
  %5543 = vmatpush2.msra.mxu0 0.0
  %5544 = vmatprep.subr.mxu0 0.0
  %5545 = vmatpush2.msra.mxu0 0.0
  %5546 = vmatprep.subr.mxu0 0.0
  %5547 = vmatpush2.msra.mxu0 0.0
  %5548 = vmatprep.subr.mxu0 0.0
  %5549 = vmatpush2.msra.mxu0 0.0
  %5550 = vmatprep.subr.mxu0 0.0
  %5551 = vmatpush2.msra.mxu0 0.0
  %5552 = vmatprep.subr.mxu0 0.0
  %5553 = vmatpush2.msra.mxu0 0.0
  %5554 = vmatprep.subr.mxu0 0.0
  %5555 = vmatpush2.msra.mxu0 0.0
  %5556 = vmatprep.subr.mxu0 0.0
  %5557 = vmatpush2.msra.mxu0 0.0
  %5558 = vmatprep.subr.mxu0 0.0
  %5559 = vmatpush2.msra.mxu0 0.0
  %5560 = vmatprep.subr.mxu0 0.0
  %5561 = vmatpush2.msra.mxu0 0.0
  %5562 = vmatprep.subr.mxu0 0.0
  %5563 = vmatpush2.msra.mxu0 0.0
  %5564 = vmatprep.subr.mxu0 0.0
  %5565 = vmatpush2.msra.mxu0 0.0
  %5566 = vmatprep.subr.mxu0 0.0
  %5567 = vmatpush2.msra.mxu0 0.0
  %5568 = vmatprep.mubr.f32.mxu0 0.0
  %5569 = vmatmul.mubr.f32.gmra.mxu0 %v5456
  %v5570 = vpop.f32.mrf.mxu0
  %v5571 = vadd.f32 0.0, %v5570
  %v5572 = vpop.f32.mrf.mxu0
  %5573 = vmatprep.mubr.f32.mxu0 0.0
  %5574 = vmatmul.mubr.f32.gmra.mxu0 %v5457
  %v5575 = vpop.f32.mrf.mxu0
  %v5576 = vadd.f32 0.0, %v5575
  %v5577 = vpop.f32.mrf.mxu0
  %5578 = vmatprep.mubr.f32.mxu0 0.0
  %5579 = vmatmul.mubr.f32.gmra.mxu0 %v5458
  %v5580 = vpop.f32.mrf.mxu0
  %v5581 = vadd.f32 0.0, %v5580
  %v5582 = vpop.f32.mrf.mxu0
  %5583 = vmatprep.mubr.f32.mxu0 0.0
  %5584 = vmatmul.mubr.f32.gmra.mxu0 %v5459
  %v5585 = vpop.f32.mrf.mxu0
  %v5586 = vadd.f32 0.0, %v5585
  %v5587 = vpop.f32.mrf.mxu0
  %5588 = vmatprep.mubr.f32.mxu0 0.0
  %5589 = vmatmul.mubr.f32.gmra.mxu0 %v5460
  %v5590 = vpop.f32.mrf.mxu0
  %v5591 = vadd.f32 0.0, %v5590
  %v5592 = vpop.f32.mrf.mxu0
  %5593 = vmatprep.mubr.f32.mxu0 0.0
  %5594 = vmatmul.mubr.f32.gmra.mxu0 %v5461
  %v5595 = vpop.f32.mrf.mxu0
  %v5596 = vadd.f32 0.0, %v5595
  %v5597 = vpop.f32.mrf.mxu0
  %5598 = vmatprep.mubr.f32.mxu0 0.0
  %5599 = vmatmul.mubr.f32.gmra.mxu0 %v5462
  %v5600 = vpop.f32.mrf.mxu0
  %v5601 = vadd.f32 0.0, %v5600
  %v5602 = vpop.f32.mrf.mxu0
  %5603 = vmatprep.mubr.f32.mxu0 0.0
  %5604 = vmatmul.mubr.f32.gmra.mxu0 %v5463
  %v5605 = vpop.f32.mrf.mxu0
  %v5606 = vadd.f32 0.0, %v5605
  %v5607 = vpop.f32.mrf.mxu0
  %5608 = vmatprep.mubr.f32.mxu0 0.0
  %5609 = vmatmul.mubr.f32.gmra.mxu0 %v5464
  %v5610 = vpop.f32.mrf.mxu0
  %v5611 = vadd.f32 0.0, %v5610
  %v5612 = vpop.f32.mrf.mxu0
  %5613 = vmatprep.mubr.f32.mxu0 0.0
  %5614 = vmatmul.mubr.f32.gmra.mxu0 %v5465
  %v5615 = vpop.f32.mrf.mxu0
  %v5616 = vadd.f32 0.0, %v5615
  %v5617 = vpop.f32.mrf.mxu0
  %5618 = vmatprep.mubr.f32.mxu0 0.0
  %5619 = vmatmul.mubr.f32.gmra.mxu0 %v5466
  %v5620 = vpop.f32.mrf.mxu0
  %v5621 = vadd.f32 0.0, %v5620
  %v5622 = vpop.f32.mrf.mxu0
  %5623 = vmatprep.mubr.f32.mxu0 0.0
  %5624 = vmatmul.mubr.f32.gmra.mxu0 %v5467
  %v5625 = vpop.f32.mrf.mxu0
  %v5626 = vadd.f32 0.0, %v5625
  %v5627 = vpop.f32.mrf.mxu0
  %5628 = vmatprep.mubr.f32.mxu0 0.0
  %5629 = vmatmul.mubr.f32.gmra.mxu0 %v5468
  %v5630 = vpop.f32.mrf.mxu0
  %v5631 = vadd.f32 0.0, %v5630
  %v5632 = vpop.f32.mrf.mxu0
  %5633 = vmatprep.mubr.f32.mxu0 0.0
  %5634 = vmatmul.mubr.f32.gmra.mxu0 %v5469
  %v5635 = vpop.f32.mrf.mxu0
  %v5636 = vadd.f32 0.0, %v5635
  %v5637 = vpop.f32.mrf.mxu0
  %5638 = vmatprep.mubr.f32.mxu0 0.0
  %5639 = vmatmul.mubr.f32.gmra.mxu0 %v5470
  %v5640 = vpop.f32.mrf.mxu0
  %v5641 = vadd.f32 0.0, %v5640
  %v5642 = vpop.f32.mrf.mxu0
  %5643 = vmatprep.mubr.f32.mxu0 0.0
  %5644 = vmatmul.mubr.f32.gmra.mxu0 %v5471
  %v5645 = vpop.f32.mrf.mxu0
  %v5646 = vadd.f32 0.0, %v5645
  %v5647 = vpop.f32.mrf.mxu0
  %5648 = vmatprep.mubr.f32.mxu0 0.0
  %5649 = vmatmul.mubr.f32.gmra.mxu0 %v5472
  %v5650 = vpop.f32.mrf.mxu0
  %v5651 = vadd.f32 0.0, %v5650
  %v5652 = vpop.f32.mrf.mxu0
  %5653 = vmatprep.mubr.f32.mxu0 0.0
  %5654 = vmatmul.mubr.f32.gmra.mxu0 %v5473
  %v5655 = vpop.f32.mrf.mxu0
  %v5656 = vadd.f32 0.0, %v5655
  %v5657 = vpop.f32.mrf.mxu0
  %5658 = vmatprep.mubr.f32.mxu0 0.0
  %5659 = vmatmul.mubr.f32.gmra.mxu0 %v5474
  %v5660 = vpop.f32.mrf.mxu0
  %v5661 = vadd.f32 0.0, %v5660
  %v5662 = vpop.f32.mrf.mxu0
  %5663 = vmatprep.mubr.f32.mxu0 0.0
  %5664 = vmatmul.mubr.f32.gmra.mxu0 %v5475
  %v5665 = vpop.f32.mrf.mxu0
  %v5666 = vadd.f32 0.0, %v5665
  %v5667 = vpop.f32.mrf.mxu0
  %5668 = vmatprep.mubr.f32.mxu0 0.0
  %5669 = vmatmul.mubr.f32.gmra.mxu0 %v5476
  %v5670 = vpop.f32.mrf.mxu0
  %v5671 = vadd.f32 0.0, %v5670
  %v5672 = vpop.f32.mrf.mxu0
  %5673 = vmatprep.mubr.f32.mxu0 0.0
  %5674 = vmatmul.mubr.f32.gmra.mxu0 %v5477
  %v5675 = vpop.f32.mrf.mxu0
  %v5676 = vadd.f32 0.0, %v5675
  %v5677 = vpop.f32.mrf.mxu0
  %5678 = vmatprep.mubr.f32.mxu0 0.0
  %5679 = vmatmul.mubr.f32.gmra.mxu0 %v5478
  %v5680 = vpop.f32.mrf.mxu0
  %v5681 = vadd.f32 0.0, %v5680
  %v5682 = vpop.f32.mrf.mxu0
  %5683 = vmatprep.mubr.f32.mxu0 0.0
  %5684 = vmatmul.mubr.f32.gmra.mxu0 %v5479
  %v5685 = vpop.f32.mrf.mxu0
  %v5686 = vadd.f32 0.0, %v5685
  %v5687 = vpop.f32.mrf.mxu0
  %5688 = vmatprep.mubr.f32.mxu0 0.0
  %5689 = vmatmul.mubr.f32.gmra.mxu0 %v5480
  %v5690 = vpop.f32.mrf.mxu0
  %v5691 = vadd.f32 0.0, %v5690
  %v5692 = vpop.f32.mrf.mxu0
  %5693 = vmatprep.mubr.f32.mxu0 0.0
  %5694 = vmatmul.mubr.f32.gmra.mxu0 %v5481
  %v5695 = vpop.f32.mrf.mxu0
  %v5696 = vadd.f32 0.0, %v5695
  %v5697 = vpop.f32.mrf.mxu0
  %5698 = vmatprep.mubr.f32.mxu0 0.0
  %5699 = vmatmul.mubr.f32.gmra.mxu0 %v5482
  %v5700 = vpop.f32.mrf.mxu0
  %v5701 = vadd.f32 0.0, %v5700
  %v5702 = vpop.f32.mrf.mxu0
  %5703 = vmatprep.mubr.f32.mxu0 0.0
  %5704 = vmatmul.mubr.f32.gmra.mxu0 %v5483
  %v5705 = vpop.f32.mrf.mxu0
  %v5706 = vadd.f32 0.0, %v5705
  %v5707 = vpop.f32.mrf.mxu0
  %5708 = vmatprep.mubr.f32.mxu0 0.0
  %5709 = vmatmul.mubr.f32.gmra.mxu0 %v5484
  %v5710 = vpop.f32.mrf.mxu0
  %v5711 = vadd.f32 0.0, %v5710
  %v5712 = vpop.f32.mrf.mxu0
  %5713 = vmatprep.mubr.f32.mxu0 0.0
  %5714 = vmatmul.mubr.f32.gmra.mxu0 %v5485
  %v5715 = vpop.f32.mrf.mxu0
  %v5716 = vadd.f32 0.0, %v5715
  %v5717 = vpop.f32.mrf.mxu0
  %5718 = vmatprep.mubr.f32.mxu0 0.0
  %5719 = vmatmul.mubr.f32.gmra.mxu0 %v5486
  %v5720 = vpop.f32.mrf.mxu0
  %v5721 = vadd.f32 0.0, %v5720
  %v5722 = vpop.f32.mrf.mxu0
  %5723 = vmatprep.mubr.f32.mxu0 0.0
  %5724 = vmatmul.mubr.f32.gmra.mxu0 %v5487
  %v5725 = vpop.f32.mrf.mxu0
  %v5726 = vadd.f32 0.0, %v5725
  %v5727 = vpop.f32.mrf.mxu0
  %5728 = vdwg.mxu0
  %vm5729 = vcmask 523264
  %5730 = vst.msk [vmem:[%s5] sm:$0xff] %vm5729, %v5571
  %5731 = vst.msk [vmem:[%s5 + $0x8] sm:$0xff] %vm5729, %v5576
  %5732 = vst.msk [vmem:[%s5 + $0x10] sm:$0xff] %vm5729, %v5581
  %5733 = vst.msk [vmem:[%s5 + $0x18] sm:$0xff] %vm5729, %v5586
  %5734 = vst.msk [vmem:[%s5 + $0x20] sm:$0xff] %vm5729, %v5591
  %5735 = vst.msk [vmem:[%s5 + $0x28] sm:$0xff] %vm5729, %v5596
  %5736 = vst.msk [vmem:[%s5 + $0x30] sm:$0xff] %vm5729, %v5601
  %5737 = vst.msk [vmem:[%s5 + $0x38] sm:$0xff] %vm5729, %v5606
  %5738 = vst.msk [vmem:[%s5 + $0x40] sm:$0xff] %vm5729, %v5611
  %5739 = vst.msk [vmem:[%s5 + $0x48] sm:$0xff] %vm5729, %v5616
  %5740 = vst.msk [vmem:[%s5 + $0x50] sm:$0xff] %vm5729, %v5621
  %5741 = vst.msk [vmem:[%s5 + $0x58] sm:$0xff] %vm5729, %v5626
  %5742 = vst.msk [vmem:[%s5 + $0x60] sm:$0xff] %vm5729, %v5631
  %5743 = vst.msk [vmem:[%s5 + $0x68] sm:$0xff] %vm5729, %v5636
  %5744 = vst.msk [vmem:[%s5 + $0x70] sm:$0xff] %vm5729, %v5641
  %5745 = vst.msk [vmem:[%s5 + $0x78] sm:$0xff] %vm5729, %v5646
  %5746 = vst.msk [vmem:[%s5 + $0x80] sm:$0xff] %vm5729, %v5651
  %5747 = vst.msk [vmem:[%s5 + $0x88] sm:$0xff] %vm5729, %v5656
  %5748 = vst.msk [vmem:[%s5 + $0x90] sm:$0xff] %vm5729, %v5661
  %5749 = vst.msk [vmem:[%s5 + $0x98] sm:$0xff] %vm5729, %v5666
  %5750 = vst.msk [vmem:[%s5 + $0xa0] sm:$0xff] %vm5729, %v5671
  %5751 = vst.msk [vmem:[%s5 + $0xa8] sm:$0xff] %vm5729, %v5676
  %5752 = vst.msk [vmem:[%s5 + $0xb0] sm:$0xff] %vm5729, %v5681
  %5753 = vst.msk [vmem:[%s5 + $0xb8] sm:$0xff] %vm5729, %v5686
  %5754 = vst.msk [vmem:[%s5 + $0xc0] sm:$0xff] %vm5729, %v5691
  %5755 = vst.msk [vmem:[%s5 + $0xc8] sm:$0xff] %vm5729, %v5696
  %5756 = vst.msk [vmem:[%s5 + $0xd0] sm:$0xff] %vm5729, %v5701
  %5757 = vst.msk [vmem:[%s5 + $0xd8] sm:$0xff] %vm5729, %v5706
  %5758 = vst.msk [vmem:[%s5 + $0xe0] sm:$0xff] %vm5729, %v5711
  %5759 = vst.msk [vmem:[%s5 + $0xe8] sm:$0xff] %vm5729, %v5716
  %5760 = vst.msk [vmem:[%s5 + $0xf0] sm:$0xff] %vm5729, %v5721
  %5761 = vst.msk [vmem:[%s5 + $0xf8] sm:$0xff] %vm5729, %v5726
  // Predicated region
  $region26: #{tpu_custom_call.1} parent=0 // pred_check
    _
  $region27: #{tpu_custom_call.1} parent=0 // pred_check_branch
    %5763 = sbr.rel (0) target = $region29
  $region28: #{tpu_custom_call.1} parent=0 // pred_region
    _
  $region29: #{tpu_custom_call.1} parent=0 // pred_fallthru
    _
  // Predicated region
  $region30: #{tpu_custom_call.1} parent=0 // pred_check
    _
  $region31: #{tpu_custom_call.1} parent=0 // pred_check_branch
    %5765 = sbr.rel (0) target = $region33
  $region32: #{tpu_custom_call.1} parent=0 // pred_region
    _
  $region33: #{tpu_custom_call.1} parent=0 // pred_fallthru
    _
  %5766 = vsyncmov [#allocation6]
  %s5767 = vpop.sfrf %5766
  %p5768 = scmp.eq.s32.totalorder %s5767, 0
  %p5769 = pneg %p5768
  %5771 = shalt.err (%p5769)
  %s5772 = scalar_lea.sflag [#allocation6], 1
  %5773 = vsyncmov %s5772
  %s5774 = vpop.sfrf %5773
  %p5775 = scmp.eq.s32.totalorder %s5774, 0
  %p5776 = pneg %p5775
  %5778 = shalt.err (%p5776)

</llo_original>
